<compile_context>
chip_gen: v5e
topology: v5e:2x2
jax: 0.10.0
libtpu: 0.0.40
codegen_flags: <defaults>
</compile_context>

<pallas_src>
import functools

import numpy as np
import jax
import jax.numpy as jnp
from jax.experimental import pallas as pl
from jax.experimental.pallas import tpu as pltpu

_VMEM = pl.BlockSpec(memory_space=pltpu.MemorySpace.VMEM)

# DEFAULT precision (single bf16 MXU pass) for gathers / pools / conv weights;
# HIGHEST only for the handful of tiny head matmuls (extra passes are negligible).
_DOT = functools.partial(jnp.dot, preferred_element_type=jnp.float32)
_DOT_HI = functools.partial(jnp.dot, preferred_element_type=jnp.float32,
                            precision=jax.lax.Precision.HIGHEST)

_COUT = (24, 48, 64)      # merged output channels of conv stages 1/2/3
_WROW = (0, 8, 32, 80)    # row offsets of the 3 stages inside the merged weight slab
_LANE = 128               # each conv-offset weight block occupies its own 128-lane slot
_SPAD = 8                 # sublane pad per spatial position in the stage-3 output


def _round8(n):
    return ((n + 7) // 8) * 8


# ----------------------------------------------------------------------------
# The single fused forward kernel
# ----------------------------------------------------------------------------

def _conv_stage(x, g_ref, wc_ref, b_ref, stage):
    """One 2x2 'conv' stage: 2 MXU matmuls + aligned relayout + bias + ReLU."""
    cout = _COUT[stage]
    w = wc_ref[_WROW[stage]:_WROW[stage + 1], :]               # (Cin_pad, 4*128)
    z = _DOT(x, w)                                             # (Rin_pad, 4*128)
    # (Rin_pad, 4 blocks of Cout) -> (4*Rin_pad, Cout); slices start on 128-lane
    # boundaries and each piece has a multiple-of-8 row count -> clean relayout.
    zs = jnp.concatenate([z[:, i * _LANE:i * _LANE + cout] for i in range(4)], axis=0)
    acc = _DOT(g_ref[...], zs)                                 # (Rout_pad, Cout)
    return jnp.maximum(acc + b_ref[stage:stage + 1, 0:cout], 0.0)


def _fused_forward_kernel(img_ref, task_ref, g1_ref, p_ref, g2_ref, g3_ref,
                          wc_ref, wh_ref, b_ref, out_ref, *, batch, n_act, spatial):
    x = img_ref[...]                                           # (Rin_pad, 8)

    # stage 1: static0 | target_pre0 | agent_pre0 (block-diag channels) + ReLU
    y1 = _conv_stage(x, g1_ref, wc_ref, b_ref, 0)              # (B*64, 24)

    # fused MaxPool2d(2,2): one stacked gather matmul + 3 VPU maxes
    ps = _DOT(p_ref[...], y1)                                  # (4*Q, 24)
    q = ps.shape[0] // 4
    pooled = jnp.maximum(jnp.maximum(ps[0:q], ps[q:2 * q]),
                         jnp.maximum(ps[2 * q:3 * q], ps[3 * q:4 * q]))   # (Q, 24)

    # stage 2: static1 | target_pre1 | agent_pre1
    y2 = _conv_stage(pooled, g2_ref, wc_ref, b_ref, 1)         # (pad(B*9), 48)
    # stage 3: target_post (on [static|target]) | agent_pre2; rows are s-major,
    # 8 rows per spatial position (only the first `batch` rows of each block valid)
    y3 = _conv_stage(y2, g3_ref, wc_ref, b_ref, 2)             # (S*8, 64)

    # heads layer 0: merged [actor0 | critic0]; the torch NCHW .view(B,-1)
    # flatten is folded into the s-major row order of the head weight slab.
    mm = task_ref.shape[-1]
    w0t_start = spatial * 64
    h = _DOT_HI(task_ref[...], wh_ref[w0t_start:w0t_start + mm, :])        # (B, 128)
    for s in range(spatial):
        h = h + _DOT_HI(y3[s * _SPAD:s * _SPAD + batch, :],
                        wh_ref[s * 64:(s + 1) * 64, :])
    h = jnp.tanh(h + b_ref[3:4, :])                                        # (B, 128)

    # heads layer 1: block-diag [actor1 | critic1], then masked log_softmax
    r1 = w0t_start + mm
    o = _DOT_HI(h, wh_ref[r1:r1 + 128, 0:n_act + 1]) + b_ref[4:5, 0:n_act + 1]
    col = jax.lax.broadcasted_iota(jnp.int32, o.shape, 1)
    is_logit = col < n_act
    m = jnp.max(jnp.where(is_logit, o, -1e30), axis=-1, keepdims=True)
    e = jnp.exp(jnp.where(is_logit, o - m, -1e30))
    lse = jnp.log(jnp.sum(e, axis=-1, keepdims=True))
    out_ref[...] = o - jnp.where(is_logit, m + lse, 0.0)


def forward(prep, image, task_descriptor):
    """image: (B, H, W, 7) NHWC float32. Returns (log_probs (B,A), value (B,))."""
    B, H, W, C = image.shape
    x2d = image.reshape(B * H * W, C).astype(jnp.float32)
    x2d = jnp.pad(x2d, ((0, prep["rin_pad"] - B * H * W), (0, 8 - C)))
    n_act = prep["num_actions"]
    kernel = functools.partial(_fused_forward_kernel, batch=B, n_act=n_act,
                               spatial=prep["spatial"])
    out = pl.pallas_call(
        kernel,
        out_shape=jax.ShapeDtypeStruct((B, n_act + 1), jnp.float32),
        in_specs=[_VMEM] * 9,
        out_specs=_VMEM,
    )(x2d, task_descriptor, prep["g1"], prep["p"], prep["g2"], prep["g3"],
      prep["wc"], prep["wh"], prep["b"])
    return out[:, :n_act], out[:, n_act]


# ----------------------------------------------------------------------------
# One-time preparation: merged gather matrices + merged / pre-transposed weights
# ----------------------------------------------------------------------------

def _conv_gather_cat(B, IH, IW, in_stride, in_pad, out_row, out_pad, k=2):
    """Horizontal concat over the k*k offsets of 0/1 row-selector matrices."""
    OH, OW = IH - k + 1, IW - k + 1
    m = np.zeros((out_pad, k * k * in_pad), np.float32)
    for kh in range(k):
        for kw in range(k):
            off = (kh * k + kw) * in_pad
            for b in range(B):
                for oh in range(OH):
                    for ow in range(OW):
                        m[out_row(b, oh, ow),
                          off + b * in_stride + (oh + kh) * IW + (ow + kw)] = 1.0
    return jnp.asarray(m)


def _pool_gather_stack(B, IH, IW, in_stride, in_pad, rows_pad):
    """Vertical stack of the 4 corner selectors of each 2x2 max-pool window."""
    PH, PW = IH // 2, IW // 2
    m = np.zeros((4 * rows_pad, in_pad), np.float32)
    for dh in range(2):
        for dw in range(2):
            base = (dh * 2 + dw) * rows_pad
            for b in range(B):
                for ph in range(PH):
                    for pw in range(PW):
                        m[base + b * PH * PW + ph * PW + pw,
                          b * in_stride + (2 * ph + dh) * IW + (2 * pw + dw)] = 1.0
    return jnp.asarray(m)


def _offset_blocks(w):
    """torch (Cout, Cin, k, k) -> list over (kh, kw) of (Cin, Cout) numpy blocks."""
    w = np.asarray(w)
    k = w.shape[2]
    return [w[:, :, kh, kw].T for kh in range(k) for kw in range(k)]


def _block_diag(blocks):
    cin = sum(b.shape[0] for b in blocks)
    cout = sum(b.shape[1] for b in blocks)
    out = np.zeros((cin, cout), np.float32)
    r = c = 0
    for b in blocks:
        out[r:r + b.shape[0], c:c + b.shape[1]] = b
        r += b.shape[0]
        c += b.shape[1]
    return out


def prepare_inference(params, B, H, W, num_actions):
    """Precompute (once) everything the fused kernel needs."""
    H1, W1 = H - 1, W - 1          # after first 2x2 conv
    Hp, Wp = H1 // 2, W1 // 2      # after MaxPool2d(2,2)
    H2, W2 = Hp - 1, Wp - 1        # after second 2x2 conv
    H3, W3 = H2 - 1, W2 - 1        # after third 2x2 conv
    S = H3 * W3                    # spatial positions of final feature map

    rin_pad = _round8(B * H * W)
    r1_pad = _round8(B * H1 * W1)
    rp_pad = _round8(B * Hp * Wp)
    r2_pad = _round8(B * H2 * W2)
    r3_pad = S * _SPAD             # stage-3 rows, s-major, 8 rows per spatial pos

    prep = {"num_actions": int(num_actions), "spatial": int(S), "rin_pad": int(rin_pad)}

    prep["g1"] = _conv_gather_cat(
        B, H, W, H * W, rin_pad,
        lambda b, oh, ow: b * H1 * W1 + oh * W1 + ow, r1_pad)
    prep["p"] = _pool_gather_stack(B, H1, W1, H1 * W1, r1_pad, rp_pad)
    prep["g2"] = _conv_gather_cat(
        B, Hp, Wp, Hp * Wp, rp_pad,
        lambda b, oh, ow: b * H2 * W2 + oh * W2 + ow, r2_pad)
    prep["g3"] = _conv_gather_cat(
        B, H2, W2, H2 * W2, r2_pad,
        lambda b, oh, ow: (oh * W3 + ow) * _SPAD + b, r3_pad)

    # merged conv-weight slab: rows 0:8 / 8:32 / 32:80 = stage 1/2/3; each of
    # the 4 kernel offsets owns lanes [i*128, i*128+Cout) (block-diag channels).
    wc = np.zeros((_WROW[3], 4 * _LANE), np.float32)
    st1 = [_offset_blocks(params[k]) for k in ("static0_w", "tpre0_w", "apre0_w")]
    st2 = [_offset_blocks(params[k]) for k in ("static1_w", "tpre1_w", "apre1_w")]
    st3 = [_offset_blocks(params[k]) for k in ("tpost0_w", "apre2_w")]
    for i in range(4):
        b1 = _block_diag([blk[i] for blk in st1])   # (7, 24)
        b2 = _block_diag([blk[i] for blk in st2])   # (24, 48)
        b3 = _block_diag([blk[i] for blk in st3])   # (48, 64)
        wc[_WROW[0]:_WROW[0] + b1.shape[0], i * _LANE:i * _LANE + b1.shape[1]] = b1
        wc[_WROW[1]:_WROW[1] + b2.shape[0], i * _LANE:i * _LANE + b2.shape[1]] = b2
        wc[_WROW[2]:_WROW[2] + b3.shape[0], i * _LANE:i * _LANE + b3.shape[1]] = b3
    prep["wc"] = jnp.asarray(wc)

    # merged head-weight slab:
    #   rows [s*64:(s+1)*64]     : [actor0|critic0] weights for spatial pos s
    #                              (torch flatten index c*S+s re-ordered to s*64+c)
    #   rows [S*64 : S*64+mm]    : task-descriptor part of [actor0|critic0]
    #   rows [S*64+mm : +128]    : block-diag [actor1 | critic1]
    A = int(num_actions)
    feat = 64 * S
    w0_all = np.concatenate([np.asarray(params["actor0_w"]).T,
                             np.asarray(params["critic0_w"]).T], axis=1)   # (feat+mm, 128)
    mm = w0_all.shape[0] - feat
    wh = np.zeros((feat + mm + 128, 128), np.float32)
    for s in range(S):
        wh[s * 64:(s + 1) * 64, :] = w0_all[s:feat:S, :]
    wh[feat:feat + mm, :] = w0_all[feat:, :]
    wh[feat + mm:feat + mm + 64, 0:A] = np.asarray(params["actor1_w"]).T
    wh[feat + mm + 64:feat + mm + 128, A:A + 1] = np.asarray(params["critic1_w"]).T
    prep["wh"] = jnp.asarray(wh)

    # merged biases: row 0/1/2 = conv stages, row 3 = [actor0_b|critic0_b],
    # row 4 = [actor1_b|critic1_b]
    bias = np.zeros((5, 128), np.float32)
    bias[0, :24] = np.concatenate([np.asarray(params["static0_b"]),
                                   np.asarray(params["tpre0_b"]),
                                   np.asarray(params["apre0_b"])])
    bias[1, :48] = np.concatenate([np.asarray(params["static1_b"]),
                                   np.asarray(params["tpre1_b"]),
                                   np.asarray(params["apre1_b"])])
    bias[2, :64] = np.concatenate([np.asarray(params["tpost0_b"]),
                                   np.asarray(params["apre2_b"])])
    bias[3, :128] = np.concatenate([np.asarray(params["actor0_b"]),
                                    np.asarray(params["critic0_b"])])
    bias[4, :A + 1] = np.concatenate([np.asarray(params["actor1_b"]),
                                      np.asarray(params["critic1_b"])])
    prep["b"] = jnp.asarray(bias)
    return prep


# ----------------------------------------------------------------------------
# Parameter init (matches torch defaults + init_params())
# ----------------------------------------------------------------------------

def init_conv_params(key, c_out, c_in, k):
    kw, kb = jax.random.split(key)
    bound = 1.0 / np.sqrt(c_in * k * k)
    w = jax.random.uniform(kw, (c_out, c_in, k, k), jnp.float32, -bound, bound)
    b = jax.random.uniform(kb, (c_out,), jnp.float32, -bound, bound)
    return w, b


def init_linear_params(key, n_in, n_out):
    # mimics init_params(): normal(0,1), row L2-normalize, bias = 0
    w = jax.random.normal(key, (n_out, n_in), jnp.float32)
    w = w / jnp.sqrt(jnp.sum(w * w, axis=1, keepdims=True))
    b = jnp.zeros((n_out,), jnp.float32)
    return w, b


def build_params(key, feature_size, sum_max_modules, num_actions):
    keys = jax.random.split(key, 12)
    p = {}
    p["static0_w"], p["static0_b"] = init_conv_params(keys[0], 8, 5, 2)
    p["static1_w"], p["static1_b"] = init_conv_params(keys[1], 16, 8, 2)
    p["tpre0_w"], p["tpre0_b"] = init_conv_params(keys[2], 8, 1, 2)
    p["tpre1_w"], p["tpre1_b"] = init_conv_params(keys[3], 16, 8, 2)
    p["tpost0_w"], p["tpost0_b"] = init_conv_params(keys[4], 32, 32, 2)
    p["apre0_w"], p["apre0_b"] = init_conv_params(keys[5], 8, 1, 2)
    p["apre1_w"], p["apre1_b"] = init_conv_params(keys[6], 16, 8, 2)
    p["apre2_w"], p["apre2_b"] = init_conv_params(keys[7], 32, 16, 2)
    n_in = feature_size + sum_max_modules
    p["actor0_w"], p["actor0_b"] = init_linear_params(keys[8], n_in, 64)
    p["actor1_w"], p["actor1_b"] = init_linear_params(keys[9], 64, num_actions)
    p["critic0_w"], p["critic0_b"] = init_linear_params(keys[10], n_in, 64)
    p["critic1_w"], p["critic1_b"] = init_linear_params(keys[11], 64, 1)
    return p


# ----------------------------------------------------------------------------
# Plain-XLA reference (validation only)
# ----------------------------------------------------------------------------

def reference_forward(params, image, task_descriptor):
    def conv_relu(x, w, b):
        y = jax.lax.conv_general_dilated(
            x, w, window_strides=(1, 1), padding="VALID",
            dimension_numbers=("NHWC", "OIHW", "NHWC"))
        return jnp.maximum(y + b.reshape(1, 1, 1, -1), 0.0)

    def maxpool(x):
        return jax.lax.reduce_window(x, -jnp.inf, jax.lax.max,
                                     (1, 2, 2, 1), (1, 2, 2, 1), "VALID")

    xs, xt, xa = image[..., 0:5], image[..., 5:6], image[..., 6:]
    s = conv_relu(xs, params["static0_w"], params["static0_b"])
    s = maxpool(s)
    s = conv_relu(s, params["static1_w"], params["static1_b"])
    t = conv_relu(xt, params["tpre0_w"], params["tpre0_b"])
    t = maxpool(t)
    t = conv_relu(t, params["tpre1_w"], params["tpre1_b"])
    t = jnp.concatenate([s, t], axis=-1)
    t = conv_relu(t, params["tpost0_w"], params["tpost0_b"])
    a = conv_relu(xa, params["apre0_w"], params["apre0_b"])
    a = maxpool(a)
    a = conv_relu(a, params["apre1_w"], params["apre1_b"])
    a = conv_relu(a, params["apre2_w"], params["apre2_b"])
    feat = jnp.concatenate([t, a], axis=-1)
    B = feat.shape[0]
    feat = jnp.transpose(feat, (0, 3, 1, 2)).reshape(B, -1)  # torch .view(B,-1) on NCHW
    x = jnp.concatenate([feat, task_descriptor], axis=-1)
    ha = jnp.tanh(x @ params["actor0_w"].T + params["actor0_b"])
    logits = ha @ params["actor1_w"].T + params["actor1_b"]
    logp = jax.nn.log_softmax(logits, axis=-1)
    hc = jnp.tanh(x @ params["critic0_w"].T + params["critic0_b"])
    value = (hc @ params["critic1_w"].T + params["critic1_b"])[:, 0]
    return logp, value


# ----------------------------------------------------------------------------
# Main
# ----------------------------------------------------------------------------

if __name__ == "__main__":
    key = jax.random.PRNGKey(0)

    B, H, W, C = 2, 9, 9, 7
    num_actions = 6
    max_modules = [4, 4, 4, 4]
    sum_mm = sum(max_modules)
    static_object_dict = {0: 1}
    target_object_dict = {0: 2}
    agent_dyn_dict = {0: 0}
    task_id = 0

    h3 = ((H - 1) // 2 - 1) - 1
    w3 = ((W - 1) // 2 - 1) - 1
    feature_size = 64 * h3 * w3   # 256 for H=W=9

    k_img, k_par = jax.random.split(key)
    image = jax.random.uniform(k_img, (B, H, W, C), jnp.float32)  # obs.image, NHWC

    params = build_params(k_par, feature_size, sum_mm, num_actions)
    prep = prepare_inference(params, B, H, W, num_actions)

    # task descriptor one-hot blocks, same as the torch fc() construction
    td = np.zeros((B, sum_mm), dtype=np.float32)
    td[:, static_object_dict[task_id]] = 1.0
    td[:, sum(max_modules[:1]) + target_object_dict[task_id]] = 1.0
    td[:, sum(max_modules[:2]) + agent_dyn_dict[task_id]] = 1.0
    task_descriptor = jnp.asarray(td)

    log_probs, value = forward(prep, image, task_descriptor)
    jax.block_until_ready((log_probs, value))

    assert log_probs.shape == (B, num_actions)
    assert value.shape == (B,)
    # log_softmax rows should sum (in prob space) to ~1
    assert np.allclose(np.exp(np.asarray(log_probs)).sum(axis=1), 1.0, atol=1e-4)

    # cross-check against a plain-XLA implementation of the same forward
    with jax.default_matmul_precision("highest"):
        ref_logp, ref_value = reference_forward(params, image, task_descriptor)
    ref_logp, ref_value = jax.block_until_ready((ref_logp, ref_value))
    assert np.allclose(np.asarray(log_probs), np.asarray(ref_logp), atol=3e-2, rtol=3e-2)
    assert np.allclose(np.asarray(value), np.asarray(ref_value), atol=3e-2, rtol=3e-2)

    # TODO(synk): the use_kb=False (ActiveConv2d/ActiveLinear lateral) branch is not
    # implemented; the module's default forward path (use_kb=True) is what is fused here.
    print("KERNEL_OK")
</pallas_src>

<mosaic_0001>
module attributes {stable_mosaic.version = 11 : i64} {
  func.func @_fused_forward_kernel(%arg0: memref<168x8xf32, #tpu.memory_space<vmem>>, %arg1: memref<2x16xf32, #tpu.memory_space<vmem>>, %arg2: memref<128x672xf32, #tpu.memory_space<vmem>>, %arg3: memref<128x128xf32, #tpu.memory_space<vmem>>, %arg4: memref<24x128xf32, #tpu.memory_space<vmem>>, %arg5: memref<32x96xf32, #tpu.memory_space<vmem>>, %arg6: memref<80x512xf32, #tpu.memory_space<vmem>>, %arg7: memref<400x128xf32, #tpu.memory_space<vmem>>, %arg8: memref<5x128xf32, #tpu.memory_space<vmem>>, %arg9: memref<2x7xf32, #tpu.memory_space<vmem>>) attributes {dimension_semantics = [], scalar_prefetch = 0 : i64, scratch_operands = 0 : i64, tpu.core_type = #tpu.core_type<tc>} {
    %c0 = arith.constant 0 : index
    %c0_0 = arith.constant 0 : index
    %0 = vector.load %arg0[%c0, %c0_0] : memref<168x8xf32, #tpu.memory_space<vmem>>, vector<168x8xf32>
    %c0_1 = arith.constant 0 : index
    %c0_2 = arith.constant 0 : index
    %1 = vector.load %arg6[%c0_1, %c0_2] : memref<80x512xf32, #tpu.memory_space<vmem>>, vector<8x512xf32>
    %cst = arith.constant dense<0.000000e+00> : vector<168x512xf32>
    %2 = tpu.matmul %0, %1, %cst {dimension_numbers = #tpu.dot_dimension_numbers<[1], [0], [0], [1], [0, 0, 1, 1], [], []>} : vector<168x8xf32>, vector<8x512xf32>, vector<168x512xf32> -> vector<168x512xf32>
    %3 = vector.extract_strided_slice %2 {offsets = [0, 0], sizes = [168, 24], strides = [1, 1]} : vector<168x512xf32> to vector<168x24xf32>
    %4 = vector.extract_strided_slice %2 {offsets = [0, 128], sizes = [168, 24], strides = [1, 1]} : vector<168x512xf32> to vector<168x24xf32>
    %5 = vector.extract_strided_slice %2 {offsets = [0, 256], sizes = [168, 24], strides = [1, 1]} : vector<168x512xf32> to vector<168x24xf32>
    %6 = vector.extract_strided_slice %2 {offsets = [0, 384], sizes = [168, 24], strides = [1, 1]} : vector<168x512xf32> to vector<168x24xf32>
    %7 = tpu.concatenate %3, %4, %5, %6 in 0 : vector<168x24xf32>, vector<168x24xf32>, vector<168x24xf32>, vector<168x24xf32> -> vector<672x24xf32>
    %c0_3 = arith.constant 0 : index
    %c0_4 = arith.constant 0 : index
    %8 = vector.load %arg2[%c0_3, %c0_4] : memref<128x672xf32, #tpu.memory_space<vmem>>, vector<128x672xf32>
    %cst_5 = arith.constant dense<0.000000e+00> : vector<128x24xf32>
    %9 = tpu.matmul %8, %7, %cst_5 {dimension_numbers = #tpu.dot_dimension_numbers<[1], [0], [0], [1], [0, 0, 1, 1], [], []>} : vector<128x672xf32>, vector<672x24xf32>, vector<128x24xf32> -> vector<128x24xf32>
    %c0_6 = arith.constant 0 : index
    %c0_7 = arith.constant 0 : index
    %10 = vector.load %arg8[%c0_6, %c0_7] : memref<5x128xf32, #tpu.memory_space<vmem>>, vector<1x24xf32>
    %11 = vector.broadcast %10 : vector<1x24xf32> to vector<128x24xf32>
    %12 = arith.addf %9, %11 : vector<128x24xf32>
    %cst_8 = arith.constant 0.000000e+00 : f32
    %13 = vector.broadcast %cst_8 : f32 to vector<128x24xf32>
    %14 = arith.maximumf %12, %13 : vector<128x24xf32>
    %c0_9 = arith.constant 0 : index
    %c0_10 = arith.constant 0 : index
    %15 = vector.load %arg3[%c0_9, %c0_10] : memref<128x128xf32, #tpu.memory_space<vmem>>, vector<128x128xf32>
    %cst_11 = arith.constant dense<0.000000e+00> : vector<128x24xf32>
    %16 = tpu.matmul %15, %14, %cst_11 {dimension_numbers = #tpu.dot_dimension_numbers<[1], [0], [0], [1], [0, 0, 1, 1], [], []>} : vector<128x128xf32>, vector<128x24xf32>, vector<128x24xf32> -> vector<128x24xf32>
    %17 = vector.extract_strided_slice %16 {offsets = [0, 0], sizes = [32, 24], strides = [1, 1]} : vector<128x24xf32> to vector<32x24xf32>
    %18 = vector.extract_strided_slice %16 {offsets = [32, 0], sizes = [32, 24], strides = [1, 1]} : vector<128x24xf32> to vector<32x24xf32>
    %19 = arith.maximumf %17, %18 : vector<32x24xf32>
    %20 = vector.extract_strided_slice %16 {offsets = [64, 0], sizes = [32, 24], strides = [1, 1]} : vector<128x24xf32> to vector<32x24xf32>
    %21 = vector.extract_strided_slice %16 {offsets = [96, 0], sizes = [32, 24], strides = [1, 1]} : vector<128x24xf32> to vector<32x24xf32>
    %22 = arith.maximumf %20, %21 : vector<32x24xf32>
    %23 = arith.maximumf %19, %22 : vector<32x24xf32>
    %c8 = arith.constant 8 : index
    %c0_12 = arith.constant 0 : index
    %24 = vector.load %arg6[%c8, %c0_12] : memref<80x512xf32, #tpu.memory_space<vmem>>, vector<24x512xf32>
    %cst_13 = arith.constant dense<0.000000e+00> : vector<32x512xf32>
    %25 = tpu.matmul %23, %24, %cst_13 {dimension_numbers = #tpu.dot_dimension_numbers<[1], [0], [0], [1], [0, 0, 1, 1], [], []>} : vector<32x24xf32>, vector<24x512xf32>, vector<32x512xf32> -> vector<32x512xf32>
    %26 = vector.extract_strided_slice %25 {offsets = [0, 0], sizes = [32, 48], strides = [1, 1]} : vector<32x512xf32> to vector<32x48xf32>
    %27 = vector.extract_strided_slice %25 {offsets = [0, 128], sizes = [32, 48], strides = [1, 1]} : vector<32x512xf32> to vector<32x48xf32>
    %28 = vector.extract_strided_slice %25 {offsets = [0, 256], sizes = [32, 48], strides = [1, 1]} : vector<32x512xf32> to vector<32x48xf32>
    %29 = vector.extract_strided_slice %25 {offsets = [0, 384], sizes = [32, 48], strides = [1, 1]} : vector<32x512xf32> to vector<32x48xf32>
    %30 = tpu.concatenate %26, %27, %28, %29 in 0 : vector<32x48xf32>, vector<32x48xf32>, vector<32x48xf32>, vector<32x48xf32> -> vector<128x48xf32>
    %c0_14 = arith.constant 0 : index
    %c0_15 = arith.constant 0 : index
    %31 = vector.load %arg4[%c0_14, %c0_15] : memref<24x128xf32, #tpu.memory_space<vmem>>, vector<24x128xf32>
    %cst_16 = arith.constant dense<0.000000e+00> : vector<24x48xf32>
    %32 = tpu.matmul %31, %30, %cst_16 {dimension_numbers = #tpu.dot_dimension_numbers<[1], [0], [0], [1], [0, 0, 1, 1], [], []>} : vector<24x128xf32>, vector<128x48xf32>, vector<24x48xf32> -> vector<24x48xf32>
    %c1 = arith.constant 1 : index
    %c0_17 = arith.constant 0 : index
    %33 = vector.load %arg8[%c1, %c0_17] : memref<5x128xf32, #tpu.memory_space<vmem>>, vector<1x48xf32>
    %34 = vector.broadcast %33 : vector<1x48xf32> to vector<24x48xf32>
    %35 = arith.addf %32, %34 : vector<24x48xf32>
    %cst_18 = arith.constant 0.000000e+00 : f32
    %36 = vector.broadcast %cst_18 : f32 to vector<24x48xf32>
    %37 = arith.maximumf %35, %36 : vector<24x48xf32>
    %c32 = arith.constant 32 : index
    %c0_19 = arith.constant 0 : index
    %38 = vector.load %arg6[%c32, %c0_19] : memref<80x512xf32, #tpu.memory_space<vmem>>, vector<48x512xf32>
    %cst_20 = arith.constant dense<0.000000e+00> : vector<24x512xf32>
    %39 = tpu.matmul %37, %38, %cst_20 {dimension_numbers = #tpu.dot_dimension_numbers<[1], [0], [0], [1], [0, 0, 1, 1], [], []>} : vector<24x48xf32>, vector<48x512xf32>, vector<24x512xf32> -> vector<24x512xf32>
    %40 = vector.extract_strided_slice %39 {offsets = [0, 0], sizes = [24, 64], strides = [1, 1]} : vector<24x512xf32> to vector<24x64xf32>
    %41 = vector.extract_strided_slice %39 {offsets = [0, 128], sizes = [24, 64], strides = [1, 1]} : vector<24x512xf32> to vector<24x64xf32>
    %42 = vector.extract_strided_slice %39 {offsets = [0, 256], sizes = [24, 64], strides = [1, 1]} : vector<24x512xf32> to vector<24x64xf32>
    %43 = vector.extract_strided_slice %39 {offsets = [0, 384], sizes = [24, 64], strides = [1, 1]} : vector<24x512xf32> to vector<24x64xf32>
    %44 = tpu.concatenate %40, %41, %42, %43 in 0 : vector<24x64xf32>, vector<24x64xf32>, vector<24x64xf32>, vector<24x64xf32> -> vector<96x64xf32>
    %c0_21 = arith.constant 0 : index
    %c0_22 = arith.constant 0 : index
    %45 = vector.load %arg5[%c0_21, %c0_22] : memref<32x96xf32, #tpu.memory_space<vmem>>, vector<32x96xf32>
    %cst_23 = arith.constant dense<0.000000e+00> : vector<32x64xf32>
    %46 = tpu.matmul %45, %44, %cst_23 {dimension_numbers = #tpu.dot_dimension_numbers<[1], [0], [0], [1], [0, 0, 1, 1], [], []>} : vector<32x96xf32>, vector<96x64xf32>, vector<32x64xf32> -> vector<32x64xf32>
    %c2 = arith.constant 2 : index
    %c0_24 = arith.constant 0 : index
    %47 = vector.load %arg8[%c2, %c0_24] : memref<5x128xf32, #tpu.memory_space<vmem>>, vector<1x64xf32>
    %48 = vector.broadcast %47 : vector<1x64xf32> to vector<32x64xf32>
    %49 = arith.addf %46, %48 : vector<32x64xf32>
    %cst_25 = arith.constant 0.000000e+00 : f32
    %50 = vector.broadcast %cst_25 : f32 to vector<32x64xf32>
    %51 = arith.maximumf %49, %50 : vector<32x64xf32>
    %c0_26 = arith.constant 0 : index
    %c0_27 = arith.constant 0 : index
    %52 = vector.load %arg1[%c0_26, %c0_27] : memref<2x16xf32, #tpu.memory_space<vmem>>, vector<2x16xf32>
    %c256 = arith.constant 256 : index
    %c0_28 = arith.constant 0 : index
    %53 = vector.load %arg7[%c256, %c0_28] : memref<400x128xf32, #tpu.memory_space<vmem>>, vector<16x128xf32>
    %cst_29 = arith.constant dense<0.000000e+00> : vector<2x128xf32>
    %54 = tpu.matmul %52, %53, %cst_29 {dimension_numbers = #tpu.dot_dimension_numbers<[1], [0], [0], [1], [0, 0, 1, 1], [], []>, precision = #tpu.contract_precision<fp32>} : vector<2x16xf32>, vector<16x128xf32>, vector<2x128xf32> -> vector<2x128xf32>
    %55 = vector.extract_strided_slice %51 {offsets = [0, 0], sizes = [2, 64], strides = [1, 1]} : vector<32x64xf32> to vector<2x64xf32>
    %c0_30 = arith.constant 0 : index
    %c0_31 = arith.constant 0 : index
    %56 = vector.load %arg7[%c0_30, %c0_31] : memref<400x128xf32, #tpu.memory_space<vmem>>, vector<64x128xf32>
    %cst_32 = arith.constant dense<0.000000e+00> : vector<2x128xf32>
    %57 = tpu.matmul %55, %56, %cst_32 {dimension_numbers = #tpu.dot_dimension_numbers<[1], [0], [0], [1], [0, 0, 1, 1], [], []>, precision = #tpu.contract_precision<fp32>} : vector<2x64xf32>, vector<64x128xf32>, vector<2x128xf32> -> vector<2x128xf32>
    %58 = arith.addf %54, %57 : vector<2x128xf32>
    %59 = vector.extract_strided_slice %51 {offsets = [8, 0], sizes = [2, 64], strides = [1, 1]} : vector<32x64xf32> to vector<2x64xf32>
    %c64 = arith.constant 64 : index
    %c0_33 = arith.constant 0 : index
    %60 = vector.load %arg7[%c64, %c0_33] : memref<400x128xf32, #tpu.memory_space<vmem>>, vector<64x128xf32>
    %cst_34 = arith.constant dense<0.000000e+00> : vector<2x128xf32>
    %61 = tpu.matmul %59, %60, %cst_34 {dimension_numbers = #tpu.dot_dimension_numbers<[1], [0], [0], [1], [0, 0, 1, 1], [], []>, precision = #tpu.contract_precision<fp32>} : vector<2x64xf32>, vector<64x128xf32>, vector<2x128xf32> -> vector<2x128xf32>
    %62 = arith.addf %58, %61 : vector<2x128xf32>
    %63 = vector.extract_strided_slice %51 {offsets = [16, 0], sizes = [2, 64], strides = [1, 1]} : vector<32x64xf32> to vector<2x64xf32>
    %c128 = arith.constant 128 : index
    %c0_35 = arith.constant 0 : index
    %64 = vector.load %arg7[%c128, %c0_35] : memref<400x128xf32, #tpu.memory_space<vmem>>, vector<64x128xf32>
    %cst_36 = arith.constant dense<0.000000e+00> : vector<2x128xf32>
    %65 = tpu.matmul %63, %64, %cst_36 {dimension_numbers = #tpu.dot_dimension_numbers<[1], [0], [0], [1], [0, 0, 1, 1], [], []>, precision = #tpu.contract_precision<fp32>} : vector<2x64xf32>, vector<64x128xf32>, vector<2x128xf32> -> vector<2x128xf32>
    %66 = arith.addf %62, %65 : vector<2x128xf32>
    %67 = vector.extract_strided_slice %51 {offsets = [24, 0], sizes = [2, 64], strides = [1, 1]} : vector<32x64xf32> to vector<2x64xf32>
    %c192 = arith.constant 192 : index
    %c0_37 = arith.constant 0 : index
    %68 = vector.load %arg7[%c192, %c0_37] : memref<400x128xf32, #tpu.memory_space<vmem>>, vector<64x128xf32>
    %cst_38 = arith.constant dense<0.000000e+00> : vector<2x128xf32>
    %69 = tpu.matmul %67, %68, %cst_38 {dimension_numbers = #tpu.dot_dimension_numbers<[1], [0], [0], [1], [0, 0, 1, 1], [], []>, precision = #tpu.contract_precision<fp32>} : vector<2x64xf32>, vector<64x128xf32>, vector<2x128xf32> -> vector<2x128xf32>
    %70 = arith.addf %66, %69 : vector<2x128xf32>
    %c3 = arith.constant 3 : index
    %c0_39 = arith.constant 0 : index
    %71 = vector.load %arg8[%c3, %c0_39] : memref<5x128xf32, #tpu.memory_space<vmem>>, vector<1x128xf32>
    %72 = vector.broadcast %71 : vector<1x128xf32> to vector<2x128xf32>
    %73 = arith.addf %70, %72 : vector<2x128xf32>
    %74 = math.tanh %73 : vector<2x128xf32>
    %c272 = arith.constant 272 : index
    %c0_40 = arith.constant 0 : index
    %75 = vector.load %arg7[%c272, %c0_40] : memref<400x128xf32, #tpu.memory_space<vmem>>, vector<128x7xf32>
    %cst_41 = arith.constant dense<0.000000e+00> : vector<2x7xf32>
    %76 = tpu.matmul %74, %75, %cst_41 {dimension_numbers = #tpu.dot_dimension_numbers<[1], [0], [0], [1], [0, 0, 1, 1], [], []>, precision = #tpu.contract_precision<fp32>} : vector<2x128xf32>, vector<128x7xf32>, vector<2x7xf32> -> vector<2x7xf32>
    %c4 = arith.constant 4 : index
    %c0_42 = arith.constant 0 : index
    %77 = vector.load %arg8[%c4, %c0_42] : memref<5x128xf32, #tpu.memory_space<vmem>>, vector<1x7xf32>
    %78 = vector.broadcast %77 : vector<1x7xf32> to vector<2x7xf32>
    %79 = arith.addf %76, %78 : vector<2x7xf32>
    %80 = tpu.iota {dimensions = array<i32: 1>} : vector<2x7xi32>
    %c6_i32 = arith.constant 6 : i32
    %81 = vector.broadcast %c6_i32 : i32 to vector<2x7xi32>
    %82 = arith.cmpi slt, %80, %81 : vector<2x7xi32>
    %cst_43 = arith.constant -1.000000e+30 : f32
    %83 = vector.broadcast %cst_43 : f32 to vector<2x7xf32>
    %84 = arith.select %82, %79, %83 : vector<2x7xi1>, vector<2x7xf32>
    %cst_44 = arith.constant dense<0xFF800000> : vector<2xf32>
    %85 = vector.multi_reduction <maximumf>, %84, %cst_44 [1] : vector<2x7xf32> to vector<2xf32>
    %86 = vector.shape_cast %85 : vector<2xf32> to vector<2x1xf32>
    %87 = vector.broadcast %86 : vector<2x1xf32> to vector<2x7xf32>
    %88 = arith.subf %79, %87 : vector<2x7xf32>
    %cst_45 = arith.constant -1.000000e+30 : f32
    %89 = vector.broadcast %cst_45 : f32 to vector<2x7xf32>
    %90 = arith.select %82, %88, %89 : vector<2x7xi1>, vector<2x7xf32>
    %91 = math.exp %90 : vector<2x7xf32>
    %cst_46 = arith.constant dense<0.000000e+00> : vector<2xf32>
    %92 = vector.multi_reduction <add>, %91, %cst_46 [1] : vector<2x7xf32> to vector<2xf32>
    %93 = vector.shape_cast %92 : vector<2xf32> to vector<2x1xf32>
    %94 = math.log %93 : vector<2x1xf32>
    %95 = arith.addf %86, %94 : vector<2x1xf32>
    %cst_47 = arith.constant 0.000000e+00 : f32
    %96 = vector.shape_cast %95 : vector<2x1xf32> to vector<2x1xf32>
    %97 = vector.broadcast %96 : vector<2x1xf32> to vector<2x7xf32>
    %98 = vector.broadcast %cst_47 : f32 to vector<2x7xf32>
    %99 = arith.select %82, %97, %98 : vector<2x7xi1>, vector<2x7xf32>
    %100 = arith.subf %79, %99 : vector<2x7xf32>
    %c0_48 = arith.constant 0 : index
    %c0_49 = arith.constant 0 : index
    %101 = vector.load %arg9[%c0_48, %c0_49] : memref<2x7xf32, #tpu.memory_space<vmem>>, vector<2x7xf32>
    tpu.vector_store %arg9[%c0_48, %c0_49], %100 {strides = array<i32>} : memref<2x7xf32, #tpu.memory_space<vmem>>, vector<2x7xf32>,
    return
  }
}

</mosaic_0001>

<llo_original>
// kernel: tpu_custom_call.1
$region0: #{tpu_custom_call.1}
  #allocation0 [shape = 'u32[]', space=smem, size = 0x4, offset = 0x4, fixed_abs, tag = 'smem constant byte address 0x4 - core index']
  #allocation1 [shape = 'u32[72,128]{1,0:T(1,128)}', space=vmem, size = 0x9000, scoped, tag = 'internal scratch']
  %s0 = inlined_call_operand.vmem [shape: f32[168,8], index: 0, kind: input, shape index: {}]
  %s1 = inlined_call_operand.vmem [shape: f32[2,16], index: 1, kind: input, shape index: {}]
  %s2 = inlined_call_operand.vmem [shape: f32[128,672], index: 2, kind: input, shape index: {}]
  %s3 = inlined_call_operand.vmem [shape: f32[128,128], index: 3, kind: input, shape index: {}]
  %s4 = inlined_call_operand.vmem [shape: f32[24,128], index: 4, kind: input, shape index: {}]
  %s5 = inlined_call_operand.vmem [shape: f32[32,96], index: 5, kind: input, shape index: {}]
  %s6 = inlined_call_operand.vmem [shape: f32[80,512], index: 6, kind: input, shape index: {}]
  %s7 = inlined_call_operand.vmem [shape: f32[400,128], index: 7, kind: input, shape index: {}]
  %s8 = inlined_call_operand.vmem [shape: f32[5,128], index: 8, kind: input, shape index: {}]
  %s9 = inlined_call_operand.hbm [shape: f32[2,7], index: 9, kind: output, shape index: {}]
  %s10 = sld [smem:[#allocation0]]
  $region46: #{tpu_custom_call.1} parent=0
    _
  %s12 = ssub.s32 1, %s10
  %s13 = scalar_select 0, %s12, %s10
  $region1: #{tpu_custom_call.1} parent=0
    #allocation2 [shape = 'u8[1024]{0}', space=vmem, size = 0x400, scoped, tag = 'output window, operand 0, single buffered']
    #allocation3 [shape = 's32[1]{0}', space=sflag, size = 0x4, scoped, tag = 'scoped memory for tpu_custom_call.1']
    %14 = vsyncpa [#allocation3], 0
    // Predicated region
    $region2: #{tpu_custom_call.1} parent=1 // pred_check
      _
    $region3: #{tpu_custom_call.1} parent=1 // pred_check_branch
      %16 = sbr.rel (0) target = $region5
    $region4: #{tpu_custom_call.1} parent=1 // pred_region
      _
    $region5: #{tpu_custom_call.1} parent=1 // pred_fallthru
      _
    // Predicated region
    $region6: #{tpu_custom_call.1} parent=1 // pred_check
      _
    $region7: #{tpu_custom_call.1} parent=1 // pred_check_branch
      %18 = sbr.rel (0) target = $region9
    $region8: #{tpu_custom_call.1} parent=1 // pred_region
      _
    $region9: #{tpu_custom_call.1} parent=1 // pred_fallthru
      _
    // Predicated region
    $region10: #{tpu_custom_call.1} parent=1 // pred_check
      _
    $region11: #{tpu_custom_call.1} parent=1 // pred_check_branch
      %20 = sbr.rel (0) target = $region13
    $region12: #{tpu_custom_call.1} parent=1 // pred_region
      _
    $region13: #{tpu_custom_call.1} parent=1 // pred_fallthru
      _
    // Predicated region
    $region14: #{tpu_custom_call.1} parent=1 // pred_check
      _
    $region15: #{tpu_custom_call.1} parent=1 // pred_check_branch
      %22 = sbr.rel (0) target = $region17
    $region16: #{tpu_custom_call.1} parent=1 // pred_region
      _
    $region17: #{tpu_custom_call.1} parent=1 // pred_fallthru
      _
    // Predicated region
    $region18: #{tpu_custom_call.1} parent=1 // pred_check
      _
    $region19: #{tpu_custom_call.1} parent=1 // pred_check_branch
      %24 = sbr.rel (0) target = $region21
    $region20: #{tpu_custom_call.1} parent=1 // pred_region
      _
    $region21: #{tpu_custom_call.1} parent=1 // pred_fallthru
      _
    // Predicated region
    $region22: #{tpu_custom_call.1} parent=1 // pred_check
      _
    $region23: #{tpu_custom_call.1} parent=1 // pred_check_branch
      %26 = sbr.rel (0) target = $region25
    $region24: #{tpu_custom_call.1} parent=1 // pred_region
      _
    $region25: #{tpu_custom_call.1} parent=1 // pred_fallthru
      _
    // Predicated region
    $region26: #{tpu_custom_call.1} parent=1 // pred_check
      _
    $region27: #{tpu_custom_call.1} parent=1 // pred_check_branch
      %28 = sbr.rel (0) target = $region29
    $region28: #{tpu_custom_call.1} parent=1 // pred_region
      _
    $region29: #{tpu_custom_call.1} parent=1 // pred_fallthru
      _
    // Predicated region
    $region30: #{tpu_custom_call.1} parent=1 // pred_check
      _
    $region31: #{tpu_custom_call.1} parent=1 // pred_check_branch
      %30 = sbr.rel (0) target = $region33
    $region32: #{tpu_custom_call.1} parent=1 // pred_region
      _
    $region33: #{tpu_custom_call.1} parent=1 // pred_fallthru
      _
    // Predicated region
    $region34: #{tpu_custom_call.1} parent=1 // pred_check
      _
    $region35: #{tpu_custom_call.1} parent=1 // pred_check_branch
      %32 = sbr.rel (0) target = $region37
    $region36: #{tpu_custom_call.1} parent=1 // pred_region
      _
    $region37: #{tpu_custom_call.1} parent=1 // pred_fallthru
      _
    %v33 = vld [vmem:[%s0] sm:$0xff]
    %v34 = vld [vmem:[%s0 + $0x8] sm:$0xff]
    %v35 = vld [vmem:[%s0 + $0x10] sm:$0xff]
    %v36 = vld [vmem:[%s0 + $0x18] sm:$0xff]
    %v37 = vld [vmem:[%s0 + $0x20] sm:$0xff]
    %v38 = vld [vmem:[%s0 + $0x28] sm:$0xff]
    %v39 = vld [vmem:[%s0 + $0x30] sm:$0xff]
    %v40 = vld [vmem:[%s0 + $0x38] sm:$0xff]
    %v41 = vld [vmem:[%s0 + $0x40] sm:$0xff]
    %v42 = vld [vmem:[%s0 + $0x48] sm:$0xff]
    %v43 = vld [vmem:[%s0 + $0x50] sm:$0xff]
    %v44 = vld [vmem:[%s0 + $0x58] sm:$0xff]
    %v45 = vld [vmem:[%s0 + $0x60] sm:$0xff]
    %v46 = vld [vmem:[%s0 + $0x68] sm:$0xff]
    %v47 = vld [vmem:[%s0 + $0x70] sm:$0xff]
    %v48 = vld [vmem:[%s0 + $0x78] sm:$0xff]
    %v49 = vld [vmem:[%s0 + $0x80] sm:$0xff]
    %v50 = vld [vmem:[%s0 + $0x88] sm:$0xff]
    %v51 = vld [vmem:[%s0 + $0x90] sm:$0xff]
    %v52 = vld [vmem:[%s0 + $0x98] sm:$0xff]
    %v53 = vld [vmem:[%s0 + $0xa0] sm:$0xff]
    %v54 = vld [vmem:[%s6] sm:$0xff]
    %v55 = vld [vmem:[%s6 + $0x8] sm:$0xff]
    %v56 = vld [vmem:[%s6 + $0x10] sm:$0xff]
    %v57 = vld [vmem:[%s6 + $0x18] sm:$0xff]
    %vm58 = vcmask 64512
    %v60 = vsel %vm58, %v33, 0
    %v63 = vsel %vm58, %v34, 0
    %v66 = vsel %vm58, %v35, 0
    %v69 = vsel %vm58, %v36, 0
    %v72 = vsel %vm58, %v37, 0
    %v75 = vsel %vm58, %v38, 0
    %v78 = vsel %vm58, %v39, 0
    %v81 = vsel %vm58, %v40, 0
    %v84 = vsel %vm58, %v41, 0
    %v87 = vsel %vm58, %v42, 0
    %v90 = vsel %vm58, %v43, 0
    %v93 = vsel %vm58, %v44, 0
    %v96 = vsel %vm58, %v45, 0
    %v99 = vsel %vm58, %v46, 0
    %v102 = vsel %vm58, %v47, 0
    %v105 = vsel %vm58, %v48, 0
    %v108 = vsel %vm58, %v49, 0
    %v111 = vsel %vm58, %v50, 0
    %v114 = vsel %vm58, %v51, 0
    %v117 = vsel %vm58, %v52, 0
    %v120 = vsel %vm58, %v53, 0
    %122 = vmatpush.msra.mxu0 0.0
    %123 = vmatpush.msra.mxu0 0.0
    %124 = vmatpush.msra.mxu0 0.0
    %125 = vmatpush.msra.mxu0 0.0
    %126 = vmatpush.msra.mxu0 0.0
    %127 = vmatpush.msra.mxu0 0.0
    %128 = vmatpush.msra.mxu0 0.0
    %129 = vmatpush.msra.mxu0 0.0
    %130 = vmatpush.msra.mxu0 0.0
    %131 = vmatpush.msra.mxu0 0.0
    %132 = vmatpush.msra.mxu0 0.0
    %133 = vmatpush.msra.mxu0 0.0
    %134 = vmatpush.msra.mxu0 0.0
    %135 = vmatpush.msra.mxu0 0.0
    %136 = vmatpush.msra.mxu0 0.0
    %137 = vmatpush.msra.mxu0 %v54
    %138 = vmatmul.f32.gmra.mxu0 %v60
    %v139 = vpop.f32.mrf.mxu0
    %v140 = vadd.f32 0.0, %v139
    %141 = vmatmul.f32.gmra.mxu0 %v63
    %v142 = vpop.f32.mrf.mxu0
    %v143 = vadd.f32 0.0, %v142
    %144 = vmatmul.f32.gmra.mxu0 %v66
    %v145 = vpop.f32.mrf.mxu0
    %v146 = vadd.f32 0.0, %v145
    %147 = vmatmul.f32.gmra.mxu0 %v69
    %v148 = vpop.f32.mrf.mxu0
    %v149 = vadd.f32 0.0, %v148
    %150 = vmatmul.f32.gmra.mxu0 %v72
    %v151 = vpop.f32.mrf.mxu0
    %v152 = vadd.f32 0.0, %v151
    %153 = vmatmul.f32.gmra.mxu0 %v75
    %v154 = vpop.f32.mrf.mxu0
    %v155 = vadd.f32 0.0, %v154
    %156 = vmatmul.f32.gmra.mxu0 %v78
    %v157 = vpop.f32.mrf.mxu0
    %v158 = vadd.f32 0.0, %v157
    %159 = vmatmul.f32.gmra.mxu0 %v81
    %v160 = vpop.f32.mrf.mxu0
    %v161 = vadd.f32 0.0, %v160
    %162 = vmatmul.f32.gmra.mxu0 %v84
    %v163 = vpop.f32.mrf.mxu0
    %v164 = vadd.f32 0.0, %v163
    %165 = vmatmul.f32.gmra.mxu0 %v87
    %v166 = vpop.f32.mrf.mxu0
    %v167 = vadd.f32 0.0, %v166
    %168 = vmatmul.f32.gmra.mxu0 %v90
    %v169 = vpop.f32.mrf.mxu0
    %v170 = vadd.f32 0.0, %v169
    %171 = vmatmul.f32.gmra.mxu0 %v93
    %v172 = vpop.f32.mrf.mxu0
    %v173 = vadd.f32 0.0, %v172
    %174 = vmatmul.f32.gmra.mxu0 %v96
    %v175 = vpop.f32.mrf.mxu0
    %v176 = vadd.f32 0.0, %v175
    %177 = vmatmul.f32.gmra.mxu0 %v99
    %v178 = vpop.f32.mrf.mxu0
    %v179 = vadd.f32 0.0, %v178
    %180 = vmatmul.f32.gmra.mxu0 %v102
    %v181 = vpop.f32.mrf.mxu0
    %v182 = vadd.f32 0.0, %v181
    %183 = vmatmul.f32.gmra.mxu0 %v105
    %v184 = vpop.f32.mrf.mxu0
    %v185 = vadd.f32 0.0, %v184
    %186 = vmatmul.f32.gmra.mxu0 %v108
    %v187 = vpop.f32.mrf.mxu0
    %v188 = vadd.f32 0.0, %v187
    %189 = vmatmul.f32.gmra.mxu0 %v111
    %v190 = vpop.f32.mrf.mxu0
    %v191 = vadd.f32 0.0, %v190
    %192 = vmatmul.f32.gmra.mxu0 %v114
    %v193 = vpop.f32.mrf.mxu0
    %v194 = vadd.f32 0.0, %v193
    %195 = vmatmul.f32.gmra.mxu0 %v117
    %v196 = vpop.f32.mrf.mxu0
    %v197 = vadd.f32 0.0, %v196
    %198 = vmatmul.f32.gmra.mxu0 %v120
    %v199 = vpop.f32.mrf.mxu0
    %v200 = vadd.f32 0.0, %v199
    %201 = vdwg.mxu0
    %202 = vmatpush.msra.mxu0 0.0
    %203 = vmatpush.msra.mxu0 0.0
    %204 = vmatpush.msra.mxu0 0.0
    %205 = vmatpush.msra.mxu0 0.0
    %206 = vmatpush.msra.mxu0 0.0
    %207 = vmatpush.msra.mxu0 0.0
    %208 = vmatpush.msra.mxu0 0.0
    %209 = vmatpush.msra.mxu0 0.0
    %210 = vmatpush.msra.mxu0 0.0
    %211 = vmatpush.msra.mxu0 0.0
    %212 = vmatpush.msra.mxu0 0.0
    %213 = vmatpush.msra.mxu0 0.0
    %214 = vmatpush.msra.mxu0 0.0
    %215 = vmatpush.msra.mxu0 0.0
    %216 = vmatpush.msra.mxu0 0.0
    %217 = vmatpush.msra.mxu0 %v55
    %218 = vmatmul.f32.gmra.mxu0 %v60
    %v219 = vpop.f32.mrf.mxu0
    %v220 = vadd.f32 0.0, %v219
    %221 = vmatmul.f32.gmra.mxu0 %v63
    %v222 = vpop.f32.mrf.mxu0
    %v223 = vadd.f32 0.0, %v222
    %224 = vmatmul.f32.gmra.mxu0 %v66
    %v225 = vpop.f32.mrf.mxu0
    %v226 = vadd.f32 0.0, %v225
    %227 = vmatmul.f32.gmra.mxu0 %v69
    %v228 = vpop.f32.mrf.mxu0
    %v229 = vadd.f32 0.0, %v228
    %230 = vmatmul.f32.gmra.mxu0 %v72
    %v231 = vpop.f32.mrf.mxu0
    %v232 = vadd.f32 0.0, %v231
    %233 = vmatmul.f32.gmra.mxu0 %v75
    %v234 = vpop.f32.mrf.mxu0
    %v235 = vadd.f32 0.0, %v234
    %236 = vmatmul.f32.gmra.mxu0 %v78
    %v237 = vpop.f32.mrf.mxu0
    %v238 = vadd.f32 0.0, %v237
    %239 = vmatmul.f32.gmra.mxu0 %v81
    %v240 = vpop.f32.mrf.mxu0
    %v241 = vadd.f32 0.0, %v240
    %242 = vmatmul.f32.gmra.mxu0 %v84
    %v243 = vpop.f32.mrf.mxu0
    %v244 = vadd.f32 0.0, %v243
    %245 = vmatmul.f32.gmra.mxu0 %v87
    %v246 = vpop.f32.mrf.mxu0
    %v247 = vadd.f32 0.0, %v246
    %248 = vmatmul.f32.gmra.mxu0 %v90
    %v249 = vpop.f32.mrf.mxu0
    %v250 = vadd.f32 0.0, %v249
    %251 = vmatmul.f32.gmra.mxu0 %v93
    %v252 = vpop.f32.mrf.mxu0
    %v253 = vadd.f32 0.0, %v252
    %254 = vmatmul.f32.gmra.mxu0 %v96
    %v255 = vpop.f32.mrf.mxu0
    %v256 = vadd.f32 0.0, %v255
    %257 = vmatmul.f32.gmra.mxu0 %v99
    %v258 = vpop.f32.mrf.mxu0
    %v259 = vadd.f32 0.0, %v258
    %260 = vmatmul.f32.gmra.mxu0 %v102
    %v261 = vpop.f32.mrf.mxu0
    %v262 = vadd.f32 0.0, %v261
    %263 = vmatmul.f32.gmra.mxu0 %v105
    %v264 = vpop.f32.mrf.mxu0
    %v265 = vadd.f32 0.0, %v264
    %266 = vmatmul.f32.gmra.mxu0 %v108
    %v267 = vpop.f32.mrf.mxu0
    %v268 = vadd.f32 0.0, %v267
    %269 = vmatmul.f32.gmra.mxu0 %v111
    %v270 = vpop.f32.mrf.mxu0
    %v271 = vadd.f32 0.0, %v270
    %272 = vmatmul.f32.gmra.mxu0 %v114
    %v273 = vpop.f32.mrf.mxu0
    %v274 = vadd.f32 0.0, %v273
    %275 = vmatmul.f32.gmra.mxu0 %v117
    %v276 = vpop.f32.mrf.mxu0
    %v277 = vadd.f32 0.0, %v276
    %278 = vmatmul.f32.gmra.mxu0 %v120
    %v279 = vpop.f32.mrf.mxu0
    %v280 = vadd.f32 0.0, %v279
    %281 = vdwg.mxu0
    %282 = vmatpush.msra.mxu0 0.0
    %283 = vmatpush.msra.mxu0 0.0
    %284 = vmatpush.msra.mxu0 0.0
    %285 = vmatpush.msra.mxu0 0.0
    %286 = vmatpush.msra.mxu0 0.0
    %287 = vmatpush.msra.mxu0 0.0
    %288 = vmatpush.msra.mxu0 0.0
    %289 = vmatpush.msra.mxu0 0.0
    %290 = vmatpush.msra.mxu0 0.0
    %291 = vmatpush.msra.mxu0 0.0
    %292 = vmatpush.msra.mxu0 0.0
    %293 = vmatpush.msra.mxu0 0.0
    %294 = vmatpush.msra.mxu0 0.0
    %295 = vmatpush.msra.mxu0 0.0
    %296 = vmatpush.msra.mxu0 0.0
    %297 = vmatpush.msra.mxu0 %v56
    %298 = vmatmul.f32.gmra.mxu0 %v60
    %v299 = vpop.f32.mrf.mxu0
    %v300 = vadd.f32 0.0, %v299
    %301 = vmatmul.f32.gmra.mxu0 %v63
    %v302 = vpop.f32.mrf.mxu0
    %v303 = vadd.f32 0.0, %v302
    %304 = vmatmul.f32.gmra.mxu0 %v66
    %v305 = vpop.f32.mrf.mxu0
    %v306 = vadd.f32 0.0, %v305
    %307 = vmatmul.f32.gmra.mxu0 %v69
    %v308 = vpop.f32.mrf.mxu0
    %v309 = vadd.f32 0.0, %v308
    %310 = vmatmul.f32.gmra.mxu0 %v72
    %v311 = vpop.f32.mrf.mxu0
    %v312 = vadd.f32 0.0, %v311
    %313 = vmatmul.f32.gmra.mxu0 %v75
    %v314 = vpop.f32.mrf.mxu0
    %v315 = vadd.f32 0.0, %v314
    %316 = vmatmul.f32.gmra.mxu0 %v78
    %v317 = vpop.f32.mrf.mxu0
    %v318 = vadd.f32 0.0, %v317
    %319 = vmatmul.f32.gmra.mxu0 %v81
    %v320 = vpop.f32.mrf.mxu0
    %v321 = vadd.f32 0.0, %v320
    %322 = vmatmul.f32.gmra.mxu0 %v84
    %v323 = vpop.f32.mrf.mxu0
    %v324 = vadd.f32 0.0, %v323
    %325 = vmatmul.f32.gmra.mxu0 %v87
    %v326 = vpop.f32.mrf.mxu0
    %v327 = vadd.f32 0.0, %v326
    %328 = vmatmul.f32.gmra.mxu0 %v90
    %v329 = vpop.f32.mrf.mxu0
    %v330 = vadd.f32 0.0, %v329
    %331 = vmatmul.f32.gmra.mxu0 %v93
    %v332 = vpop.f32.mrf.mxu0
    %v333 = vadd.f32 0.0, %v332
    %334 = vmatmul.f32.gmra.mxu0 %v96
    %v335 = vpop.f32.mrf.mxu0
    %v336 = vadd.f32 0.0, %v335
    %337 = vmatmul.f32.gmra.mxu0 %v99
    %v338 = vpop.f32.mrf.mxu0
    %v339 = vadd.f32 0.0, %v338
    %340 = vmatmul.f32.gmra.mxu0 %v102
    %v341 = vpop.f32.mrf.mxu0
    %v342 = vadd.f32 0.0, %v341
    %343 = vmatmul.f32.gmra.mxu0 %v105
    %v344 = vpop.f32.mrf.mxu0
    %v345 = vadd.f32 0.0, %v344
    %346 = vmatmul.f32.gmra.mxu0 %v108
    %v347 = vpop.f32.mrf.mxu0
    %v348 = vadd.f32 0.0, %v347
    %349 = vmatmul.f32.gmra.mxu0 %v111
    %v350 = vpop.f32.mrf.mxu0
    %v351 = vadd.f32 0.0, %v350
    %352 = vmatmul.f32.gmra.mxu0 %v114
    %v353 = vpop.f32.mrf.mxu0
    %v354 = vadd.f32 0.0, %v353
    %355 = vmatmul.f32.gmra.mxu0 %v117
    %v356 = vpop.f32.mrf.mxu0
    %v357 = vadd.f32 0.0, %v356
    %358 = vmatmul.f32.gmra.mxu0 %v120
    %v359 = vpop.f32.mrf.mxu0
    %v360 = vadd.f32 0.0, %v359
    %361 = vdwg.mxu0
    %362 = vmatpush.msra.mxu0 0.0
    %363 = vmatpush.msra.mxu0 0.0
    %364 = vmatpush.msra.mxu0 0.0
    %365 = vmatpush.msra.mxu0 0.0
    %366 = vmatpush.msra.mxu0 0.0
    %367 = vmatpush.msra.mxu0 0.0
    %368 = vmatpush.msra.mxu0 0.0
    %369 = vmatpush.msra.mxu0 0.0
    %370 = vmatpush.msra.mxu0 0.0
    %371 = vmatpush.msra.mxu0 0.0
    %372 = vmatpush.msra.mxu0 0.0
    %373 = vmatpush.msra.mxu0 0.0
    %374 = vmatpush.msra.mxu0 0.0
    %375 = vmatpush.msra.mxu0 0.0
    %376 = vmatpush.msra.mxu0 0.0
    %377 = vmatpush.msra.mxu0 %v57
    %378 = vmatmul.f32.gmra.mxu0 %v60
    %v379 = vpop.f32.mrf.mxu0
    %v380 = vadd.f32 0.0, %v379
    %381 = vmatmul.f32.gmra.mxu0 %v63
    %v382 = vpop.f32.mrf.mxu0
    %v383 = vadd.f32 0.0, %v382
    %384 = vmatmul.f32.gmra.mxu0 %v66
    %v385 = vpop.f32.mrf.mxu0
    %v386 = vadd.f32 0.0, %v385
    %387 = vmatmul.f32.gmra.mxu0 %v69
    %v388 = vpop.f32.mrf.mxu0
    %v389 = vadd.f32 0.0, %v388
    %390 = vmatmul.f32.gmra.mxu0 %v72
    %v391 = vpop.f32.mrf.mxu0
    %v392 = vadd.f32 0.0, %v391
    %393 = vmatmul.f32.gmra.mxu0 %v75
    %v394 = vpop.f32.mrf.mxu0
    %v395 = vadd.f32 0.0, %v394
    %396 = vmatmul.f32.gmra.mxu0 %v78
    %v397 = vpop.f32.mrf.mxu0
    %v398 = vadd.f32 0.0, %v397
    %399 = vmatmul.f32.gmra.mxu0 %v81
    %v400 = vpop.f32.mrf.mxu0
    %v401 = vadd.f32 0.0, %v400
    %402 = vmatmul.f32.gmra.mxu0 %v84
    %v403 = vpop.f32.mrf.mxu0
    %v404 = vadd.f32 0.0, %v403
    %405 = vmatmul.f32.gmra.mxu0 %v87
    %v406 = vpop.f32.mrf.mxu0
    %v407 = vadd.f32 0.0, %v406
    %408 = vmatmul.f32.gmra.mxu0 %v90
    %v409 = vpop.f32.mrf.mxu0
    %v410 = vadd.f32 0.0, %v409
    %411 = vmatmul.f32.gmra.mxu0 %v93
    %v412 = vpop.f32.mrf.mxu0
    %v413 = vadd.f32 0.0, %v412
    %414 = vmatmul.f32.gmra.mxu0 %v96
    %v415 = vpop.f32.mrf.mxu0
    %v416 = vadd.f32 0.0, %v415
    %417 = vmatmul.f32.gmra.mxu0 %v99
    %v418 = vpop.f32.mrf.mxu0
    %v419 = vadd.f32 0.0, %v418
    %420 = vmatmul.f32.gmra.mxu0 %v102
    %v421 = vpop.f32.mrf.mxu0
    %v422 = vadd.f32 0.0, %v421
    %423 = vmatmul.f32.gmra.mxu0 %v105
    %v424 = vpop.f32.mrf.mxu0
    %v425 = vadd.f32 0.0, %v424
    %426 = vmatmul.f32.gmra.mxu0 %v108
    %v427 = vpop.f32.mrf.mxu0
    %v428 = vadd.f32 0.0, %v427
    %429 = vmatmul.f32.gmra.mxu0 %v111
    %v430 = vpop.f32.mrf.mxu0
    %v431 = vadd.f32 0.0, %v430
    %432 = vmatmul.f32.gmra.mxu0 %v114
    %v433 = vpop.f32.mrf.mxu0
    %v434 = vadd.f32 0.0, %v433
    %435 = vmatmul.f32.gmra.mxu0 %v117
    %v436 = vpop.f32.mrf.mxu0
    %v437 = vadd.f32 0.0, %v436
    %438 = vmatmul.f32.gmra.mxu0 %v120
    %v439 = vpop.f32.mrf.mxu0
    %v440 = vadd.f32 0.0, %v439
    %441 = vdwg.mxu0
    %v442 = vld [vmem:[%s2] sm:$0xff]
    %v443 = vld [vmem:[%s2 + $0x8] sm:$0xff]
    %v444 = vld [vmem:[%s2 + $0x10] sm:$0xff]
    %v445 = vld [vmem:[%s2 + $0x18] sm:$0xff]
    %v446 = vld [vmem:[%s2 + $0x20] sm:$0xff]
    %v447 = vld [vmem:[%s2 + $0x28] sm:$0xff]
    %v448 = vld [vmem:[%s2 + $0x30] sm:$0xff]
    %v449 = vld [vmem:[%s2 + $0x38] sm:$0xff]
    %v450 = vld [vmem:[%s2 + $0x40] sm:$0xff]
    %v451 = vld [vmem:[%s2 + $0x48] sm:$0xff]
    %v452 = vld [vmem:[%s2 + $0x50] sm:$0xff]
    %v453 = vld [vmem:[%s2 + $0x58] sm:$0xff]
    %v454 = vld [vmem:[%s2 + $0x60] sm:$0xff]
    %v455 = vld [vmem:[%s2 + $0x68] sm:$0xff]
    %v456 = vld [vmem:[%s2 + $0x70] sm:$0xff]
    %v457 = vld [vmem:[%s2 + $0x78] sm:$0xff]
    %v458 = vld [vmem:[%s2 + $0x80] sm:$0xff]
    %v459 = vld [vmem:[%s2 + $0x88] sm:$0xff]
    %v460 = vld [vmem:[%s2 + $0x90] sm:$0xff]
    %v461 = vld [vmem:[%s2 + $0x98] sm:$0xff]
    %v462 = vld [vmem:[%s2 + $0xa0] sm:$0xff]
    %v463 = vld [vmem:[%s2 + $0xa8] sm:$0xff]
    %v464 = vld [vmem:[%s2 + $0xb0] sm:$0xff]
    %v465 = vld [vmem:[%s2 + $0xb8] sm:$0xff]
    %v466 = vld [vmem:[%s2 + $0xc0] sm:$0xff]
    %v467 = vld [vmem:[%s2 + $0xc8] sm:$0xff]
    %v468 = vld [vmem:[%s2 + $0xd0] sm:$0xff]
    %v469 = vld [vmem:[%s2 + $0xd8] sm:$0xff]
    %v470 = vld [vmem:[%s2 + $0xe0] sm:$0xff]
    %v471 = vld [vmem:[%s2 + $0xe8] sm:$0xff]
    %v472 = vld [vmem:[%s2 + $0xf0] sm:$0xff]
    %v473 = vld [vmem:[%s2 + $0xf8] sm:$0xff]
    %v474 = vld [vmem:[%s2 + $0x100] sm:$0xff]
    %v475 = vld [vmem:[%s2 + $0x108] sm:$0xff]
    %v476 = vld [vmem:[%s2 + $0x110] sm:$0xff]
    %v477 = vld [vmem:[%s2 + $0x118] sm:$0xff]
    %v478 = vld [vmem:[%s2 + $0x120] sm:$0xff]
    %v479 = vld [vmem:[%s2 + $0x128] sm:$0xff]
    %v480 = vld [vmem:[%s2 + $0x130] sm:$0xff]
    %v481 = vld [vmem:[%s2 + $0x138] sm:$0xff]
    %v482 = vld [vmem:[%s2 + $0x140] sm:$0xff]
    %v483 = vld [vmem:[%s2 + $0x148] sm:$0xff]
    %v484 = vld [vmem:[%s2 + $0x150] sm:$0xff]
    %v485 = vld [vmem:[%s2 + $0x158] sm:$0xff]
    %v486 = vld [vmem:[%s2 + $0x160] sm:$0xff]
    %v487 = vld [vmem:[%s2 + $0x168] sm:$0xff]
    %v488 = vld [vmem:[%s2 + $0x170] sm:$0xff]
    %v489 = vld [vmem:[%s2 + $0x178] sm:$0xff]
    %v490 = vld [vmem:[%s2 + $0x180] sm:$0xff]
    %v491 = vld [vmem:[%s2 + $0x188] sm:$0xff]
    %v492 = vld [vmem:[%s2 + $0x190] sm:$0xff]
    %v493 = vld [vmem:[%s2 + $0x198] sm:$0xff]
    %v494 = vld [vmem:[%s2 + $0x1a0] sm:$0xff]
    %v495 = vld [vmem:[%s2 + $0x1a8] sm:$0xff]
    %v496 = vld [vmem:[%s2 + $0x1b0] sm:$0xff]
    %v497 = vld [vmem:[%s2 + $0x1b8] sm:$0xff]
    %v498 = vld [vmem:[%s2 + $0x1c0] sm:$0xff]
    %v499 = vld [vmem:[%s2 + $0x1c8] sm:$0xff]
    %v500 = vld [vmem:[%s2 + $0x1d0] sm:$0xff]
    %v501 = vld [vmem:[%s2 + $0x1d8] sm:$0xff]
    %v502 = vld [vmem:[%s2 + $0x1e0] sm:$0xff]
    %v503 = vld [vmem:[%s2 + $0x1e8] sm:$0xff]
    %v504 = vld [vmem:[%s2 + $0x1f0] sm:$0xff]
    %v505 = vld [vmem:[%s2 + $0x1f8] sm:$0xff]
    %v506 = vld [vmem:[%s2 + $0x200] sm:$0xff]
    %v507 = vld [vmem:[%s2 + $0x208] sm:$0xff]
    %v508 = vld [vmem:[%s2 + $0x210] sm:$0xff]
    %v509 = vld [vmem:[%s2 + $0x218] sm:$0xff]
    %v510 = vld [vmem:[%s2 + $0x220] sm:$0xff]
    %v511 = vld [vmem:[%s2 + $0x228] sm:$0xff]
    %v512 = vld [vmem:[%s2 + $0x230] sm:$0xff]
    %v513 = vld [vmem:[%s2 + $0x238] sm:$0xff]
    %v514 = vld [vmem:[%s2 + $0x240] sm:$0xff]
    %v515 = vld [vmem:[%s2 + $0x248] sm:$0xff]
    %v516 = vld [vmem:[%s2 + $0x250] sm:$0xff]
    %v517 = vld [vmem:[%s2 + $0x258] sm:$0xff]
    %v518 = vld [vmem:[%s2 + $0x260] sm:$0xff]
    %v519 = vld [vmem:[%s2 + $0x268] sm:$0xff]
    %v520 = vld [vmem:[%s2 + $0x270] sm:$0xff]
    %v521 = vld [vmem:[%s2 + $0x278] sm:$0xff]
    %v522 = vld [vmem:[%s2 + $0x280] sm:$0xff]
    %v523 = vld [vmem:[%s2 + $0x288] sm:$0xff]
    %v524 = vld [vmem:[%s2 + $0x290] sm:$0xff]
    %v525 = vld [vmem:[%s2 + $0x298] sm:$0xff]
    %v526 = vld [vmem:[%s2 + $0x2a0] sm:$0xff]
    %v527 = vld [vmem:[%s2 + $0x2a8] sm:$0xff]
    %v528 = vld [vmem:[%s2 + $0x2b0] sm:$0xff]
    %v529 = vld [vmem:[%s2 + $0x2b8] sm:$0xff]
    %v530 = vld [vmem:[%s2 + $0x2c0] sm:$0xff]
    %v531 = vld [vmem:[%s2 + $0x2c8] sm:$0xff]
    %v532 = vld [vmem:[%s2 + $0x2d0] sm:$0xff]
    %v533 = vld [vmem:[%s2 + $0x2d8] sm:$0xff]
    %v534 = vld [vmem:[%s2 + $0x2e0] sm:$0xff]
    %v535 = vld [vmem:[%s2 + $0x2e8] sm:$0xff]
    %v536 = vld [vmem:[%s2 + $0x2f0] sm:$0xff]
    %v537 = vld [vmem:[%s2 + $0x2f8] sm:$0xff]
    %v538 = vld [vmem:[%s8] sm:$0x1]
    %v539 = vperm.slane %v538, 0
    %vm540 = vcmask 261120
    %v542 = vsel %vm540, %v447, 0
    %v545 = vsel %vm540, %v453, 0
    %v548 = vsel %vm540, %v459, 0
    %v551 = vsel %vm540, %v465, 0
    %v554 = vsel %vm540, %v471, 0
    %v557 = vsel %vm540, %v477, 0
    %v560 = vsel %vm540, %v483, 0
    %v563 = vsel %vm540, %v489, 0
    %v566 = vsel %vm540, %v495, 0
    %v569 = vsel %vm540, %v501, 0
    %v572 = vsel %vm540, %v507, 0
    %v575 = vsel %vm540, %v513, 0
    %v578 = vsel %vm540, %v519, 0
    %v581 = vsel %vm540, %v525, 0
    %v584 = vsel %vm540, %v531, 0
    %v587 = vsel %vm540, %v537, 0
    %589 = vmatpush.msra.mxu0 %v185
    %590 = vmatpush.msra.mxu0 %v182
    %591 = vmatpush.msra.mxu0 %v179
    %592 = vmatpush.msra.mxu0 %v176
    %593 = vmatpush.msra.mxu0 %v173
    %594 = vmatpush.msra.mxu0 %v170
    %595 = vmatpush.msra.mxu0 %v167
    %596 = vmatpush.msra.mxu0 %v164
    %597 = vmatpush.msra.mxu0 %v161
    %598 = vmatpush.msra.mxu0 %v158
    %599 = vmatpush.msra.mxu0 %v155
    %600 = vmatpush.msra.mxu0 %v152
    %601 = vmatpush.msra.mxu0 %v149
    %602 = vmatpush.msra.mxu0 %v146
    %603 = vmatpush.msra.mxu0 %v143
    %604 = vmatpush.msra.mxu0 %v140
    %605 = vmatmul.f32.gmra.mxu0 %v442
    %v606 = vpop.f32.mrf.mxu0
    %v607 = vadd.f32 %v539, %v606
    %608 = vmatmul.f32.gmra.mxu0 %v448
    %v609 = vpop.f32.mrf.mxu0
    %v610 = vadd.f32 %v539, %v609
    %611 = vmatmul.f32.gmra.mxu0 %v454
    %v612 = vpop.f32.mrf.mxu0
    %v613 = vadd.f32 %v539, %v612
    %614 = vmatmul.f32.gmra.mxu0 %v460
    %v615 = vpop.f32.mrf.mxu0
    %v616 = vadd.f32 %v539, %v615
    %617 = vmatmul.f32.gmra.mxu0 %v466
    %v618 = vpop.f32.mrf.mxu0
    %v619 = vadd.f32 %v539, %v618
    %620 = vmatmul.f32.gmra.mxu0 %v472
    %v621 = vpop.f32.mrf.mxu0
    %v622 = vadd.f32 %v539, %v621
    %623 = vmatmul.f32.gmra.mxu0 %v478
    %v624 = vpop.f32.mrf.mxu0
    %v625 = vadd.f32 %v539, %v624
    %626 = vmatmul.f32.gmra.mxu0 %v484
    %v627 = vpop.f32.mrf.mxu0
    %v628 = vadd.f32 %v539, %v627
    %629 = vmatmul.f32.gmra.mxu0 %v490
    %v630 = vpop.f32.mrf.mxu0
    %v631 = vadd.f32 %v539, %v630
    %632 = vmatmul.f32.gmra.mxu0 %v496
    %v633 = vpop.f32.mrf.mxu0
    %v634 = vadd.f32 %v539, %v633
    %635 = vmatmul.f32.gmra.mxu0 %v502
    %v636 = vpop.f32.mrf.mxu0
    %v637 = vadd.f32 %v539, %v636
    %638 = vmatmul.f32.gmra.mxu0 %v508
    %v639 = vpop.f32.mrf.mxu0
    %v640 = vadd.f32 %v539, %v639
    %641 = vmatmul.f32.gmra.mxu0 %v514
    %v642 = vpop.f32.mrf.mxu0
    %v643 = vadd.f32 %v539, %v642
    %644 = vmatmul.f32.gmra.mxu0 %v520
    %v645 = vpop.f32.mrf.mxu0
    %v646 = vadd.f32 %v539, %v645
    %647 = vmatmul.f32.gmra.mxu0 %v526
    %v648 = vpop.f32.mrf.mxu0
    %v649 = vadd.f32 %v539, %v648
    %650 = vmatmul.f32.gmra.mxu0 %v532
    %v651 = vpop.f32.mrf.mxu0
    %v652 = vadd.f32 %v539, %v651
    %653 = vdwg.mxu0
    %654 = vmatpush.msra.mxu0 %v250
    %655 = vmatpush.msra.mxu0 %v247
    %656 = vmatpush.msra.mxu0 %v244
    %657 = vmatpush.msra.mxu0 %v241
    %658 = vmatpush.msra.mxu0 %v238
    %659 = vmatpush.msra.mxu0 %v235
    %660 = vmatpush.msra.mxu0 %v232
    %661 = vmatpush.msra.mxu0 %v229
    %662 = vmatpush.msra.mxu0 %v226
    %663 = vmatpush.msra.mxu0 %v223
    %664 = vmatpush.msra.mxu0 %v220
    %665 = vmatpush.msra.mxu0 %v200
    %666 = vmatpush.msra.mxu0 %v197
    %667 = vmatpush.msra.mxu0 %v194
    %668 = vmatpush.msra.mxu0 %v191
    %669 = vmatpush.msra.mxu0 %v188
    %670 = vmatmul.f32.gmra.mxu0 %v443
    %v671 = vpop.f32.mrf.mxu0
    %v672 = vadd.f32 %v607, %v671
    %673 = vmatmul.f32.gmra.mxu0 %v449
    %v674 = vpop.f32.mrf.mxu0
    %v675 = vadd.f32 %v610, %v674
    %676 = vmatmul.f32.gmra.mxu0 %v455
    %v677 = vpop.f32.mrf.mxu0
    %v678 = vadd.f32 %v613, %v677
    %679 = vmatmul.f32.gmra.mxu0 %v461
    %v680 = vpop.f32.mrf.mxu0
    %v681 = vadd.f32 %v616, %v680
    %682 = vmatmul.f32.gmra.mxu0 %v467
    %v683 = vpop.f32.mrf.mxu0
    %v684 = vadd.f32 %v619, %v683
    %685 = vmatmul.f32.gmra.mxu0 %v473
    %v686 = vpop.f32.mrf.mxu0
    %v687 = vadd.f32 %v622, %v686
    %688 = vmatmul.f32.gmra.mxu0 %v479
    %v689 = vpop.f32.mrf.mxu0
    %v690 = vadd.f32 %v625, %v689
    %691 = vmatmul.f32.gmra.mxu0 %v485
    %v692 = vpop.f32.mrf.mxu0
    %v693 = vadd.f32 %v628, %v692
    %694 = vmatmul.f32.gmra.mxu0 %v491
    %v695 = vpop.f32.mrf.mxu0
    %v696 = vadd.f32 %v631, %v695
    %697 = vmatmul.f32.gmra.mxu0 %v497
    %v698 = vpop.f32.mrf.mxu0
    %v699 = vadd.f32 %v634, %v698
    %700 = vmatmul.f32.gmra.mxu0 %v503
    %v701 = vpop.f32.mrf.mxu0
    %v702 = vadd.f32 %v637, %v701
    %703 = vmatmul.f32.gmra.mxu0 %v509
    %v704 = vpop.f32.mrf.mxu0
    %v705 = vadd.f32 %v640, %v704
    %706 = vmatmul.f32.gmra.mxu0 %v515
    %v707 = vpop.f32.mrf.mxu0
    %v708 = vadd.f32 %v643, %v707
    %709 = vmatmul.f32.gmra.mxu0 %v521
    %v710 = vpop.f32.mrf.mxu0
    %v711 = vadd.f32 %v646, %v710
    %712 = vmatmul.f32.gmra.mxu0 %v527
    %v713 = vpop.f32.mrf.mxu0
    %v714 = vadd.f32 %v649, %v713
    %715 = vmatmul.f32.gmra.mxu0 %v533
    %v716 = vpop.f32.mrf.mxu0
    %v717 = vadd.f32 %v652, %v716
    %718 = vdwg.mxu0
    %719 = vmatpush.msra.mxu0 %v315
    %720 = vmatpush.msra.mxu0 %v312
    %721 = vmatpush.msra.mxu0 %v309
    %722 = vmatpush.msra.mxu0 %v306
    %723 = vmatpush.msra.mxu0 %v303
    %724 = vmatpush.msra.mxu0 %v300
    %725 = vmatpush.msra.mxu0 %v280
    %726 = vmatpush.msra.mxu0 %v277
    %727 = vmatpush.msra.mxu0 %v274
    %728 = vmatpush.msra.mxu0 %v271
    %729 = vmatpush.msra.mxu0 %v268
    %730 = vmatpush.msra.mxu0 %v265
    %731 = vmatpush.msra.mxu0 %v262
    %732 = vmatpush.msra.mxu0 %v259
    %733 = vmatpush.msra.mxu0 %v256
    %734 = vmatpush.msra.mxu0 %v253
    %735 = vmatmul.f32.gmra.mxu0 %v444
    %v736 = vpop.f32.mrf.mxu0
    %v737 = vadd.f32 %v672, %v736
    %738 = vmatmul.f32.gmra.mxu0 %v450
    %v739 = vpop.f32.mrf.mxu0
    %v740 = vadd.f32 %v675, %v739
    %741 = vmatmul.f32.gmra.mxu0 %v456
    %v742 = vpop.f32.mrf.mxu0
    %v743 = vadd.f32 %v678, %v742
    %744 = vmatmul.f32.gmra.mxu0 %v462
    %v745 = vpop.f32.mrf.mxu0
    %v746 = vadd.f32 %v681, %v745
    %747 = vmatmul.f32.gmra.mxu0 %v468
    %v748 = vpop.f32.mrf.mxu0
    %v749 = vadd.f32 %v684, %v748
    %750 = vmatmul.f32.gmra.mxu0 %v474
    %v751 = vpop.f32.mrf.mxu0
    %v752 = vadd.f32 %v687, %v751
    %753 = vmatmul.f32.gmra.mxu0 %v480
    %v754 = vpop.f32.mrf.mxu0
    %v755 = vadd.f32 %v690, %v754
    %756 = vmatmul.f32.gmra.mxu0 %v486
    %v757 = vpop.f32.mrf.mxu0
    %v758 = vadd.f32 %v693, %v757
    %759 = vmatmul.f32.gmra.mxu0 %v492
    %v760 = vpop.f32.mrf.mxu0
    %v761 = vadd.f32 %v696, %v760
    %762 = vmatmul.f32.gmra.mxu0 %v498
    %v763 = vpop.f32.mrf.mxu0
    %v764 = vadd.f32 %v699, %v763
    %765 = vmatmul.f32.gmra.mxu0 %v504
    %v766 = vpop.f32.mrf.mxu0
    %v767 = vadd.f32 %v702, %v766
    %768 = vmatmul.f32.gmra.mxu0 %v510
    %v769 = vpop.f32.mrf.mxu0
    %v770 = vadd.f32 %v705, %v769
    %771 = vmatmul.f32.gmra.mxu0 %v516
    %v772 = vpop.f32.mrf.mxu0
    %v773 = vadd.f32 %v708, %v772
    %774 = vmatmul.f32.gmra.mxu0 %v522
    %v775 = vpop.f32.mrf.mxu0
    %v776 = vadd.f32 %v711, %v775
    %777 = vmatmul.f32.gmra.mxu0 %v528
    %v778 = vpop.f32.mrf.mxu0
    %v779 = vadd.f32 %v714, %v778
    %780 = vmatmul.f32.gmra.mxu0 %v534
    %v781 = vpop.f32.mrf.mxu0
    %v782 = vadd.f32 %v717, %v781
    %783 = vdwg.mxu0
    %784 = vmatpush.msra.mxu0 %v380
    %785 = vmatpush.msra.mxu0 %v360
    %786 = vmatpush.msra.mxu0 %v357
    %787 = vmatpush.msra.mxu0 %v354
    %788 = vmatpush.msra.mxu0 %v351
    %789 = vmatpush.msra.mxu0 %v348
    %790 = vmatpush.msra.mxu0 %v345
    %791 = vmatpush.msra.mxu0 %v342
    %792 = vmatpush.msra.mxu0 %v339
    %793 = vmatpush.msra.mxu0 %v336
    %794 = vmatpush.msra.mxu0 %v333
    %795 = vmatpush.msra.mxu0 %v330
    %796 = vmatpush.msra.mxu0 %v327
    %797 = vmatpush.msra.mxu0 %v324
    %798 = vmatpush.msra.mxu0 %v321
    %799 = vmatpush.msra.mxu0 %v318
    %800 = vmatmul.f32.gmra.mxu0 %v445
    %v801 = vpop.f32.mrf.mxu0
    %v802 = vadd.f32 %v737, %v801
    %803 = vmatmul.f32.gmra.mxu0 %v451
    %v804 = vpop.f32.mrf.mxu0
    %v805 = vadd.f32 %v740, %v804
    %806 = vmatmul.f32.gmra.mxu0 %v457
    %v807 = vpop.f32.mrf.mxu0
    %v808 = vadd.f32 %v743, %v807
    %809 = vmatmul.f32.gmra.mxu0 %v463
    %v810 = vpop.f32.mrf.mxu0
    %v811 = vadd.f32 %v746, %v810
    %812 = vmatmul.f32.gmra.mxu0 %v469
    %v813 = vpop.f32.mrf.mxu0
    %v814 = vadd.f32 %v749, %v813
    %815 = vmatmul.f32.gmra.mxu0 %v475
    %v816 = vpop.f32.mrf.mxu0
    %v817 = vadd.f32 %v752, %v816
    %818 = vmatmul.f32.gmra.mxu0 %v481
    %v819 = vpop.f32.mrf.mxu0
    %v820 = vadd.f32 %v755, %v819
    %821 = vmatmul.f32.gmra.mxu0 %v487
    %v822 = vpop.f32.mrf.mxu0
    %v823 = vadd.f32 %v758, %v822
    %824 = vmatmul.f32.gmra.mxu0 %v493
    %v825 = vpop.f32.mrf.mxu0
    %v826 = vadd.f32 %v761, %v825
    %827 = vmatmul.f32.gmra.mxu0 %v499
    %v828 = vpop.f32.mrf.mxu0
    %v829 = vadd.f32 %v764, %v828
    %830 = vmatmul.f32.gmra.mxu0 %v505
    %v831 = vpop.f32.mrf.mxu0
    %v832 = vadd.f32 %v767, %v831
    %833 = vmatmul.f32.gmra.mxu0 %v511
    %v834 = vpop.f32.mrf.mxu0
    %v835 = vadd.f32 %v770, %v834
    %836 = vmatmul.f32.gmra.mxu0 %v517
    %v837 = vpop.f32.mrf.mxu0
    %v838 = vadd.f32 %v773, %v837
    %839 = vmatmul.f32.gmra.mxu0 %v523
    %v840 = vpop.f32.mrf.mxu0
    %v841 = vadd.f32 %v776, %v840
    %842 = vmatmul.f32.gmra.mxu0 %v529
    %v843 = vpop.f32.mrf.mxu0
    %v844 = vadd.f32 %v779, %v843
    %845 = vmatmul.f32.gmra.mxu0 %v535
    %v846 = vpop.f32.mrf.mxu0
    %v847 = vadd.f32 %v782, %v846
    %848 = vdwg.mxu0
    %849 = vmatpush.msra.mxu0 %v428
    %850 = vmatpush.msra.mxu0 %v425
    %851 = vmatpush.msra.mxu0 %v422
    %852 = vmatpush.msra.mxu0 %v419
    %853 = vmatpush.msra.mxu0 %v416
    %854 = vmatpush.msra.mxu0 %v413
    %855 = vmatpush.msra.mxu0 %v410
    %856 = vmatpush.msra.mxu0 %v407
    %857 = vmatpush.msra.mxu0 %v404
    %858 = vmatpush.msra.mxu0 %v401
    %859 = vmatpush.msra.mxu0 %v398
    %860 = vmatpush.msra.mxu0 %v395
    %861 = vmatpush.msra.mxu0 %v392
    %862 = vmatpush.msra.mxu0 %v389
    %863 = vmatpush.msra.mxu0 %v386
    %864 = vmatpush.msra.mxu0 %v383
    %865 = vmatmul.f32.gmra.mxu0 %v446
    %v866 = vpop.f32.mrf.mxu0
    %v867 = vadd.f32 %v802, %v866
    %868 = vmatmul.f32.gmra.mxu0 %v452
    %v869 = vpop.f32.mrf.mxu0
    %v870 = vadd.f32 %v805, %v869
    %871 = vmatmul.f32.gmra.mxu0 %v458
    %v872 = vpop.f32.mrf.mxu0
    %v873 = vadd.f32 %v808, %v872
    %874 = vmatmul.f32.gmra.mxu0 %v464
    %v875 = vpop.f32.mrf.mxu0
    %v876 = vadd.f32 %v811, %v875
    %877 = vmatmul.f32.gmra.mxu0 %v470
    %v878 = vpop.f32.mrf.mxu0
    %v879 = vadd.f32 %v814, %v878
    %880 = vmatmul.f32.gmra.mxu0 %v476
    %v881 = vpop.f32.mrf.mxu0
    %v882 = vadd.f32 %v817, %v881
    %883 = vmatmul.f32.gmra.mxu0 %v482
    %v884 = vpop.f32.mrf.mxu0
    %v885 = vadd.f32 %v820, %v884
    %886 = vmatmul.f32.gmra.mxu0 %v488
    %v887 = vpop.f32.mrf.mxu0
    %v888 = vadd.f32 %v823, %v887
    %889 = vmatmul.f32.gmra.mxu0 %v494
    %v890 = vpop.f32.mrf.mxu0
    %v891 = vadd.f32 %v826, %v890
    %892 = vmatmul.f32.gmra.mxu0 %v500
    %v893 = vpop.f32.mrf.mxu0
    %v894 = vadd.f32 %v829, %v893
    %895 = vmatmul.f32.gmra.mxu0 %v506
    %v896 = vpop.f32.mrf.mxu0
    %v897 = vadd.f32 %v832, %v896
    %898 = vmatmul.f32.gmra.mxu0 %v512
    %v899 = vpop.f32.mrf.mxu0
    %v900 = vadd.f32 %v835, %v899
    %901 = vmatmul.f32.gmra.mxu0 %v518
    %v902 = vpop.f32.mrf.mxu0
    %v903 = vadd.f32 %v838, %v902
    %904 = vmatmul.f32.gmra.mxu0 %v524
    %v905 = vpop.f32.mrf.mxu0
    %v906 = vadd.f32 %v841, %v905
    %907 = vmatmul.f32.gmra.mxu0 %v530
    %v908 = vpop.f32.mrf.mxu0
    %v909 = vadd.f32 %v844, %v908
    %910 = vmatmul.f32.gmra.mxu0 %v536
    %v911 = vpop.f32.mrf.mxu0
    %v912 = vadd.f32 %v847, %v911
    %913 = vdwg.mxu0
    %914 = vmatpush.msra.mxu0 0.0
    %915 = vmatpush.msra.mxu0 0.0
    %916 = vmatpush.msra.mxu0 0.0
    %917 = vmatpush.msra.mxu0 0.0
    %918 = vmatpush.msra.mxu0 0.0
    %919 = vmatpush.msra.mxu0 0.0
    %920 = vmatpush.msra.mxu0 0.0
    %921 = vmatpush.msra.mxu0 0.0
    %922 = vmatpush.msra.mxu0 0.0
    %923 = vmatpush.msra.mxu0 0.0
    %924 = vmatpush.msra.mxu0 0.0
    %925 = vmatpush.msra.mxu0 0.0
    %926 = vmatpush.msra.mxu0 %v440
    %927 = vmatpush.msra.mxu0 %v437
    %928 = vmatpush.msra.mxu0 %v434
    %929 = vmatpush.msra.mxu0 %v431
    %930 = vmatmul.f32.gmra.mxu0 %v542
    %v931 = vpop.f32.mrf.mxu0
    %v932 = vadd.f32 %v867, %v931
    %933 = vmatmul.f32.gmra.mxu0 %v545
    %v934 = vpop.f32.mrf.mxu0
    %v935 = vadd.f32 %v870, %v934
    %936 = vmatmul.f32.gmra.mxu0 %v548
    %v937 = vpop.f32.mrf.mxu0
    %v938 = vadd.f32 %v873, %v937
    %939 = vmatmul.f32.gmra.mxu0 %v551
    %v940 = vpop.f32.mrf.mxu0
    %v941 = vadd.f32 %v876, %v940
    %942 = vmatmul.f32.gmra.mxu0 %v554
    %v943 = vpop.f32.mrf.mxu0
    %v944 = vadd.f32 %v879, %v943
    %945 = vmatmul.f32.gmra.mxu0 %v557
    %v946 = vpop.f32.mrf.mxu0
    %v947 = vadd.f32 %v882, %v946
    %948 = vmatmul.f32.gmra.mxu0 %v560
    %v949 = vpop.f32.mrf.mxu0
    %v950 = vadd.f32 %v885, %v949
    %951 = vmatmul.f32.gmra.mxu0 %v563
    %v952 = vpop.f32.mrf.mxu0
    %v953 = vadd.f32 %v888, %v952
    %954 = vmatmul.f32.gmra.mxu0 %v566
    %v955 = vpop.f32.mrf.mxu0
    %v956 = vadd.f32 %v891, %v955
    %957 = vmatmul.f32.gmra.mxu0 %v569
    %v958 = vpop.f32.mrf.mxu0
    %v959 = vadd.f32 %v894, %v958
    %960 = vmatmul.f32.gmra.mxu0 %v572
    %v961 = vpop.f32.mrf.mxu0
    %v962 = vadd.f32 %v897, %v961
    %963 = vmatmul.f32.gmra.mxu0 %v575
    %v964 = vpop.f32.mrf.mxu0
    %v965 = vadd.f32 %v900, %v964
    %966 = vmatmul.f32.gmra.mxu0 %v578
    %v967 = vpop.f32.mrf.mxu0
    %v968 = vadd.f32 %v903, %v967
    %969 = vmatmul.f32.gmra.mxu0 %v581
    %v970 = vpop.f32.mrf.mxu0
    %v971 = vadd.f32 %v906, %v970
    %972 = vmatmul.f32.gmra.mxu0 %v584
    %v973 = vpop.f32.mrf.mxu0
    %v974 = vadd.f32 %v909, %v973
    %975 = vmatmul.f32.gmra.mxu0 %v587
    %v976 = vpop.f32.mrf.mxu0
    %v977 = vadd.f32 %v912, %v976
    %978 = vdwg.mxu0
    %v979 = vmax.f32 %v932, 0.0
    %v980 = vmax.f32 %v935, 0.0
    %v981 = vmax.f32 %v938, 0.0
    %v982 = vmax.f32 %v941, 0.0
    %v983 = vmax.f32 %v944, 0.0
    %v984 = vmax.f32 %v947, 0.0
    %v985 = vmax.f32 %v950, 0.0
    %v986 = vmax.f32 %v953, 0.0
    %v987 = vmax.f32 %v956, 0.0
    %v988 = vmax.f32 %v959, 0.0
    %v989 = vmax.f32 %v962, 0.0
    %v990 = vmax.f32 %v965, 0.0
    %v991 = vmax.f32 %v968, 0.0
    %v992 = vmax.f32 %v971, 0.0
    %v993 = vmax.f32 %v974, 0.0
    %v994 = vmax.f32 %v977, 0.0
    %v995 = vld [vmem:[%s3] sm:$0xff]
    %v996 = vld [vmem:[%s3 + $0x8] sm:$0xff]
    %v997 = vld [vmem:[%s3 + $0x10] sm:$0xff]
    %v998 = vld [vmem:[%s3 + $0x18] sm:$0xff]
    %v999 = vld [vmem:[%s3 + $0x20] sm:$0xff]
    %v1000 = vld [vmem:[%s3 + $0x28] sm:$0xff]
    %v1001 = vld [vmem:[%s3 + $0x30] sm:$0xff]
    %v1002 = vld [vmem:[%s3 + $0x38] sm:$0xff]
    %v1003 = vld [vmem:[%s3 + $0x40] sm:$0xff]
    %v1004 = vld [vmem:[%s3 + $0x48] sm:$0xff]
    %v1005 = vld [vmem:[%s3 + $0x50] sm:$0xff]
    %v1006 = vld [vmem:[%s3 + $0x58] sm:$0xff]
    %v1007 = vld [vmem:[%s3 + $0x60] sm:$0xff]
    %v1008 = vld [vmem:[%s3 + $0x68] sm:$0xff]
    %v1009 = vld [vmem:[%s3 + $0x70] sm:$0xff]
    %v1010 = vld [vmem:[%s3 + $0x78] sm:$0xff]
    %1011 = vmatpush.msra.mxu0 %v994
    %1012 = vmatpush.msra.mxu0 %v993
    %1013 = vmatpush.msra.mxu0 %v992
    %1014 = vmatpush.msra.mxu0 %v991
    %1015 = vmatpush.msra.mxu0 %v990
    %1016 = vmatpush.msra.mxu0 %v989
    %1017 = vmatpush.msra.mxu0 %v988
    %1018 = vmatpush.msra.mxu0 %v987
    %1019 = vmatpush.msra.mxu0 %v986
    %1020 = vmatpush.msra.mxu0 %v985
    %1021 = vmatpush.msra.mxu0 %v984
    %1022 = vmatpush.msra.mxu0 %v983
    %1023 = vmatpush.msra.mxu0 %v982
    %1024 = vmatpush.msra.mxu0 %v981
    %1025 = vmatpush.msra.mxu0 %v980
    %1026 = vmatpush.msra.mxu0 %v979
    %1027 = vmatmul.f32.gmra.mxu0 %v995
    %v1028 = vpop.f32.mrf.mxu0
    %v1029 = vadd.f32 0.0, %v1028
    %1030 = vmatmul.f32.gmra.mxu0 %v996
    %v1031 = vpop.f32.mrf.mxu0
    %v1032 = vadd.f32 0.0, %v1031
    %1033 = vmatmul.f32.gmra.mxu0 %v997
    %v1034 = vpop.f32.mrf.mxu0
    %v1035 = vadd.f32 0.0, %v1034
    %1036 = vmatmul.f32.gmra.mxu0 %v998
    %v1037 = vpop.f32.mrf.mxu0
    %v1038 = vadd.f32 0.0, %v1037
    %1039 = vmatmul.f32.gmra.mxu0 %v999
    %v1040 = vpop.f32.mrf.mxu0
    %v1041 = vadd.f32 0.0, %v1040
    %1042 = vmatmul.f32.gmra.mxu0 %v1000
    %v1043 = vpop.f32.mrf.mxu0
    %v1044 = vadd.f32 0.0, %v1043
    %1045 = vmatmul.f32.gmra.mxu0 %v1001
    %v1046 = vpop.f32.mrf.mxu0
    %v1047 = vadd.f32 0.0, %v1046
    %1048 = vmatmul.f32.gmra.mxu0 %v1002
    %v1049 = vpop.f32.mrf.mxu0
    %v1050 = vadd.f32 0.0, %v1049
    %1051 = vmatmul.f32.gmra.mxu0 %v1003
    %v1052 = vpop.f32.mrf.mxu0
    %v1053 = vadd.f32 0.0, %v1052
    %1054 = vmatmul.f32.gmra.mxu0 %v1004
    %v1055 = vpop.f32.mrf.mxu0
    %v1056 = vadd.f32 0.0, %v1055
    %1057 = vmatmul.f32.gmra.mxu0 %v1005
    %v1058 = vpop.f32.mrf.mxu0
    %v1059 = vadd.f32 0.0, %v1058
    %1060 = vmatmul.f32.gmra.mxu0 %v1006
    %v1061 = vpop.f32.mrf.mxu0
    %v1062 = vadd.f32 0.0, %v1061
    %1063 = vmatmul.f32.gmra.mxu0 %v1007
    %v1064 = vpop.f32.mrf.mxu0
    %v1065 = vadd.f32 0.0, %v1064
    %1066 = vmatmul.f32.gmra.mxu0 %v1008
    %v1067 = vpop.f32.mrf.mxu0
    %v1068 = vadd.f32 0.0, %v1067
    %1069 = vmatmul.f32.gmra.mxu0 %v1009
    %v1070 = vpop.f32.mrf.mxu0
    %v1071 = vadd.f32 0.0, %v1070
    %1072 = vmatmul.f32.gmra.mxu0 %v1010
    %v1073 = vpop.f32.mrf.mxu0
    %v1074 = vadd.f32 0.0, %v1073
    %1075 = vdwg.mxu0
    %v1076 = vmax.f32 %v1029, %v1041
    %v1077 = vmax.f32 %v1032, %v1044
    %v1078 = vmax.f32 %v1035, %v1047
    %v1079 = vmax.f32 %v1038, %v1050
    %v1080 = vmax.f32 %v1053, %v1065
    %v1081 = vmax.f32 %v1056, %v1068
    %v1082 = vmax.f32 %v1059, %v1071
    %v1083 = vmax.f32 %v1062, %v1074
    %v1084 = vmax.f32 %v1076, %v1080
    %v1085 = vmax.f32 %v1077, %v1081
    %v1086 = vmax.f32 %v1078, %v1082
    %v1087 = vmax.f32 %v1079, %v1083
    %v1088 = vld [vmem:[%s6 + $0x20] sm:$0xff]
    %v1089 = vld [vmem:[%s6 + $0x28] sm:$0xff]
    %v1090 = vld [vmem:[%s6 + $0x30] sm:$0xff]
    %v1091 = vld [vmem:[%s6 + $0x38] sm:$0xff]
    %v1092 = vld [vmem:[%s6 + $0x40] sm:$0xff]
    %v1093 = vld [vmem:[%s6 + $0x48] sm:$0xff]
    %v1094 = vld [vmem:[%s6 + $0x50] sm:$0xff]
    %v1095 = vld [vmem:[%s6 + $0x58] sm:$0xff]
    %v1096 = vld [vmem:[%s6 + $0x60] sm:$0xff]
    %v1097 = vld [vmem:[%s6 + $0x68] sm:$0xff]
    %v1098 = vld [vmem:[%s6 + $0x70] sm:$0xff]
    %v1099 = vld [vmem:[%s6 + $0x78] sm:$0xff]
    %vm1100 = vcmask 195584
    %v1102 = vsel %vm1100, %v1084, 0
    %v1105 = vsel %vm1100, %v1085, 0
    %v1108 = vsel %vm1100, %v1086, 0
    %v1111 = vsel %vm1100, %v1087, 0
    %1113 = vmatpush.msra.mxu0 0.0
    %1114 = vmatpush.msra.mxu0 0.0
    %1115 = vmatpush.msra.mxu0 0.0
    %1116 = vmatpush.msra.mxu0 0.0
    %1117 = vmatpush.msra.mxu0 0.0
    %1118 = vmatpush.msra.mxu0 0.0
    %1119 = vmatpush.msra.mxu0 0.0
    %1120 = vmatpush.msra.mxu0 0.0
    %1121 = vmatpush.msra.mxu0 0.0
    %1122 = vmatpush.msra.mxu0 0.0
    %1123 = vmatpush.msra.mxu0 0.0
    %1124 = vmatpush.msra.mxu0 0.0
    %1125 = vmatpush.msra.mxu0 0.0
    %1126 = vmatpush.msra.mxu0 %v1096
    %1127 = vmatpush.msra.mxu0 %v1092
    %1128 = vmatpush.msra.mxu0 %v1088
    %1129 = vmatmul.f32.gmra.mxu0 %v1102
    %v1130 = vpop.f32.mrf.mxu0
    %v1131 = vadd.f32 0.0, %v1130
    %1132 = vmatmul.f32.gmra.mxu0 %v1105
    %v1133 = vpop.f32.mrf.mxu0
    %v1134 = vadd.f32 0.0, %v1133
    %1135 = vmatmul.f32.gmra.mxu0 %v1108
    %v1136 = vpop.f32.mrf.mxu0
    %v1137 = vadd.f32 0.0, %v1136
    %1138 = vmatmul.f32.gmra.mxu0 %v1111
    %v1139 = vpop.f32.mrf.mxu0
    %v1140 = vadd.f32 0.0, %v1139
    %1141 = vdwg.mxu0
    %1142 = vmatpush.msra.mxu0 0.0
    %1143 = vmatpush.msra.mxu0 0.0
    %1144 = vmatpush.msra.mxu0 0.0
    %1145 = vmatpush.msra.mxu0 0.0
    %1146 = vmatpush.msra.mxu0 0.0
    %1147 = vmatpush.msra.mxu0 0.0
    %1148 = vmatpush.msra.mxu0 0.0
    %1149 = vmatpush.msra.mxu0 0.0
    %1150 = vmatpush.msra.mxu0 0.0
    %1151 = vmatpush.msra.mxu0 0.0
    %1152 = vmatpush.msra.mxu0 0.0
    %1153 = vmatpush.msra.mxu0 0.0
    %1154 = vmatpush.msra.mxu0 0.0
    %1155 = vmatpush.msra.mxu0 %v1097
    %1156 = vmatpush.msra.mxu0 %v1093
    %1157 = vmatpush.msra.mxu0 %v1089
    %1158 = vmatmul.f32.gmra.mxu0 %v1102
    %v1159 = vpop.f32.mrf.mxu0
    %v1160 = vadd.f32 0.0, %v1159
    %1161 = vmatmul.f32.gmra.mxu0 %v1105
    %v1162 = vpop.f32.mrf.mxu0
    %v1163 = vadd.f32 0.0, %v1162
    %1164 = vmatmul.f32.gmra.mxu0 %v1108
    %v1165 = vpop.f32.mrf.mxu0
    %v1166 = vadd.f32 0.0, %v1165
    %1167 = vmatmul.f32.gmra.mxu0 %v1111
    %v1168 = vpop.f32.mrf.mxu0
    %v1169 = vadd.f32 0.0, %v1168
    %1170 = vdwg.mxu0
    %1171 = vmatpush.msra.mxu0 0.0
    %1172 = vmatpush.msra.mxu0 0.0
    %1173 = vmatpush.msra.mxu0 0.0
    %1174 = vmatpush.msra.mxu0 0.0
    %1175 = vmatpush.msra.mxu0 0.0
    %1176 = vmatpush.msra.mxu0 0.0
    %1177 = vmatpush.msra.mxu0 0.0
    %1178 = vmatpush.msra.mxu0 0.0
    %1179 = vmatpush.msra.mxu0 0.0
    %1180 = vmatpush.msra.mxu0 0.0
    %1181 = vmatpush.msra.mxu0 0.0
    %1182 = vmatpush.msra.mxu0 0.0
    %1183 = vmatpush.msra.mxu0 0.0
    %1184 = vmatpush.msra.mxu0 %v1098
    %1185 = vmatpush.msra.mxu0 %v1094
    %1186 = vmatpush.msra.mxu0 %v1090
    %1187 = vmatmul.f32.gmra.mxu0 %v1102
    %v1188 = vpop.f32.mrf.mxu0
    %v1189 = vadd.f32 0.0, %v1188
    %1190 = vmatmul.f32.gmra.mxu0 %v1105
    %v1191 = vpop.f32.mrf.mxu0
    %v1192 = vadd.f32 0.0, %v1191
    %1193 = vmatmul.f32.gmra.mxu0 %v1108
    %v1194 = vpop.f32.mrf.mxu0
    %v1195 = vadd.f32 0.0, %v1194
    %1196 = vmatmul.f32.gmra.mxu0 %v1111
    %v1197 = vpop.f32.mrf.mxu0
    %v1198 = vadd.f32 0.0, %v1197
    %1199 = vdwg.mxu0
    %1200 = vmatpush.msra.mxu0 0.0
    %1201 = vmatpush.msra.mxu0 0.0
    %1202 = vmatpush.msra.mxu0 0.0
    %1203 = vmatpush.msra.mxu0 0.0
    %1204 = vmatpush.msra.mxu0 0.0
    %1205 = vmatpush.msra.mxu0 0.0
    %1206 = vmatpush.msra.mxu0 0.0
    %1207 = vmatpush.msra.mxu0 0.0
    %1208 = vmatpush.msra.mxu0 0.0
    %1209 = vmatpush.msra.mxu0 0.0
    %1210 = vmatpush.msra.mxu0 0.0
    %1211 = vmatpush.msra.mxu0 0.0
    %1212 = vmatpush.msra.mxu0 0.0
    %1213 = vmatpush.msra.mxu0 %v1099
    %1214 = vmatpush.msra.mxu0 %v1095
    %1215 = vmatpush.msra.mxu0 %v1091
    %1216 = vmatmul.f32.gmra.mxu0 %v1102
    %v1217 = vpop.f32.mrf.mxu0
    %v1218 = vadd.f32 0.0, %v1217
    %1219 = vmatmul.f32.gmra.mxu0 %v1105
    %v1220 = vpop.f32.mrf.mxu0
    %v1221 = vadd.f32 0.0, %v1220
    %1222 = vmatmul.f32.gmra.mxu0 %v1108
    %v1223 = vpop.f32.mrf.mxu0
    %v1224 = vadd.f32 0.0, %v1223
    %1225 = vmatmul.f32.gmra.mxu0 %v1111
    %v1226 = vpop.f32.mrf.mxu0
    %v1227 = vadd.f32 0.0, %v1226
    %1228 = vdwg.mxu0
    %v1229 = vld [vmem:[%s4] sm:$0xff]
    %v1230 = vld [vmem:[%s4 + $0x8] sm:$0xff]
    %v1231 = vld [vmem:[%s4 + $0x10] sm:$0xff]
    %v1232 = vld [vmem:[%s8 + $0x1] sm:$0x1]
    %v1233 = vperm.slane %v1232, 0
    %1234 = vmatpush.msra.mxu0 %v1227
    %1235 = vmatpush.msra.mxu0 %v1224
    %1236 = vmatpush.msra.mxu0 %v1221
    %1237 = vmatpush.msra.mxu0 %v1218
    %1238 = vmatpush.msra.mxu0 %v1198
    %1239 = vmatpush.msra.mxu0 %v1195
    %1240 = vmatpush.msra.mxu0 %v1192
    %1241 = vmatpush.msra.mxu0 %v1189
    %1242 = vmatpush.msra.mxu0 %v1169
    %1243 = vmatpush.msra.mxu0 %v1166
    %1244 = vmatpush.msra.mxu0 %v1163
    %1245 = vmatpush.msra.mxu0 %v1160
    %1246 = vmatpush.msra.mxu0 %v1140
    %1247 = vmatpush.msra.mxu0 %v1137
    %1248 = vmatpush.msra.mxu0 %v1134
    %1249 = vmatpush.msra.mxu0 %v1131
    %1250 = vmatmul.f32.gmra.mxu0 %v1229
    %v1251 = vpop.f32.mrf.mxu0
    %v1252 = vadd.f32 %v1233, %v1251
    %1253 = vmatmul.f32.gmra.mxu0 %v1230
    %v1254 = vpop.f32.mrf.mxu0
    %v1255 = vadd.f32 %v1233, %v1254
    %1256 = vmatmul.f32.gmra.mxu0 %v1231
    %v1257 = vpop.f32.mrf.mxu0
    %v1258 = vadd.f32 %v1233, %v1257
    %1259 = vdwg.mxu0
    %v1260 = vmax.f32 %v1252, 0.0
    %v1261 = vmax.f32 %v1255, 0.0
    %v1262 = vmax.f32 %v1258, 0.0
    %v1263 = vld [vmem:[%s6 + $0x80] sm:$0xff]
    %v1264 = vld [vmem:[%s6 + $0x88] sm:$0xff]
    %v1265 = vld [vmem:[%s6 + $0x90] sm:$0xff]
    %v1266 = vld [vmem:[%s6 + $0x98] sm:$0xff]
    %v1267 = vld [vmem:[%s6 + $0xa0] sm:$0xff]
    %v1268 = vld [vmem:[%s6 + $0xa8] sm:$0xff]
    %v1269 = vld [vmem:[%s6 + $0xb0] sm:$0xff]
    %v1270 = vld [vmem:[%s6 + $0xb8] sm:$0xff]
    %v1271 = vld [vmem:[%s6 + $0xc0] sm:$0xff]
    %v1272 = vld [vmem:[%s6 + $0xc8] sm:$0xff]
    %v1273 = vld [vmem:[%s6 + $0xd0] sm:$0xff]
    %v1274 = vld [vmem:[%s6 + $0xd8] sm:$0xff]
    %v1275 = vld [vmem:[%s6 + $0xe0] sm:$0xff]
    %v1276 = vld [vmem:[%s6 + $0xe8] sm:$0xff]
    %v1277 = vld [vmem:[%s6 + $0xf0] sm:$0xff]
    %v1278 = vld [vmem:[%s6 + $0xf8] sm:$0xff]
    %v1279 = vld [vmem:[%s6 + $0x100] sm:$0xff]
    %v1280 = vld [vmem:[%s6 + $0x108] sm:$0xff]
    %v1281 = vld [vmem:[%s6 + $0x110] sm:$0xff]
    %v1282 = vld [vmem:[%s6 + $0x118] sm:$0xff]
    %v1283 = vld [vmem:[%s6 + $0x120] sm:$0xff]
    %v1284 = vld [vmem:[%s6 + $0x128] sm:$0xff]
    %v1285 = vld [vmem:[%s6 + $0x130] sm:$0xff]
    %v1286 = vld [vmem:[%s6 + $0x138] sm:$0xff]
    %vm1287 = vcmask 392192
    %v1289 = vsel %vm1287, %v1260, 0
    %v1292 = vsel %vm1287, %v1261, 0
    %v1295 = vsel %vm1287, %v1262, 0
    %1297 = vmatpush.msra.mxu0 0.0
    %1298 = vmatpush.msra.mxu0 0.0
    %1299 = vmatpush.msra.mxu0 0.0
    %1300 = vmatpush.msra.mxu0 0.0
    %1301 = vmatpush.msra.mxu0 0.0
    %1302 = vmatpush.msra.mxu0 0.0
    %1303 = vmatpush.msra.mxu0 0.0
    %1304 = vmatpush.msra.mxu0 0.0
    %1305 = vmatpush.msra.mxu0 0.0
    %1306 = vmatpush.msra.mxu0 0.0
    %1307 = vmatpush.msra.mxu0 %v1283
    %1308 = vmatpush.msra.mxu0 %v1279
    %1309 = vmatpush.msra.mxu0 %v1275
    %1310 = vmatpush.msra.mxu0 %v1271
    %1311 = vmatpush.msra.mxu0 %v1267
    %1312 = vmatpush.msra.mxu0 %v1263
    %1313 = vmatmul.f32.gmra.mxu0 %v1289
    %v1314 = vpop.f32.mrf.mxu0
    %v1315 = vadd.f32 0.0, %v1314
    %1316 = vmatmul.f32.gmra.mxu0 %v1292
    %v1317 = vpop.f32.mrf.mxu0
    %v1318 = vadd.f32 0.0, %v1317
    %1319 = vmatmul.f32.gmra.mxu0 %v1295
    %v1320 = vpop.f32.mrf.mxu0
    %v1321 = vadd.f32 0.0, %v1320
    %1322 = vdwg.mxu0
    %1323 = vmatpush.msra.mxu0 0.0
    %1324 = vmatpush.msra.mxu0 0.0
    %1325 = vmatpush.msra.mxu0 0.0
    %1326 = vmatpush.msra.mxu0 0.0
    %1327 = vmatpush.msra.mxu0 0.0
    %1328 = vmatpush.msra.mxu0 0.0
    %1329 = vmatpush.msra.mxu0 0.0
    %1330 = vmatpush.msra.mxu0 0.0
    %1331 = vmatpush.msra.mxu0 0.0
    %1332 = vmatpush.msra.mxu0 0.0
    %1333 = vmatpush.msra.mxu0 %v1284
    %1334 = vmatpush.msra.mxu0 %v1280
    %1335 = vmatpush.msra.mxu0 %v1276
    %1336 = vmatpush.msra.mxu0 %v1272
    %1337 = vmatpush.msra.mxu0 %v1268
    %1338 = vmatpush.msra.mxu0 %v1264
    %1339 = vmatmul.f32.gmra.mxu0 %v1289
    %v1340 = vpop.f32.mrf.mxu0
    %v1341 = vadd.f32 0.0, %v1340
    %1342 = vmatmul.f32.gmra.mxu0 %v1292
    %v1343 = vpop.f32.mrf.mxu0
    %v1344 = vadd.f32 0.0, %v1343
    %1345 = vmatmul.f32.gmra.mxu0 %v1295
    %v1346 = vpop.f32.mrf.mxu0
    %v1347 = vadd.f32 0.0, %v1346
    %1348 = vdwg.mxu0
    %1349 = vmatpush.msra.mxu0 0.0
    %1350 = vmatpush.msra.mxu0 0.0
    %1351 = vmatpush.msra.mxu0 0.0
    %1352 = vmatpush.msra.mxu0 0.0
    %1353 = vmatpush.msra.mxu0 0.0
    %1354 = vmatpush.msra.mxu0 0.0
    %1355 = vmatpush.msra.mxu0 0.0
    %1356 = vmatpush.msra.mxu0 0.0
    %1357 = vmatpush.msra.mxu0 0.0
    %1358 = vmatpush.msra.mxu0 0.0
    %1359 = vmatpush.msra.mxu0 %v1285
    %1360 = vmatpush.msra.mxu0 %v1281
    %1361 = vmatpush.msra.mxu0 %v1277
    %1362 = vmatpush.msra.mxu0 %v1273
    %1363 = vmatpush.msra.mxu0 %v1269
    %1364 = vmatpush.msra.mxu0 %v1265
    %1365 = vmatmul.f32.gmra.mxu0 %v1289
    %v1366 = vpop.f32.mrf.mxu0
    %v1367 = vadd.f32 0.0, %v1366
    %1368 = vmatmul.f32.gmra.mxu0 %v1292
    %v1369 = vpop.f32.mrf.mxu0
    %v1370 = vadd.f32 0.0, %v1369
    %1371 = vmatmul.f32.gmra.mxu0 %v1295
    %v1372 = vpop.f32.mrf.mxu0
    %v1373 = vadd.f32 0.0, %v1372
    %1374 = vdwg.mxu0
    %1375 = vmatpush.msra.mxu0 0.0
    %1376 = vmatpush.msra.mxu0 0.0
    %1377 = vmatpush.msra.mxu0 0.0
    %1378 = vmatpush.msra.mxu0 0.0
    %1379 = vmatpush.msra.mxu0 0.0
    %1380 = vmatpush.msra.mxu0 0.0
    %1381 = vmatpush.msra.mxu0 0.0
    %1382 = vmatpush.msra.mxu0 0.0
    %1383 = vmatpush.msra.mxu0 0.0
    %1384 = vmatpush.msra.mxu0 0.0
    %1385 = vmatpush.msra.mxu0 %v1286
    %1386 = vmatpush.msra.mxu0 %v1282
    %1387 = vmatpush.msra.mxu0 %v1278
    %1388 = vmatpush.msra.mxu0 %v1274
    %1389 = vmatpush.msra.mxu0 %v1270
    %1390 = vmatpush.msra.mxu0 %v1266
    %1391 = vmatmul.f32.gmra.mxu0 %v1289
    %v1392 = vpop.f32.mrf.mxu0
    %v1393 = vadd.f32 0.0, %v1392
    %1394 = vmatmul.f32.gmra.mxu0 %v1292
    %v1395 = vpop.f32.mrf.mxu0
    %v1396 = vadd.f32 0.0, %v1395
    %1397 = vmatmul.f32.gmra.mxu0 %v1295
    %v1398 = vpop.f32.mrf.mxu0
    %v1399 = vadd.f32 0.0, %v1398
    %1400 = vdwg.mxu0
    %v1401 = vld [vmem:[%s5] sm:$0xff]
    %v1402 = vld [vmem:[%s5 + $0x8] sm:$0xff]
    %v1403 = vld [vmem:[%s5 + $0x10] sm:$0xff]
    %v1404 = vld [vmem:[%s5 + $0x18] sm:$0xff]
    %v1405 = vld [vmem:[%s8 + $0x2] sm:$0x1]
    %v1406 = vperm.slane %v1405, 0
    %vm1407 = vcmask 785408
    %v1409 = vsel %vm1407, %v1401, 0
    %v1412 = vsel %vm1407, %v1402, 0
    %v1415 = vsel %vm1407, %v1403, 0
    %v1418 = vsel %vm1407, %v1404, 0
    %1420 = vmatpush.msra.mxu0 0.0
    %1421 = vmatpush.msra.mxu0 0.0
    %1422 = vmatpush.msra.mxu0 0.0
    %1423 = vmatpush.msra.mxu0 0.0
    %1424 = vmatpush.msra.mxu0 %v1399
    %1425 = vmatpush.msra.mxu0 %v1396
    %1426 = vmatpush.msra.mxu0 %v1393
    %1427 = vmatpush.msra.mxu0 %v1373
    %1428 = vmatpush.msra.mxu0 %v1370
    %1429 = vmatpush.msra.mxu0 %v1367
    %1430 = vmatpush.msra.mxu0 %v1347
    %1431 = vmatpush.msra.mxu0 %v1344
    %1432 = vmatpush.msra.mxu0 %v1341
    %1433 = vmatpush.msra.mxu0 %v1321
    %1434 = vmatpush.msra.mxu0 %v1318
    %1435 = vmatpush.msra.mxu0 %v1315
    %1436 = vmatmul.f32.gmra.mxu0 %v1409
    %v1437 = vpop.f32.mrf.mxu0
    %v1438 = vadd.f32 %v1406, %v1437
    %1439 = vmatmul.f32.gmra.mxu0 %v1412
    %v1440 = vpop.f32.mrf.mxu0
    %v1441 = vadd.f32 %v1406, %v1440
    %1442 = vmatmul.f32.gmra.mxu0 %v1415
    %v1443 = vpop.f32.mrf.mxu0
    %v1444 = vadd.f32 %v1406, %v1443
    %1445 = vmatmul.f32.gmra.mxu0 %v1418
    %v1446 = vpop.f32.mrf.mxu0
    %v1447 = vadd.f32 %v1406, %v1446
    %1448 = vdwg.mxu0
    %v1449 = vmax.f32 %v1438, 0.0
    %v1450 = vmax.f32 %v1441, 0.0
    %v1451 = vmax.f32 %v1444, 0.0
    %v1452 = vmax.f32 %v1447, 0.0
    %v1453 = vld [vmem:[%s1] sm:$0x3]
    %v1454 = vld [vmem:[%s7 + $0x100] sm:$0xff]
    %v1455 = vld [vmem:[%s7 + $0x108] sm:$0xff]
    %v1456 = vld [vmem:[%s7] sm:$0xff]
    %v1457 = vld [vmem:[%s7 + $0x8] sm:$0xff]
    %v1458 = vld [vmem:[%s7 + $0x10] sm:$0xff]
    %v1459 = vld [vmem:[%s7 + $0x18] sm:$0xff]
    %v1460 = vld [vmem:[%s7 + $0x20] sm:$0xff]
    %v1461 = vld [vmem:[%s7 + $0x28] sm:$0xff]
    %v1462 = vld [vmem:[%s7 + $0x30] sm:$0xff]
    %v1463 = vld [vmem:[%s7 + $0x38] sm:$0xff]
    %vm1464 = vcmask 523264
    %v1466 = vsel %vm1464, %v1449, 0
    %1468 = vmatpush.msra.mxu0 0.0
    %1469 = vmatpush.msra.mxu0 0.0
    %1470 = vmatpush.msra.mxu0 0.0
    %1471 = vmatpush.msra.mxu0 0.0
    %1472 = vmatpush.msra.mxu0 0.0
    %1473 = vmatpush.msra.mxu0 0.0
    %1474 = vmatpush.msra.mxu0 0.0
    %1475 = vmatpush.msra.mxu0 0.0
    %v1476 = vand.u32 %v1463, 4294901760
    %1477 = vmatpush.msra.mxu0 %v1476
    %v1478 = vand.u32 %v1462, 4294901760
    %1479 = vmatpush.msra.mxu0 %v1478
    %v1480 = vand.u32 %v1461, 4294901760
    %1481 = vmatpush.msra.mxu0 %v1480
    %v1482 = vand.u32 %v1460, 4294901760
    %1483 = vmatpush.msra.mxu0 %v1482
    %v1484 = vand.u32 %v1459, 4294901760
    %1485 = vmatpush.msra.mxu0 %v1484
    %v1486 = vand.u32 %v1458, 4294901760
    %1487 = vmatpush.msra.mxu0 %v1486
    %v1488 = vand.u32 %v1457, 4294901760
    %1489 = vmatpush.msra.mxu0 %v1488
    %v1490 = vand.u32 %v1456, 4294901760
    %1491 = vmatpush.msra.mxu0 %v1490
    %v1492 = vand.u32 %v1466, 4294901760
    %v1493 = vsub.f32 %v1466, %v1492
    %v1494 = vand.u32 %v1493, 4294901760
    %v1495 = vsub.f32 %v1493, %v1494
    %v1496 = vand.u32 %v1495, 4294901760
    %1497 = vmatmul.f32.gmra.mxu0 %v1496
    %v1498 = vpop.f32.mrf.mxu0
    %v1499 = vadd.f32 0.0, %v1498
    %1500 = vdwg.mxu0
    %1501 = vmatpush.msra.mxu0 0.0
    %1502 = vmatpush.msra.mxu0 0.0
    %1503 = vmatpush.msra.mxu0 0.0
    %1504 = vmatpush.msra.mxu0 0.0
    %1505 = vmatpush.msra.mxu0 0.0
    %1506 = vmatpush.msra.mxu0 0.0
    %1507 = vmatpush.msra.mxu0 0.0
    %1508 = vmatpush.msra.mxu0 0.0
    %v1509 = vand.u32 %v1463, 4294901760
    %v1510 = vsub.f32 %v1463, %v1509
    %v1511 = vand.u32 %v1510, 4294901760
    %v1512 = vsub.f32 %v1510, %v1511
    %v1513 = vand.u32 %v1512, 4294901760
    %1514 = vmatpush.msra.mxu0 %v1513
    %v1515 = vand.u32 %v1462, 4294901760
    %v1516 = vsub.f32 %v1462, %v1515
    %v1517 = vand.u32 %v1516, 4294901760
    %v1518 = vsub.f32 %v1516, %v1517
    %v1519 = vand.u32 %v1518, 4294901760
    %1520 = vmatpush.msra.mxu0 %v1519
    %v1521 = vand.u32 %v1461, 4294901760
    %v1522 = vsub.f32 %v1461, %v1521
    %v1523 = vand.u32 %v1522, 4294901760
    %v1524 = vsub.f32 %v1522, %v1523
    %v1525 = vand.u32 %v1524, 4294901760
    %1526 = vmatpush.msra.mxu0 %v1525
    %v1527 = vand.u32 %v1460, 4294901760
    %v1528 = vsub.f32 %v1460, %v1527
    %v1529 = vand.u32 %v1528, 4294901760
    %v1530 = vsub.f32 %v1528, %v1529
    %v1531 = vand.u32 %v1530, 4294901760
    %1532 = vmatpush.msra.mxu0 %v1531
    %v1533 = vand.u32 %v1459, 4294901760
    %v1534 = vsub.f32 %v1459, %v1533
    %v1535 = vand.u32 %v1534, 4294901760
    %v1536 = vsub.f32 %v1534, %v1535
    %v1537 = vand.u32 %v1536, 4294901760
    %1538 = vmatpush.msra.mxu0 %v1537
    %v1539 = vand.u32 %v1458, 4294901760
    %v1540 = vsub.f32 %v1458, %v1539
    %v1541 = vand.u32 %v1540, 4294901760
    %v1542 = vsub.f32 %v1540, %v1541
    %v1543 = vand.u32 %v1542, 4294901760
    %1544 = vmatpush.msra.mxu0 %v1543
    %v1545 = vand.u32 %v1457, 4294901760
    %v1546 = vsub.f32 %v1457, %v1545
    %v1547 = vand.u32 %v1546, 4294901760
    %v1548 = vsub.f32 %v1546, %v1547
    %v1549 = vand.u32 %v1548, 4294901760
    %1550 = vmatpush.msra.mxu0 %v1549
    %v1551 = vand.u32 %v1456, 4294901760
    %v1552 = vsub.f32 %v1456, %v1551
    %v1553 = vand.u32 %v1552, 4294901760
    %v1554 = vsub.f32 %v1552, %v1553
    %v1555 = vand.u32 %v1554, 4294901760
    %1556 = vmatpush.msra.mxu0 %v1555
    %v1557 = vand.u32 %v1466, 4294901760
    %1558 = vmatmul.f32.gmra.mxu0 %v1557
    %v1559 = vpop.f32.mrf.mxu0
    %v1560 = vadd.f32 %v1499, %v1559
    %1561 = vdwg.mxu0
    %1562 = vmatpush.msra.mxu0 0.0
    %1563 = vmatpush.msra.mxu0 0.0
    %1564 = vmatpush.msra.mxu0 0.0
    %1565 = vmatpush.msra.mxu0 0.0
    %1566 = vmatpush.msra.mxu0 0.0
    %1567 = vmatpush.msra.mxu0 0.0
    %1568 = vmatpush.msra.mxu0 0.0
    %1569 = vmatpush.msra.mxu0 0.0
    %v1570 = vand.u32 %v1463, 4294901760
    %v1571 = vsub.f32 %v1463, %v1570
    %1572 = vmatpush.msra.mxu0 %v1571
    %v1573 = vand.u32 %v1462, 4294901760
    %v1574 = vsub.f32 %v1462, %v1573
    %1575 = vmatpush.msra.mxu0 %v1574
    %v1576 = vand.u32 %v1461, 4294901760
    %v1577 = vsub.f32 %v1461, %v1576
    %1578 = vmatpush.msra.mxu0 %v1577
    %v1579 = vand.u32 %v1460, 4294901760
    %v1580 = vsub.f32 %v1460, %v1579
    %1581 = vmatpush.msra.mxu0 %v1580
    %v1582 = vand.u32 %v1459, 4294901760
    %v1583 = vsub.f32 %v1459, %v1582
    %1584 = vmatpush.msra.mxu0 %v1583
    %v1585 = vand.u32 %v1458, 4294901760
    %v1586 = vsub.f32 %v1458, %v1585
    %1587 = vmatpush.msra.mxu0 %v1586
    %v1588 = vand.u32 %v1457, 4294901760
    %v1589 = vsub.f32 %v1457, %v1588
    %1590 = vmatpush.msra.mxu0 %v1589
    %v1591 = vand.u32 %v1456, 4294901760
    %v1592 = vsub.f32 %v1456, %v1591
    %1593 = vmatpush.msra.mxu0 %v1592
    %v1594 = vand.u32 %v1466, 4294901760
    %v1595 = vsub.f32 %v1466, %v1594
    %1596 = vmatmul.f32.gmra.mxu0 %v1595
    %v1597 = vpop.f32.mrf.mxu0
    %v1598 = vadd.f32 %v1560, %v1597
    %1599 = vdwg.mxu0
    %1600 = vmatpush.msra.mxu0 0.0
    %1601 = vmatpush.msra.mxu0 0.0
    %1602 = vmatpush.msra.mxu0 0.0
    %1603 = vmatpush.msra.mxu0 0.0
    %1604 = vmatpush.msra.mxu0 0.0
    %1605 = vmatpush.msra.mxu0 0.0
    %1606 = vmatpush.msra.mxu0 0.0
    %1607 = vmatpush.msra.mxu0 0.0
    %v1608 = vand.u32 %v1463, 4294901760
    %1609 = vmatpush.msra.mxu0 %v1608
    %v1610 = vand.u32 %v1462, 4294901760
    %1611 = vmatpush.msra.mxu0 %v1610
    %v1612 = vand.u32 %v1461, 4294901760
    %1613 = vmatpush.msra.mxu0 %v1612
    %v1614 = vand.u32 %v1460, 4294901760
    %1615 = vmatpush.msra.mxu0 %v1614
    %v1616 = vand.u32 %v1459, 4294901760
    %1617 = vmatpush.msra.mxu0 %v1616
    %v1618 = vand.u32 %v1458, 4294901760
    %1619 = vmatpush.msra.mxu0 %v1618
    %v1620 = vand.u32 %v1457, 4294901760
    %1621 = vmatpush.msra.mxu0 %v1620
    %v1622 = vand.u32 %v1456, 4294901760
    %1623 = vmatpush.msra.mxu0 %v1622
    %v1624 = vand.u32 %v1466, 4294901760
    %v1625 = vsub.f32 %v1466, %v1624
    %v1626 = vand.u32 %v1625, 4294901760
    %1627 = vmatmul.f32.gmra.mxu0 %v1626
    %v1628 = vpop.f32.mrf.mxu0
    %v1629 = vadd.f32 %v1598, %v1628
    %1630 = vdwg.mxu0
    %1631 = vmatpush.msra.mxu0 0.0
    %1632 = vmatpush.msra.mxu0 0.0
    %1633 = vmatpush.msra.mxu0 0.0
    %1634 = vmatpush.msra.mxu0 0.0
    %1635 = vmatpush.msra.mxu0 0.0
    %1636 = vmatpush.msra.mxu0 0.0
    %1637 = vmatpush.msra.mxu0 0.0
    %1638 = vmatpush.msra.mxu0 0.0
    %v1639 = vand.u32 %v1463, 4294901760
    %v1640 = vsub.f32 %v1463, %v1639
    %v1641 = vand.u32 %v1640, 4294901760
    %1642 = vmatpush.msra.mxu0 %v1641
    %v1643 = vand.u32 %v1462, 4294901760
    %v1644 = vsub.f32 %v1462, %v1643
    %v1645 = vand.u32 %v1644, 4294901760
    %1646 = vmatpush.msra.mxu0 %v1645
    %v1647 = vand.u32 %v1461, 4294901760
    %v1648 = vsub.f32 %v1461, %v1647
    %v1649 = vand.u32 %v1648, 4294901760
    %1650 = vmatpush.msra.mxu0 %v1649
    %v1651 = vand.u32 %v1460, 4294901760
    %v1652 = vsub.f32 %v1460, %v1651
    %v1653 = vand.u32 %v1652, 4294901760
    %1654 = vmatpush.msra.mxu0 %v1653
    %v1655 = vand.u32 %v1459, 4294901760
    %v1656 = vsub.f32 %v1459, %v1655
    %v1657 = vand.u32 %v1656, 4294901760
    %1658 = vmatpush.msra.mxu0 %v1657
    %v1659 = vand.u32 %v1458, 4294901760
    %v1660 = vsub.f32 %v1458, %v1659
    %v1661 = vand.u32 %v1660, 4294901760
    %1662 = vmatpush.msra.mxu0 %v1661
    %v1663 = vand.u32 %v1457, 4294901760
    %v1664 = vsub.f32 %v1457, %v1663
    %v1665 = vand.u32 %v1664, 4294901760
    %1666 = vmatpush.msra.mxu0 %v1665
    %v1667 = vand.u32 %v1456, 4294901760
    %v1668 = vsub.f32 %v1456, %v1667
    %v1669 = vand.u32 %v1668, 4294901760
    %1670 = vmatpush.msra.mxu0 %v1669
    %v1671 = vand.u32 %v1466, 4294901760
    %1672 = vmatmul.f32.gmra.mxu0 %v1671
    %v1673 = vpop.f32.mrf.mxu0
    %v1674 = vadd.f32 %v1629, %v1673
    %1675 = vdwg.mxu0
    %1676 = vmatpush.msra.mxu0 0.0
    %1677 = vmatpush.msra.mxu0 0.0
    %1678 = vmatpush.msra.mxu0 0.0
    %1679 = vmatpush.msra.mxu0 0.0
    %1680 = vmatpush.msra.mxu0 0.0
    %1681 = vmatpush.msra.mxu0 0.0
    %1682 = vmatpush.msra.mxu0 0.0
    %1683 = vmatpush.msra.mxu0 0.0
    %v1684 = vand.u32 %v1463, 4294901760
    %1685 = vmatpush.msra.mxu0 %v1684
    %v1686 = vand.u32 %v1462, 4294901760
    %1687 = vmatpush.msra.mxu0 %v1686
    %v1688 = vand.u32 %v1461, 4294901760
    %1689 = vmatpush.msra.mxu0 %v1688
    %v1690 = vand.u32 %v1460, 4294901760
    %1691 = vmatpush.msra.mxu0 %v1690
    %v1692 = vand.u32 %v1459, 4294901760
    %1693 = vmatpush.msra.mxu0 %v1692
    %v1694 = vand.u32 %v1458, 4294901760
    %1695 = vmatpush.msra.mxu0 %v1694
    %v1696 = vand.u32 %v1457, 4294901760
    %1697 = vmatpush.msra.mxu0 %v1696
    %v1698 = vand.u32 %v1456, 4294901760
    %1699 = vmatpush.msra.mxu0 %v1698
    %v1700 = vand.u32 %v1466, 4294901760
    %1701 = vmatmul.f32.gmra.mxu0 %v1700
    %v1702 = vpop.f32.mrf.mxu0
    %v1703 = vadd.f32 %v1674, %v1702
    %1704 = vdwg.mxu0
    %vm1705 = vcmask 130048
    %v1707 = vsel %vm1705, %v1453, 0
    %1709 = vmatpush.msra.mxu0 0.0
    %1710 = vmatpush.msra.mxu0 0.0
    %1711 = vmatpush.msra.mxu0 0.0
    %1712 = vmatpush.msra.mxu0 0.0
    %1713 = vmatpush.msra.mxu0 0.0
    %1714 = vmatpush.msra.mxu0 0.0
    %1715 = vmatpush.msra.mxu0 0.0
    %1716 = vmatpush.msra.mxu0 0.0
    %1717 = vmatpush.msra.mxu0 0.0
    %1718 = vmatpush.msra.mxu0 0.0
    %1719 = vmatpush.msra.mxu0 0.0
    %1720 = vmatpush.msra.mxu0 0.0
    %1721 = vmatpush.msra.mxu0 0.0
    %1722 = vmatpush.msra.mxu0 0.0
    %v1723 = vand.u32 %v1455, 4294901760
    %1724 = vmatpush.msra.mxu0 %v1723
    %v1725 = vand.u32 %v1454, 4294901760
    %1726 = vmatpush.msra.mxu0 %v1725
    %v1727 = vand.u32 %v1707, 4294901760
    %v1728 = vsub.f32 %v1707, %v1727
    %v1729 = vand.u32 %v1728, 4294901760
    %v1730 = vsub.f32 %v1728, %v1729
    %v1731 = vand.u32 %v1730, 4294901760
    %1732 = vmatmul.f32.gmra.mxu0 %v1731
    %v1733 = vpop.f32.mrf.mxu0
    %v1734 = vadd.f32 %v1703, %v1733
    %1735 = vdwg.mxu0
    %1736 = vmatpush.msra.mxu0 0.0
    %1737 = vmatpush.msra.mxu0 0.0
    %1738 = vmatpush.msra.mxu0 0.0
    %1739 = vmatpush.msra.mxu0 0.0
    %1740 = vmatpush.msra.mxu0 0.0
    %1741 = vmatpush.msra.mxu0 0.0
    %1742 = vmatpush.msra.mxu0 0.0
    %1743 = vmatpush.msra.mxu0 0.0
    %1744 = vmatpush.msra.mxu0 0.0
    %1745 = vmatpush.msra.mxu0 0.0
    %1746 = vmatpush.msra.mxu0 0.0
    %1747 = vmatpush.msra.mxu0 0.0
    %1748 = vmatpush.msra.mxu0 0.0
    %1749 = vmatpush.msra.mxu0 0.0
    %v1750 = vand.u32 %v1455, 4294901760
    %v1751 = vsub.f32 %v1455, %v1750
    %v1752 = vand.u32 %v1751, 4294901760
    %v1753 = vsub.f32 %v1751, %v1752
    %v1754 = vand.u32 %v1753, 4294901760
    %1755 = vmatpush.msra.mxu0 %v1754
    %v1756 = vand.u32 %v1454, 4294901760
    %v1757 = vsub.f32 %v1454, %v1756
    %v1758 = vand.u32 %v1757, 4294901760
    %v1759 = vsub.f32 %v1757, %v1758
    %v1760 = vand.u32 %v1759, 4294901760
    %1761 = vmatpush.msra.mxu0 %v1760
    %v1762 = vand.u32 %v1707, 4294901760
    %1763 = vmatmul.f32.gmra.mxu0 %v1762
    %v1764 = vpop.f32.mrf.mxu0
    %v1765 = vadd.f32 %v1734, %v1764
    %1766 = vdwg.mxu0
    %1767 = vmatpush.msra.mxu0 0.0
    %1768 = vmatpush.msra.mxu0 0.0
    %1769 = vmatpush.msra.mxu0 0.0
    %1770 = vmatpush.msra.mxu0 0.0
    %1771 = vmatpush.msra.mxu0 0.0
    %1772 = vmatpush.msra.mxu0 0.0
    %1773 = vmatpush.msra.mxu0 0.0
    %1774 = vmatpush.msra.mxu0 0.0
    %1775 = vmatpush.msra.mxu0 0.0
    %1776 = vmatpush.msra.mxu0 0.0
    %1777 = vmatpush.msra.mxu0 0.0
    %1778 = vmatpush.msra.mxu0 0.0
    %1779 = vmatpush.msra.mxu0 0.0
    %1780 = vmatpush.msra.mxu0 0.0
    %v1781 = vand.u32 %v1455, 4294901760
    %v1782 = vsub.f32 %v1455, %v1781
    %1783 = vmatpush.msra.mxu0 %v1782
    %v1784 = vand.u32 %v1454, 4294901760
    %v1785 = vsub.f32 %v1454, %v1784
    %1786 = vmatpush.msra.mxu0 %v1785
    %v1787 = vand.u32 %v1707, 4294901760
    %v1788 = vsub.f32 %v1707, %v1787
    %1789 = vmatmul.f32.gmra.mxu0 %v1788
    %v1790 = vpop.f32.mrf.mxu0
    %v1791 = vadd.f32 %v1765, %v1790
    %1792 = vdwg.mxu0
    %1793 = vmatpush.msra.mxu0 0.0
    %1794 = vmatpush.msra.mxu0 0.0
    %1795 = vmatpush.msra.mxu0 0.0
    %1796 = vmatpush.msra.mxu0 0.0
    %1797 = vmatpush.msra.mxu0 0.0
    %1798 = vmatpush.msra.mxu0 0.0
    %1799 = vmatpush.msra.mxu0 0.0
    %1800 = vmatpush.msra.mxu0 0.0
    %1801 = vmatpush.msra.mxu0 0.0
    %1802 = vmatpush.msra.mxu0 0.0
    %1803 = vmatpush.msra.mxu0 0.0
    %1804 = vmatpush.msra.mxu0 0.0
    %1805 = vmatpush.msra.mxu0 0.0
    %1806 = vmatpush.msra.mxu0 0.0
    %v1807 = vand.u32 %v1455, 4294901760
    %1808 = vmatpush.msra.mxu0 %v1807
    %v1809 = vand.u32 %v1454, 4294901760
    %1810 = vmatpush.msra.mxu0 %v1809
    %v1811 = vand.u32 %v1707, 4294901760
    %v1812 = vsub.f32 %v1707, %v1811
    %v1813 = vand.u32 %v1812, 4294901760
    %1814 = vmatmul.f32.gmra.mxu0 %v1813
    %v1815 = vpop.f32.mrf.mxu0
    %v1816 = vadd.f32 %v1791, %v1815
    %1817 = vdwg.mxu0
    %1818 = vmatpush.msra.mxu0 0.0
    %1819 = vmatpush.msra.mxu0 0.0
    %1820 = vmatpush.msra.mxu0 0.0
    %1821 = vmatpush.msra.mxu0 0.0
    %1822 = vmatpush.msra.mxu0 0.0
    %1823 = vmatpush.msra.mxu0 0.0
    %1824 = vmatpush.msra.mxu0 0.0
    %1825 = vmatpush.msra.mxu0 0.0
    %1826 = vmatpush.msra.mxu0 0.0
    %1827 = vmatpush.msra.mxu0 0.0
    %1828 = vmatpush.msra.mxu0 0.0
    %1829 = vmatpush.msra.mxu0 0.0
    %1830 = vmatpush.msra.mxu0 0.0
    %1831 = vmatpush.msra.mxu0 0.0
    %v1832 = vand.u32 %v1455, 4294901760
    %v1833 = vsub.f32 %v1455, %v1832
    %v1834 = vand.u32 %v1833, 4294901760
    %1835 = vmatpush.msra.mxu0 %v1834
    %v1836 = vand.u32 %v1454, 4294901760
    %v1837 = vsub.f32 %v1454, %v1836
    %v1838 = vand.u32 %v1837, 4294901760
    %1839 = vmatpush.msra.mxu0 %v1838
    %v1840 = vand.u32 %v1707, 4294901760
    %1841 = vmatmul.f32.gmra.mxu0 %v1840
    %v1842 = vpop.f32.mrf.mxu0
    %v1843 = vadd.f32 %v1816, %v1842
    %1844 = vdwg.mxu0
    %1845 = vmatpush.msra.mxu0 0.0
    %1846 = vmatpush.msra.mxu0 0.0
    %1847 = vmatpush.msra.mxu0 0.0
    %1848 = vmatpush.msra.mxu0 0.0
    %1849 = vmatpush.msra.mxu0 0.0
    %1850 = vmatpush.msra.mxu0 0.0
    %1851 = vmatpush.msra.mxu0 0.0
    %1852 = vmatpush.msra.mxu0 0.0
    %1853 = vmatpush.msra.mxu0 0.0
    %1854 = vmatpush.msra.mxu0 0.0
    %1855 = vmatpush.msra.mxu0 0.0
    %1856 = vmatpush.msra.mxu0 0.0
    %1857 = vmatpush.msra.mxu0 0.0
    %1858 = vmatpush.msra.mxu0 0.0
    %v1859 = vand.u32 %v1455, 4294901760
    %1860 = vmatpush.msra.mxu0 %v1859
    %v1861 = vand.u32 %v1454, 4294901760
    %1862 = vmatpush.msra.mxu0 %v1861
    %v1863 = vand.u32 %v1707, 4294901760
    %1864 = vmatmul.f32.gmra.mxu0 %v1863
    %v1865 = vpop.f32.mrf.mxu0
    %v1866 = vadd.f32 %v1843, %v1865
    %1867 = vdwg.mxu0
    %v1868 = vld [vmem:[%s7 + $0x40] sm:$0xff]
    %v1869 = vld [vmem:[%s7 + $0x48] sm:$0xff]
    %v1870 = vld [vmem:[%s7 + $0x50] sm:$0xff]
    %v1871 = vld [vmem:[%s7 + $0x58] sm:$0xff]
    %v1872 = vld [vmem:[%s7 + $0x60] sm:$0xff]
    %v1873 = vld [vmem:[%s7 + $0x68] sm:$0xff]
    %v1874 = vld [vmem:[%s7 + $0x70] sm:$0xff]
    %v1875 = vld [vmem:[%s7 + $0x78] sm:$0xff]
    %v1877 = vsel %vm1464, %v1450, 0
    %1879 = vmatpush.msra.mxu0 0.0
    %1880 = vmatpush.msra.mxu0 0.0
    %1881 = vmatpush.msra.mxu0 0.0
    %1882 = vmatpush.msra.mxu0 0.0
    %1883 = vmatpush.msra.mxu0 0.0
    %1884 = vmatpush.msra.mxu0 0.0
    %1885 = vmatpush.msra.mxu0 0.0
    %1886 = vmatpush.msra.mxu0 0.0
    %v1887 = vand.u32 %v1875, 4294901760
    %1888 = vmatpush.msra.mxu0 %v1887
    %v1889 = vand.u32 %v1874, 4294901760
    %1890 = vmatpush.msra.mxu0 %v1889
    %v1891 = vand.u32 %v1873, 4294901760
    %1892 = vmatpush.msra.mxu0 %v1891
    %v1893 = vand.u32 %v1872, 4294901760
    %1894 = vmatpush.msra.mxu0 %v1893
    %v1895 = vand.u32 %v1871, 4294901760
    %1896 = vmatpush.msra.mxu0 %v1895
    %v1897 = vand.u32 %v1870, 4294901760
    %1898 = vmatpush.msra.mxu0 %v1897
    %v1899 = vand.u32 %v1869, 4294901760
    %1900 = vmatpush.msra.mxu0 %v1899
    %v1901 = vand.u32 %v1868, 4294901760
    %1902 = vmatpush.msra.mxu0 %v1901
    %v1903 = vand.u32 %v1877, 4294901760
    %v1904 = vsub.f32 %v1877, %v1903
    %v1905 = vand.u32 %v1904, 4294901760
    %v1906 = vsub.f32 %v1904, %v1905
    %v1907 = vand.u32 %v1906, 4294901760
    %1908 = vmatmul.f32.gmra.mxu0 %v1907
    %v1909 = vpop.f32.mrf.mxu0
    %v1910 = vadd.f32 0.0, %v1909
    %1911 = vdwg.mxu0
    %1912 = vmatpush.msra.mxu0 0.0
    %1913 = vmatpush.msra.mxu0 0.0
    %1914 = vmatpush.msra.mxu0 0.0
    %1915 = vmatpush.msra.mxu0 0.0
    %1916 = vmatpush.msra.mxu0 0.0
    %1917 = vmatpush.msra.mxu0 0.0
    %1918 = vmatpush.msra.mxu0 0.0
    %1919 = vmatpush.msra.mxu0 0.0
    %v1920 = vand.u32 %v1875, 4294901760
    %v1921 = vsub.f32 %v1875, %v1920
    %v1922 = vand.u32 %v1921, 4294901760
    %v1923 = vsub.f32 %v1921, %v1922
    %v1924 = vand.u32 %v1923, 4294901760
    %1925 = vmatpush.msra.mxu0 %v1924
    %v1926 = vand.u32 %v1874, 4294901760
    %v1927 = vsub.f32 %v1874, %v1926
    %v1928 = vand.u32 %v1927, 4294901760
    %v1929 = vsub.f32 %v1927, %v1928
    %v1930 = vand.u32 %v1929, 4294901760
    %1931 = vmatpush.msra.mxu0 %v1930
    %v1932 = vand.u32 %v1873, 4294901760
    %v1933 = vsub.f32 %v1873, %v1932
    %v1934 = vand.u32 %v1933, 4294901760
    %v1935 = vsub.f32 %v1933, %v1934
    %v1936 = vand.u32 %v1935, 4294901760
    %1937 = vmatpush.msra.mxu0 %v1936
    %v1938 = vand.u32 %v1872, 4294901760
    %v1939 = vsub.f32 %v1872, %v1938
    %v1940 = vand.u32 %v1939, 4294901760
    %v1941 = vsub.f32 %v1939, %v1940
    %v1942 = vand.u32 %v1941, 4294901760
    %1943 = vmatpush.msra.mxu0 %v1942
    %v1944 = vand.u32 %v1871, 4294901760
    %v1945 = vsub.f32 %v1871, %v1944
    %v1946 = vand.u32 %v1945, 4294901760
    %v1947 = vsub.f32 %v1945, %v1946
    %v1948 = vand.u32 %v1947, 4294901760
    %1949 = vmatpush.msra.mxu0 %v1948
    %v1950 = vand.u32 %v1870, 4294901760
    %v1951 = vsub.f32 %v1870, %v1950
    %v1952 = vand.u32 %v1951, 4294901760
    %v1953 = vsub.f32 %v1951, %v1952
    %v1954 = vand.u32 %v1953, 4294901760
    %1955 = vmatpush.msra.mxu0 %v1954
    %v1956 = vand.u32 %v1869, 4294901760
    %v1957 = vsub.f32 %v1869, %v1956
    %v1958 = vand.u32 %v1957, 4294901760
    %v1959 = vsub.f32 %v1957, %v1958
    %v1960 = vand.u32 %v1959, 4294901760
    %1961 = vmatpush.msra.mxu0 %v1960
    %v1962 = vand.u32 %v1868, 4294901760
    %v1963 = vsub.f32 %v1868, %v1962
    %v1964 = vand.u32 %v1963, 4294901760
    %v1965 = vsub.f32 %v1963, %v1964
    %v1966 = vand.u32 %v1965, 4294901760
    %1967 = vmatpush.msra.mxu0 %v1966
    %v1968 = vand.u32 %v1877, 4294901760
    %1969 = vmatmul.f32.gmra.mxu0 %v1968
    %v1970 = vpop.f32.mrf.mxu0
    %v1971 = vadd.f32 %v1910, %v1970
    %1972 = vdwg.mxu0
    %1973 = vmatpush.msra.mxu0 0.0
    %1974 = vmatpush.msra.mxu0 0.0
    %1975 = vmatpush.msra.mxu0 0.0
    %1976 = vmatpush.msra.mxu0 0.0
    %1977 = vmatpush.msra.mxu0 0.0
    %1978 = vmatpush.msra.mxu0 0.0
    %1979 = vmatpush.msra.mxu0 0.0
    %1980 = vmatpush.msra.mxu0 0.0
    %v1981 = vand.u32 %v1875, 4294901760
    %v1982 = vsub.f32 %v1875, %v1981
    %1983 = vmatpush.msra.mxu0 %v1982
    %v1984 = vand.u32 %v1874, 4294901760
    %v1985 = vsub.f32 %v1874, %v1984
    %1986 = vmatpush.msra.mxu0 %v1985
    %v1987 = vand.u32 %v1873, 4294901760
    %v1988 = vsub.f32 %v1873, %v1987
    %1989 = vmatpush.msra.mxu0 %v1988
    %v1990 = vand.u32 %v1872, 4294901760
    %v1991 = vsub.f32 %v1872, %v1990
    %1992 = vmatpush.msra.mxu0 %v1991
    %v1993 = vand.u32 %v1871, 4294901760
    %v1994 = vsub.f32 %v1871, %v1993
    %1995 = vmatpush.msra.mxu0 %v1994
    %v1996 = vand.u32 %v1870, 4294901760
    %v1997 = vsub.f32 %v1870, %v1996
    %1998 = vmatpush.msra.mxu0 %v1997
    %v1999 = vand.u32 %v1869, 4294901760
    %v2000 = vsub.f32 %v1869, %v1999
    %2001 = vmatpush.msra.mxu0 %v2000
    %v2002 = vand.u32 %v1868, 4294901760
    %v2003 = vsub.f32 %v1868, %v2002
    %2004 = vmatpush.msra.mxu0 %v2003
    %v2005 = vand.u32 %v1877, 4294901760
    %v2006 = vsub.f32 %v1877, %v2005
    %2007 = vmatmul.f32.gmra.mxu0 %v2006
    %v2008 = vpop.f32.mrf.mxu0
    %v2009 = vadd.f32 %v1971, %v2008
    %2010 = vdwg.mxu0
    %2011 = vmatpush.msra.mxu0 0.0
    %2012 = vmatpush.msra.mxu0 0.0
    %2013 = vmatpush.msra.mxu0 0.0
    %2014 = vmatpush.msra.mxu0 0.0
    %2015 = vmatpush.msra.mxu0 0.0
    %2016 = vmatpush.msra.mxu0 0.0
    %2017 = vmatpush.msra.mxu0 0.0
    %2018 = vmatpush.msra.mxu0 0.0
    %v2019 = vand.u32 %v1875, 4294901760
    %2020 = vmatpush.msra.mxu0 %v2019
    %v2021 = vand.u32 %v1874, 4294901760
    %2022 = vmatpush.msra.mxu0 %v2021
    %v2023 = vand.u32 %v1873, 4294901760
    %2024 = vmatpush.msra.mxu0 %v2023
    %v2025 = vand.u32 %v1872, 4294901760
    %2026 = vmatpush.msra.mxu0 %v2025
    %v2027 = vand.u32 %v1871, 4294901760
    %2028 = vmatpush.msra.mxu0 %v2027
    %v2029 = vand.u32 %v1870, 4294901760
    %2030 = vmatpush.msra.mxu0 %v2029
    %v2031 = vand.u32 %v1869, 4294901760
    %2032 = vmatpush.msra.mxu0 %v2031
    %v2033 = vand.u32 %v1868, 4294901760
    %2034 = vmatpush.msra.mxu0 %v2033
    %v2035 = vand.u32 %v1877, 4294901760
    %v2036 = vsub.f32 %v1877, %v2035
    %v2037 = vand.u32 %v2036, 4294901760
    %2038 = vmatmul.f32.gmra.mxu0 %v2037
    %v2039 = vpop.f32.mrf.mxu0
    %v2040 = vadd.f32 %v2009, %v2039
    %2041 = vdwg.mxu0
    %2042 = vmatpush.msra.mxu0 0.0
    %2043 = vmatpush.msra.mxu0 0.0
    %2044 = vmatpush.msra.mxu0 0.0
    %2045 = vmatpush.msra.mxu0 0.0
    %2046 = vmatpush.msra.mxu0 0.0
    %2047 = vmatpush.msra.mxu0 0.0
    %2048 = vmatpush.msra.mxu0 0.0
    %2049 = vmatpush.msra.mxu0 0.0
    %v2050 = vand.u32 %v1875, 4294901760
    %v2051 = vsub.f32 %v1875, %v2050
    %v2052 = vand.u32 %v2051, 4294901760
    %2053 = vmatpush.msra.mxu0 %v2052
    %v2054 = vand.u32 %v1874, 4294901760
    %v2055 = vsub.f32 %v1874, %v2054
    %v2056 = vand.u32 %v2055, 4294901760
    %2057 = vmatpush.msra.mxu0 %v2056
    %v2058 = vand.u32 %v1873, 4294901760
    %v2059 = vsub.f32 %v1873, %v2058
    %v2060 = vand.u32 %v2059, 4294901760
    %2061 = vmatpush.msra.mxu0 %v2060
    %v2062 = vand.u32 %v1872, 4294901760
    %v2063 = vsub.f32 %v1872, %v2062
    %v2064 = vand.u32 %v2063, 4294901760
    %2065 = vmatpush.msra.mxu0 %v2064
    %v2066 = vand.u32 %v1871, 4294901760
    %v2067 = vsub.f32 %v1871, %v2066
    %v2068 = vand.u32 %v2067, 4294901760
    %2069 = vmatpush.msra.mxu0 %v2068
    %v2070 = vand.u32 %v1870, 4294901760
    %v2071 = vsub.f32 %v1870, %v2070
    %v2072 = vand.u32 %v2071, 4294901760
    %2073 = vmatpush.msra.mxu0 %v2072
    %v2074 = vand.u32 %v1869, 4294901760
    %v2075 = vsub.f32 %v1869, %v2074
    %v2076 = vand.u32 %v2075, 4294901760
    %2077 = vmatpush.msra.mxu0 %v2076
    %v2078 = vand.u32 %v1868, 4294901760
    %v2079 = vsub.f32 %v1868, %v2078
    %v2080 = vand.u32 %v2079, 4294901760
    %2081 = vmatpush.msra.mxu0 %v2080
    %v2082 = vand.u32 %v1877, 4294901760
    %2083 = vmatmul.f32.gmra.mxu0 %v2082
    %v2084 = vpop.f32.mrf.mxu0
    %v2085 = vadd.f32 %v2040, %v2084
    %2086 = vdwg.mxu0
    %2087 = vmatpush.msra.mxu0 0.0
    %2088 = vmatpush.msra.mxu0 0.0
    %2089 = vmatpush.msra.mxu0 0.0
    %2090 = vmatpush.msra.mxu0 0.0
    %2091 = vmatpush.msra.mxu0 0.0
    %2092 = vmatpush.msra.mxu0 0.0
    %2093 = vmatpush.msra.mxu0 0.0
    %2094 = vmatpush.msra.mxu0 0.0
    %v2095 = vand.u32 %v1875, 4294901760
    %2096 = vmatpush.msra.mxu0 %v2095
    %v2097 = vand.u32 %v1874, 4294901760
    %2098 = vmatpush.msra.mxu0 %v2097
    %v2099 = vand.u32 %v1873, 4294901760
    %2100 = vmatpush.msra.mxu0 %v2099
    %v2101 = vand.u32 %v1872, 4294901760
    %2102 = vmatpush.msra.mxu0 %v2101
    %v2103 = vand.u32 %v1871, 4294901760
    %2104 = vmatpush.msra.mxu0 %v2103
    %v2105 = vand.u32 %v1870, 4294901760
    %2106 = vmatpush.msra.mxu0 %v2105
    %v2107 = vand.u32 %v1869, 4294901760
    %2108 = vmatpush.msra.mxu0 %v2107
    %v2109 = vand.u32 %v1868, 4294901760
    %2110 = vmatpush.msra.mxu0 %v2109
    %v2111 = vand.u32 %v1877, 4294901760
    %2112 = vmatmul.f32.gmra.mxu0 %v2111
    %v2113 = vpop.f32.mrf.mxu0
    %v2114 = vadd.f32 %v2085, %v2113
    %2115 = vdwg.mxu0
    %v2116 = vadd.f32 %v1866, %v2114
    %v2117 = vld [vmem:[%s7 + $0x80] sm:$0xff]
    %v2118 = vld [vmem:[%s7 + $0x88] sm:$0xff]
    %v2119 = vld [vmem:[%s7 + $0x90] sm:$0xff]
    %v2120 = vld [vmem:[%s7 + $0x98] sm:$0xff]
    %v2121 = vld [vmem:[%s7 + $0xa0] sm:$0xff]
    %v2122 = vld [vmem:[%s7 + $0xa8] sm:$0xff]
    %v2123 = vld [vmem:[%s7 + $0xb0] sm:$0xff]
    %v2124 = vld [vmem:[%s7 + $0xb8] sm:$0xff]
    %v2126 = vsel %vm1464, %v1451, 0
    %2128 = vmatpush.msra.mxu0 0.0
    %2129 = vmatpush.msra.mxu0 0.0
    %2130 = vmatpush.msra.mxu0 0.0
    %2131 = vmatpush.msra.mxu0 0.0
    %2132 = vmatpush.msra.mxu0 0.0
    %2133 = vmatpush.msra.mxu0 0.0
    %2134 = vmatpush.msra.mxu0 0.0
    %2135 = vmatpush.msra.mxu0 0.0
    %v2136 = vand.u32 %v2124, 4294901760
    %2137 = vmatpush.msra.mxu0 %v2136
    %v2138 = vand.u32 %v2123, 4294901760
    %2139 = vmatpush.msra.mxu0 %v2138
    %v2140 = vand.u32 %v2122, 4294901760
    %2141 = vmatpush.msra.mxu0 %v2140
    %v2142 = vand.u32 %v2121, 4294901760
    %2143 = vmatpush.msra.mxu0 %v2142
    %v2144 = vand.u32 %v2120, 4294901760
    %2145 = vmatpush.msra.mxu0 %v2144
    %v2146 = vand.u32 %v2119, 4294901760
    %2147 = vmatpush.msra.mxu0 %v2146
    %v2148 = vand.u32 %v2118, 4294901760
    %2149 = vmatpush.msra.mxu0 %v2148
    %v2150 = vand.u32 %v2117, 4294901760
    %2151 = vmatpush.msra.mxu0 %v2150
    %v2152 = vand.u32 %v2126, 4294901760
    %v2153 = vsub.f32 %v2126, %v2152
    %v2154 = vand.u32 %v2153, 4294901760
    %v2155 = vsub.f32 %v2153, %v2154
    %v2156 = vand.u32 %v2155, 4294901760
    %2157 = vmatmul.f32.gmra.mxu0 %v2156
    %v2158 = vpop.f32.mrf.mxu0
    %v2159 = vadd.f32 0.0, %v2158
    %2160 = vdwg.mxu0
    %2161 = vmatpush.msra.mxu0 0.0
    %2162 = vmatpush.msra.mxu0 0.0
    %2163 = vmatpush.msra.mxu0 0.0
    %2164 = vmatpush.msra.mxu0 0.0
    %2165 = vmatpush.msra.mxu0 0.0
    %2166 = vmatpush.msra.mxu0 0.0
    %2167 = vmatpush.msra.mxu0 0.0
    %2168 = vmatpush.msra.mxu0 0.0
    %v2169 = vand.u32 %v2124, 4294901760
    %v2170 = vsub.f32 %v2124, %v2169
    %v2171 = vand.u32 %v2170, 4294901760
    %v2172 = vsub.f32 %v2170, %v2171
    %v2173 = vand.u32 %v2172, 4294901760
    %2174 = vmatpush.msra.mxu0 %v2173
    %v2175 = vand.u32 %v2123, 4294901760
    %v2176 = vsub.f32 %v2123, %v2175
    %v2177 = vand.u32 %v2176, 4294901760
    %v2178 = vsub.f32 %v2176, %v2177
    %v2179 = vand.u32 %v2178, 4294901760
    %2180 = vmatpush.msra.mxu0 %v2179
    %v2181 = vand.u32 %v2122, 4294901760
    %v2182 = vsub.f32 %v2122, %v2181
    %v2183 = vand.u32 %v2182, 4294901760
    %v2184 = vsub.f32 %v2182, %v2183
    %v2185 = vand.u32 %v2184, 4294901760
    %2186 = vmatpush.msra.mxu0 %v2185
    %v2187 = vand.u32 %v2121, 4294901760
    %v2188 = vsub.f32 %v2121, %v2187
    %v2189 = vand.u32 %v2188, 4294901760
    %v2190 = vsub.f32 %v2188, %v2189
    %v2191 = vand.u32 %v2190, 4294901760
    %2192 = vmatpush.msra.mxu0 %v2191
    %v2193 = vand.u32 %v2120, 4294901760
    %v2194 = vsub.f32 %v2120, %v2193
    %v2195 = vand.u32 %v2194, 4294901760
    %v2196 = vsub.f32 %v2194, %v2195
    %v2197 = vand.u32 %v2196, 4294901760
    %2198 = vmatpush.msra.mxu0 %v2197
    %v2199 = vand.u32 %v2119, 4294901760
    %v2200 = vsub.f32 %v2119, %v2199
    %v2201 = vand.u32 %v2200, 4294901760
    %v2202 = vsub.f32 %v2200, %v2201
    %v2203 = vand.u32 %v2202, 4294901760
    %2204 = vmatpush.msra.mxu0 %v2203
    %v2205 = vand.u32 %v2118, 4294901760
    %v2206 = vsub.f32 %v2118, %v2205
    %v2207 = vand.u32 %v2206, 4294901760
    %v2208 = vsub.f32 %v2206, %v2207
    %v2209 = vand.u32 %v2208, 4294901760
    %2210 = vmatpush.msra.mxu0 %v2209
    %v2211 = vand.u32 %v2117, 4294901760
    %v2212 = vsub.f32 %v2117, %v2211
    %v2213 = vand.u32 %v2212, 4294901760
    %v2214 = vsub.f32 %v2212, %v2213
    %v2215 = vand.u32 %v2214, 4294901760
    %2216 = vmatpush.msra.mxu0 %v2215
    %v2217 = vand.u32 %v2126, 4294901760
    %2218 = vmatmul.f32.gmra.mxu0 %v2217
    %v2219 = vpop.f32.mrf.mxu0
    %v2220 = vadd.f32 %v2159, %v2219
    %2221 = vdwg.mxu0
    %2222 = vmatpush.msra.mxu0 0.0
    %2223 = vmatpush.msra.mxu0 0.0
    %2224 = vmatpush.msra.mxu0 0.0
    %2225 = vmatpush.msra.mxu0 0.0
    %2226 = vmatpush.msra.mxu0 0.0
    %2227 = vmatpush.msra.mxu0 0.0
    %2228 = vmatpush.msra.mxu0 0.0
    %2229 = vmatpush.msra.mxu0 0.0
    %v2230 = vand.u32 %v2124, 4294901760
    %v2231 = vsub.f32 %v2124, %v2230
    %2232 = vmatpush.msra.mxu0 %v2231
    %v2233 = vand.u32 %v2123, 4294901760
    %v2234 = vsub.f32 %v2123, %v2233
    %2235 = vmatpush.msra.mxu0 %v2234
    %v2236 = vand.u32 %v2122, 4294901760
    %v2237 = vsub.f32 %v2122, %v2236
    %2238 = vmatpush.msra.mxu0 %v2237
    %v2239 = vand.u32 %v2121, 4294901760
    %v2240 = vsub.f32 %v2121, %v2239
    %2241 = vmatpush.msra.mxu0 %v2240
    %v2242 = vand.u32 %v2120, 4294901760
    %v2243 = vsub.f32 %v2120, %v2242
    %2244 = vmatpush.msra.mxu0 %v2243
    %v2245 = vand.u32 %v2119, 4294901760
    %v2246 = vsub.f32 %v2119, %v2245
    %2247 = vmatpush.msra.mxu0 %v2246
    %v2248 = vand.u32 %v2118, 4294901760
    %v2249 = vsub.f32 %v2118, %v2248
    %2250 = vmatpush.msra.mxu0 %v2249
    %v2251 = vand.u32 %v2117, 4294901760
    %v2252 = vsub.f32 %v2117, %v2251
    %2253 = vmatpush.msra.mxu0 %v2252
    %v2254 = vand.u32 %v2126, 4294901760
    %v2255 = vsub.f32 %v2126, %v2254
    %2256 = vmatmul.f32.gmra.mxu0 %v2255
    %v2257 = vpop.f32.mrf.mxu0
    %v2258 = vadd.f32 %v2220, %v2257
    %2259 = vdwg.mxu0
    %2260 = vmatpush.msra.mxu0 0.0
    %2261 = vmatpush.msra.mxu0 0.0
    %2262 = vmatpush.msra.mxu0 0.0
    %2263 = vmatpush.msra.mxu0 0.0
    %2264 = vmatpush.msra.mxu0 0.0
    %2265 = vmatpush.msra.mxu0 0.0
    %2266 = vmatpush.msra.mxu0 0.0
    %2267 = vmatpush.msra.mxu0 0.0
    %v2268 = vand.u32 %v2124, 4294901760
    %2269 = vmatpush.msra.mxu0 %v2268
    %v2270 = vand.u32 %v2123, 4294901760
    %2271 = vmatpush.msra.mxu0 %v2270
    %v2272 = vand.u32 %v2122, 4294901760
    %2273 = vmatpush.msra.mxu0 %v2272
    %v2274 = vand.u32 %v2121, 4294901760
    %2275 = vmatpush.msra.mxu0 %v2274
    %v2276 = vand.u32 %v2120, 4294901760
    %2277 = vmatpush.msra.mxu0 %v2276
    %v2278 = vand.u32 %v2119, 4294901760
    %2279 = vmatpush.msra.mxu0 %v2278
    %v2280 = vand.u32 %v2118, 4294901760
    %2281 = vmatpush.msra.mxu0 %v2280
    %v2282 = vand.u32 %v2117, 4294901760
    %2283 = vmatpush.msra.mxu0 %v2282
    %v2284 = vand.u32 %v2126, 4294901760
    %v2285 = vsub.f32 %v2126, %v2284
    %v2286 = vand.u32 %v2285, 4294901760
    %2287 = vmatmul.f32.gmra.mxu0 %v2286
    %v2288 = vpop.f32.mrf.mxu0
    %v2289 = vadd.f32 %v2258, %v2288
    %2290 = vdwg.mxu0
    %2291 = vmatpush.msra.mxu0 0.0
    %2292 = vmatpush.msra.mxu0 0.0
    %2293 = vmatpush.msra.mxu0 0.0
    %2294 = vmatpush.msra.mxu0 0.0
    %2295 = vmatpush.msra.mxu0 0.0
    %2296 = vmatpush.msra.mxu0 0.0
    %2297 = vmatpush.msra.mxu0 0.0
    %2298 = vmatpush.msra.mxu0 0.0
    %v2299 = vand.u32 %v2124, 4294901760
    %v2300 = vsub.f32 %v2124, %v2299
    %v2301 = vand.u32 %v2300, 4294901760
    %2302 = vmatpush.msra.mxu0 %v2301
    %v2303 = vand.u32 %v2123, 4294901760
    %v2304 = vsub.f32 %v2123, %v2303
    %v2305 = vand.u32 %v2304, 4294901760
    %2306 = vmatpush.msra.mxu0 %v2305
    %v2307 = vand.u32 %v2122, 4294901760
    %v2308 = vsub.f32 %v2122, %v2307
    %v2309 = vand.u32 %v2308, 4294901760
    %2310 = vmatpush.msra.mxu0 %v2309
    %v2311 = vand.u32 %v2121, 4294901760
    %v2312 = vsub.f32 %v2121, %v2311
    %v2313 = vand.u32 %v2312, 4294901760
    %2314 = vmatpush.msra.mxu0 %v2313
    %v2315 = vand.u32 %v2120, 4294901760
    %v2316 = vsub.f32 %v2120, %v2315
    %v2317 = vand.u32 %v2316, 4294901760
    %2318 = vmatpush.msra.mxu0 %v2317
    %v2319 = vand.u32 %v2119, 4294901760
    %v2320 = vsub.f32 %v2119, %v2319
    %v2321 = vand.u32 %v2320, 4294901760
    %2322 = vmatpush.msra.mxu0 %v2321
    %v2323 = vand.u32 %v2118, 4294901760
    %v2324 = vsub.f32 %v2118, %v2323
    %v2325 = vand.u32 %v2324, 4294901760
    %2326 = vmatpush.msra.mxu0 %v2325
    %v2327 = vand.u32 %v2117, 4294901760
    %v2328 = vsub.f32 %v2117, %v2327
    %v2329 = vand.u32 %v2328, 4294901760
    %2330 = vmatpush.msra.mxu0 %v2329
    %v2331 = vand.u32 %v2126, 4294901760
    %2332 = vmatmul.f32.gmra.mxu0 %v2331
    %v2333 = vpop.f32.mrf.mxu0
    %v2334 = vadd.f32 %v2289, %v2333
    %2335 = vdwg.mxu0
    %2336 = vmatpush.msra.mxu0 0.0
    %2337 = vmatpush.msra.mxu0 0.0
    %2338 = vmatpush.msra.mxu0 0.0
    %2339 = vmatpush.msra.mxu0 0.0
    %2340 = vmatpush.msra.mxu0 0.0
    %2341 = vmatpush.msra.mxu0 0.0
    %2342 = vmatpush.msra.mxu0 0.0
    %2343 = vmatpush.msra.mxu0 0.0
    %v2344 = vand.u32 %v2124, 4294901760
    %2345 = vmatpush.msra.mxu0 %v2344
    %v2346 = vand.u32 %v2123, 4294901760
    %2347 = vmatpush.msra.mxu0 %v2346
    %v2348 = vand.u32 %v2122, 4294901760
    %2349 = vmatpush.msra.mxu0 %v2348
    %v2350 = vand.u32 %v2121, 4294901760
    %2351 = vmatpush.msra.mxu0 %v2350
    %v2352 = vand.u32 %v2120, 4294901760
    %2353 = vmatpush.msra.mxu0 %v2352
    %v2354 = vand.u32 %v2119, 4294901760
    %2355 = vmatpush.msra.mxu0 %v2354
    %v2356 = vand.u32 %v2118, 4294901760
    %2357 = vmatpush.msra.mxu0 %v2356
    %v2358 = vand.u32 %v2117, 4294901760
    %2359 = vmatpush.msra.mxu0 %v2358
    %v2360 = vand.u32 %v2126, 4294901760
    %2361 = vmatmul.f32.gmra.mxu0 %v2360
    %v2362 = vpop.f32.mrf.mxu0
    %v2363 = vadd.f32 %v2334, %v2362
    %2364 = vdwg.mxu0
    %v2365 = vadd.f32 %v2116, %v2363
    %v2366 = vld [vmem:[%s7 + $0xc0] sm:$0xff]
    %v2367 = vld [vmem:[%s7 + $0xc8] sm:$0xff]
    %v2368 = vld [vmem:[%s7 + $0xd0] sm:$0xff]
    %v2369 = vld [vmem:[%s7 + $0xd8] sm:$0xff]
    %v2370 = vld [vmem:[%s7 + $0xe0] sm:$0xff]
    %v2371 = vld [vmem:[%s7 + $0xe8] sm:$0xff]
    %v2372 = vld [vmem:[%s7 + $0xf0] sm:$0xff]
    %v2373 = vld [vmem:[%s7 + $0xf8] sm:$0xff]
    %v2375 = vsel %vm1464, %v1452, 0
    %2377 = vmatpush.msra.mxu0 0.0
    %2378 = vmatpush.msra.mxu0 0.0
    %2379 = vmatpush.msra.mxu0 0.0
    %2380 = vmatpush.msra.mxu0 0.0
    %2381 = vmatpush.msra.mxu0 0.0
    %2382 = vmatpush.msra.mxu0 0.0
    %2383 = vmatpush.msra.mxu0 0.0
    %2384 = vmatpush.msra.mxu0 0.0
    %v2385 = vand.u32 %v2373, 4294901760
    %2386 = vmatpush.msra.mxu0 %v2385
    %v2387 = vand.u32 %v2372, 4294901760
    %2388 = vmatpush.msra.mxu0 %v2387
    %v2389 = vand.u32 %v2371, 4294901760
    %2390 = vmatpush.msra.mxu0 %v2389
    %v2391 = vand.u32 %v2370, 4294901760
    %2392 = vmatpush.msra.mxu0 %v2391
    %v2393 = vand.u32 %v2369, 4294901760
    %2394 = vmatpush.msra.mxu0 %v2393
    %v2395 = vand.u32 %v2368, 4294901760
    %2396 = vmatpush.msra.mxu0 %v2395
    %v2397 = vand.u32 %v2367, 4294901760
    %2398 = vmatpush.msra.mxu0 %v2397
    %v2399 = vand.u32 %v2366, 4294901760
    %2400 = vmatpush.msra.mxu0 %v2399
    %v2401 = vand.u32 %v2375, 4294901760
    %v2402 = vsub.f32 %v2375, %v2401
    %v2403 = vand.u32 %v2402, 4294901760
    %v2404 = vsub.f32 %v2402, %v2403
    %v2405 = vand.u32 %v2404, 4294901760
    %2406 = vmatmul.f32.gmra.mxu0 %v2405
    %v2407 = vpop.f32.mrf.mxu0
    %v2408 = vadd.f32 0.0, %v2407
    %2409 = vdwg.mxu0
    %2410 = vmatpush.msra.mxu0 0.0
    %2411 = vmatpush.msra.mxu0 0.0
    %2412 = vmatpush.msra.mxu0 0.0
    %2413 = vmatpush.msra.mxu0 0.0
    %2414 = vmatpush.msra.mxu0 0.0
    %2415 = vmatpush.msra.mxu0 0.0
    %2416 = vmatpush.msra.mxu0 0.0
    %2417 = vmatpush.msra.mxu0 0.0
    %v2418 = vand.u32 %v2373, 4294901760
    %v2419 = vsub.f32 %v2373, %v2418
    %v2420 = vand.u32 %v2419, 4294901760
    %v2421 = vsub.f32 %v2419, %v2420
    %v2422 = vand.u32 %v2421, 4294901760
    %2423 = vmatpush.msra.mxu0 %v2422
    %v2424 = vand.u32 %v2372, 4294901760
    %v2425 = vsub.f32 %v2372, %v2424
    %v2426 = vand.u32 %v2425, 4294901760
    %v2427 = vsub.f32 %v2425, %v2426
    %v2428 = vand.u32 %v2427, 4294901760
    %2429 = vmatpush.msra.mxu0 %v2428
    %v2430 = vand.u32 %v2371, 4294901760
    %v2431 = vsub.f32 %v2371, %v2430
    %v2432 = vand.u32 %v2431, 4294901760
    %v2433 = vsub.f32 %v2431, %v2432
    %v2434 = vand.u32 %v2433, 4294901760
    %2435 = vmatpush.msra.mxu0 %v2434
    %v2436 = vand.u32 %v2370, 4294901760
    %v2437 = vsub.f32 %v2370, %v2436
    %v2438 = vand.u32 %v2437, 4294901760
    %v2439 = vsub.f32 %v2437, %v2438
    %v2440 = vand.u32 %v2439, 4294901760
    %2441 = vmatpush.msra.mxu0 %v2440
    %v2442 = vand.u32 %v2369, 4294901760
    %v2443 = vsub.f32 %v2369, %v2442
    %v2444 = vand.u32 %v2443, 4294901760
    %v2445 = vsub.f32 %v2443, %v2444
    %v2446 = vand.u32 %v2445, 4294901760
    %2447 = vmatpush.msra.mxu0 %v2446
    %v2448 = vand.u32 %v2368, 4294901760
    %v2449 = vsub.f32 %v2368, %v2448
    %v2450 = vand.u32 %v2449, 4294901760
    %v2451 = vsub.f32 %v2449, %v2450
    %v2452 = vand.u32 %v2451, 4294901760
    %2453 = vmatpush.msra.mxu0 %v2452
    %v2454 = vand.u32 %v2367, 4294901760
    %v2455 = vsub.f32 %v2367, %v2454
    %v2456 = vand.u32 %v2455, 4294901760
    %v2457 = vsub.f32 %v2455, %v2456
    %v2458 = vand.u32 %v2457, 4294901760
    %2459 = vmatpush.msra.mxu0 %v2458
    %v2460 = vand.u32 %v2366, 4294901760
    %v2461 = vsub.f32 %v2366, %v2460
    %v2462 = vand.u32 %v2461, 4294901760
    %v2463 = vsub.f32 %v2461, %v2462
    %v2464 = vand.u32 %v2463, 4294901760
    %2465 = vmatpush.msra.mxu0 %v2464
    %v2466 = vand.u32 %v2375, 4294901760
    %2467 = vmatmul.f32.gmra.mxu0 %v2466
    %v2468 = vpop.f32.mrf.mxu0
    %v2469 = vadd.f32 %v2408, %v2468
    %2470 = vdwg.mxu0
    %2471 = vmatpush.msra.mxu0 0.0
    %2472 = vmatpush.msra.mxu0 0.0
    %2473 = vmatpush.msra.mxu0 0.0
    %2474 = vmatpush.msra.mxu0 0.0
    %2475 = vmatpush.msra.mxu0 0.0
    %2476 = vmatpush.msra.mxu0 0.0
    %2477 = vmatpush.msra.mxu0 0.0
    %2478 = vmatpush.msra.mxu0 0.0
    %v2479 = vand.u32 %v2373, 4294901760
    %v2480 = vsub.f32 %v2373, %v2479
    %2481 = vmatpush.msra.mxu0 %v2480
    %v2482 = vand.u32 %v2372, 4294901760
    %v2483 = vsub.f32 %v2372, %v2482
    %2484 = vmatpush.msra.mxu0 %v2483
    %v2485 = vand.u32 %v2371, 4294901760
    %v2486 = vsub.f32 %v2371, %v2485
    %2487 = vmatpush.msra.mxu0 %v2486
    %v2488 = vand.u32 %v2370, 4294901760
    %v2489 = vsub.f32 %v2370, %v2488
    %2490 = vmatpush.msra.mxu0 %v2489
    %v2491 = vand.u32 %v2369, 4294901760
    %v2492 = vsub.f32 %v2369, %v2491
    %2493 = vmatpush.msra.mxu0 %v2492
    %v2494 = vand.u32 %v2368, 4294901760
    %v2495 = vsub.f32 %v2368, %v2494
    %2496 = vmatpush.msra.mxu0 %v2495
    %v2497 = vand.u32 %v2367, 4294901760
    %v2498 = vsub.f32 %v2367, %v2497
    %2499 = vmatpush.msra.mxu0 %v2498
    %v2500 = vand.u32 %v2366, 4294901760
    %v2501 = vsub.f32 %v2366, %v2500
    %2502 = vmatpush.msra.mxu0 %v2501
    %v2503 = vand.u32 %v2375, 4294901760
    %v2504 = vsub.f32 %v2375, %v2503
    %2505 = vmatmul.f32.gmra.mxu0 %v2504
    %v2506 = vpop.f32.mrf.mxu0
    %v2507 = vadd.f32 %v2469, %v2506
    %2508 = vdwg.mxu0
    %2509 = vmatpush.msra.mxu0 0.0
    %2510 = vmatpush.msra.mxu0 0.0
    %2511 = vmatpush.msra.mxu0 0.0
    %2512 = vmatpush.msra.mxu0 0.0
    %2513 = vmatpush.msra.mxu0 0.0
    %2514 = vmatpush.msra.mxu0 0.0
    %2515 = vmatpush.msra.mxu0 0.0
    %2516 = vmatpush.msra.mxu0 0.0
    %v2517 = vand.u32 %v2373, 4294901760
    %2518 = vmatpush.msra.mxu0 %v2517
    %v2519 = vand.u32 %v2372, 4294901760
    %2520 = vmatpush.msra.mxu0 %v2519
    %v2521 = vand.u32 %v2371, 4294901760
    %2522 = vmatpush.msra.mxu0 %v2521
    %v2523 = vand.u32 %v2370, 4294901760
    %2524 = vmatpush.msra.mxu0 %v2523
    %v2525 = vand.u32 %v2369, 4294901760
    %2526 = vmatpush.msra.mxu0 %v2525
    %v2527 = vand.u32 %v2368, 4294901760
    %2528 = vmatpush.msra.mxu0 %v2527
    %v2529 = vand.u32 %v2367, 4294901760
    %2530 = vmatpush.msra.mxu0 %v2529
    %v2531 = vand.u32 %v2366, 4294901760
    %2532 = vmatpush.msra.mxu0 %v2531
    %v2533 = vand.u32 %v2375, 4294901760
    %v2534 = vsub.f32 %v2375, %v2533
    %v2535 = vand.u32 %v2534, 4294901760
    %2536 = vmatmul.f32.gmra.mxu0 %v2535
    %v2537 = vpop.f32.mrf.mxu0
    %v2538 = vadd.f32 %v2507, %v2537
    %2539 = vdwg.mxu0
    %2540 = vmatpush.msra.mxu0 0.0
    %2541 = vmatpush.msra.mxu0 0.0
    %2542 = vmatpush.msra.mxu0 0.0
    %2543 = vmatpush.msra.mxu0 0.0
    %2544 = vmatpush.msra.mxu0 0.0
    %2545 = vmatpush.msra.mxu0 0.0
    %2546 = vmatpush.msra.mxu0 0.0
    %2547 = vmatpush.msra.mxu0 0.0
    %v2548 = vand.u32 %v2373, 4294901760
    %v2549 = vsub.f32 %v2373, %v2548
    %v2550 = vand.u32 %v2549, 4294901760
    %2551 = vmatpush.msra.mxu0 %v2550
    %v2552 = vand.u32 %v2372, 4294901760
    %v2553 = vsub.f32 %v2372, %v2552
    %v2554 = vand.u32 %v2553, 4294901760
    %2555 = vmatpush.msra.mxu0 %v2554
    %v2556 = vand.u32 %v2371, 4294901760
    %v2557 = vsub.f32 %v2371, %v2556
    %v2558 = vand.u32 %v2557, 4294901760
    %2559 = vmatpush.msra.mxu0 %v2558
    %v2560 = vand.u32 %v2370, 4294901760
    %v2561 = vsub.f32 %v2370, %v2560
    %v2562 = vand.u32 %v2561, 4294901760
    %2563 = vmatpush.msra.mxu0 %v2562
    %v2564 = vand.u32 %v2369, 4294901760
    %v2565 = vsub.f32 %v2369, %v2564
    %v2566 = vand.u32 %v2565, 4294901760
    %2567 = vmatpush.msra.mxu0 %v2566
    %v2568 = vand.u32 %v2368, 4294901760
    %v2569 = vsub.f32 %v2368, %v2568
    %v2570 = vand.u32 %v2569, 4294901760
    %2571 = vmatpush.msra.mxu0 %v2570
    %v2572 = vand.u32 %v2367, 4294901760
    %v2573 = vsub.f32 %v2367, %v2572
    %v2574 = vand.u32 %v2573, 4294901760
    %2575 = vmatpush.msra.mxu0 %v2574
    %v2576 = vand.u32 %v2366, 4294901760
    %v2577 = vsub.f32 %v2366, %v2576
    %v2578 = vand.u32 %v2577, 4294901760
    %2579 = vmatpush.msra.mxu0 %v2578
    %v2580 = vand.u32 %v2375, 4294901760
    %2581 = vmatmul.f32.gmra.mxu0 %v2580
    %v2582 = vpop.f32.mrf.mxu0
    %v2583 = vadd.f32 %v2538, %v2582
    %2584 = vdwg.mxu0
    %2585 = vmatpush.msra.mxu0 0.0
    %2586 = vmatpush.msra.mxu0 0.0
    %2587 = vmatpush.msra.mxu0 0.0
    %2588 = vmatpush.msra.mxu0 0.0
    %2589 = vmatpush.msra.mxu0 0.0
    %2590 = vmatpush.msra.mxu0 0.0
    %2591 = vmatpush.msra.mxu0 0.0
    %2592 = vmatpush.msra.mxu0 0.0
    %v2593 = vand.u32 %v2373, 4294901760
    %2594 = vmatpush.msra.mxu0 %v2593
    %v2595 = vand.u32 %v2372, 4294901760
    %2596 = vmatpush.msra.mxu0 %v2595
    %v2597 = vand.u32 %v2371, 4294901760
    %2598 = vmatpush.msra.mxu0 %v2597
    %v2599 = vand.u32 %v2370, 4294901760
    %2600 = vmatpush.msra.mxu0 %v2599
    %v2601 = vand.u32 %v2369, 4294901760
    %2602 = vmatpush.msra.mxu0 %v2601
    %v2603 = vand.u32 %v2368, 4294901760
    %2604 = vmatpush.msra.mxu0 %v2603
    %v2605 = vand.u32 %v2367, 4294901760
    %2606 = vmatpush.msra.mxu0 %v2605
    %v2607 = vand.u32 %v2366, 4294901760
    %2608 = vmatpush.msra.mxu0 %v2607
    %v2609 = vand.u32 %v2375, 4294901760
    %2610 = vmatmul.f32.gmra.mxu0 %v2609
    %v2611 = vpop.f32.mrf.mxu0
    %v2612 = vadd.f32 %v2583, %v2611
    %2613 = vdwg.mxu0
    %v2614 = vadd.f32 %v2365, %v2612
    %v2615 = vld [vmem:[%s8 + $0x3] sm:$0x1]
    %v2616 = vperm.slane %v2615, 0
    %v2617 = vadd.f32 %v2614, %v2616
    %v2618 = vtanh.pop %v2617
    %v2619 = vld [vmem:[%s7 + $0x110] sm:$0xff]
    %v2620 = vld [vmem:[%s7 + $0x118] sm:$0xff]
    %v2621 = vld [vmem:[%s7 + $0x120] sm:$0xff]
    %v2622 = vld [vmem:[%s7 + $0x128] sm:$0xff]
    %v2623 = vld [vmem:[%s7 + $0x130] sm:$0xff]
    %v2624 = vld [vmem:[%s7 + $0x138] sm:$0xff]
    %v2625 = vld [vmem:[%s7 + $0x140] sm:$0xff]
    %v2626 = vld [vmem:[%s7 + $0x148] sm:$0xff]
    %v2627 = vld [vmem:[%s7 + $0x150] sm:$0xff]
    %v2628 = vld [vmem:[%s7 + $0x158] sm:$0xff]
    %v2629 = vld [vmem:[%s7 + $0x160] sm:$0xff]
    %v2630 = vld [vmem:[%s7 + $0x168] sm:$0xff]
    %v2631 = vld [vmem:[%s7 + $0x170] sm:$0xff]
    %v2632 = vld [vmem:[%s7 + $0x178] sm:$0xff]
    %v2633 = vld [vmem:[%s7 + $0x180] sm:$0xff]
    %v2634 = vld [vmem:[%s7 + $0x188] sm:$0xff]
    %v2635 = vld [vmem:[%s8 + $0x4] sm:$0x1]
    %v2636 = vperm.slane %v2635, 0
    %v2637 = vand.u32 %v2634, 4294901760
    %2638 = vmatpush.msra.mxu0 %v2637
    %v2639 = vand.u32 %v2633, 4294901760
    %2640 = vmatpush.msra.mxu0 %v2639
    %v2641 = vand.u32 %v2632, 4294901760
    %2642 = vmatpush.msra.mxu0 %v2641
    %v2643 = vand.u32 %v2631, 4294901760
    %2644 = vmatpush.msra.mxu0 %v2643
    %v2645 = vand.u32 %v2630, 4294901760
    %2646 = vmatpush.msra.mxu0 %v2645
    %v2647 = vand.u32 %v2629, 4294901760
    %2648 = vmatpush.msra.mxu0 %v2647
    %v2649 = vand.u32 %v2628, 4294901760
    %2650 = vmatpush.msra.mxu0 %v2649
    %v2651 = vand.u32 %v2627, 4294901760
    %2652 = vmatpush.msra.mxu0 %v2651
    %v2653 = vand.u32 %v2626, 4294901760
    %2654 = vmatpush.msra.mxu0 %v2653
    %v2655 = vand.u32 %v2625, 4294901760
    %2656 = vmatpush.msra.mxu0 %v2655
    %v2657 = vand.u32 %v2624, 4294901760
    %2658 = vmatpush.msra.mxu0 %v2657
    %v2659 = vand.u32 %v2623, 4294901760
    %2660 = vmatpush.msra.mxu0 %v2659
    %v2661 = vand.u32 %v2622, 4294901760
    %2662 = vmatpush.msra.mxu0 %v2661
    %v2663 = vand.u32 %v2621, 4294901760
    %2664 = vmatpush.msra.mxu0 %v2663
    %v2665 = vand.u32 %v2620, 4294901760
    %2666 = vmatpush.msra.mxu0 %v2665
    %v2667 = vand.u32 %v2619, 4294901760
    %2668 = vmatpush.msra.mxu0 %v2667
    %v2669 = vand.u32 %v2618, 4294901760
    %v2670 = vsub.f32 %v2618, %v2669
    %v2671 = vand.u32 %v2670, 4294901760
    %v2672 = vsub.f32 %v2670, %v2671
    %v2673 = vand.u32 %v2672, 4294901760
    %2674 = vmatmul.f32.gmra.mxu0 %v2673
    %v2675 = vpop.f32.mrf.mxu0
    %v2676 = vadd.f32 %v2636, %v2675
    %2677 = vdwg.mxu0
    %v2678 = vand.u32 %v2634, 4294901760
    %v2679 = vsub.f32 %v2634, %v2678
    %v2680 = vand.u32 %v2679, 4294901760
    %v2681 = vsub.f32 %v2679, %v2680
    %v2682 = vand.u32 %v2681, 4294901760
    %2683 = vmatpush.msra.mxu0 %v2682
    %v2684 = vand.u32 %v2633, 4294901760
    %v2685 = vsub.f32 %v2633, %v2684
    %v2686 = vand.u32 %v2685, 4294901760
    %v2687 = vsub.f32 %v2685, %v2686
    %v2688 = vand.u32 %v2687, 4294901760
    %2689 = vmatpush.msra.mxu0 %v2688
    %v2690 = vand.u32 %v2632, 4294901760
    %v2691 = vsub.f32 %v2632, %v2690
    %v2692 = vand.u32 %v2691, 4294901760
    %v2693 = vsub.f32 %v2691, %v2692
    %v2694 = vand.u32 %v2693, 4294901760
    %2695 = vmatpush.msra.mxu0 %v2694
    %v2696 = vand.u32 %v2631, 4294901760
    %v2697 = vsub.f32 %v2631, %v2696
    %v2698 = vand.u32 %v2697, 4294901760
    %v2699 = vsub.f32 %v2697, %v2698
    %v2700 = vand.u32 %v2699, 4294901760
    %2701 = vmatpush.msra.mxu0 %v2700
    %v2702 = vand.u32 %v2630, 4294901760
    %v2703 = vsub.f32 %v2630, %v2702
    %v2704 = vand.u32 %v2703, 4294901760
    %v2705 = vsub.f32 %v2703, %v2704
    %v2706 = vand.u32 %v2705, 4294901760
    %2707 = vmatpush.msra.mxu0 %v2706
    %v2708 = vand.u32 %v2629, 4294901760
    %v2709 = vsub.f32 %v2629, %v2708
    %v2710 = vand.u32 %v2709, 4294901760
    %v2711 = vsub.f32 %v2709, %v2710
    %v2712 = vand.u32 %v2711, 4294901760
    %2713 = vmatpush.msra.mxu0 %v2712
    %v2714 = vand.u32 %v2628, 4294901760
    %v2715 = vsub.f32 %v2628, %v2714
    %v2716 = vand.u32 %v2715, 4294901760
    %v2717 = vsub.f32 %v2715, %v2716
    %v2718 = vand.u32 %v2717, 4294901760
    %2719 = vmatpush.msra.mxu0 %v2718
    %v2720 = vand.u32 %v2627, 4294901760
    %v2721 = vsub.f32 %v2627, %v2720
    %v2722 = vand.u32 %v2721, 4294901760
    %v2723 = vsub.f32 %v2721, %v2722
    %v2724 = vand.u32 %v2723, 4294901760
    %2725 = vmatpush.msra.mxu0 %v2724
    %v2726 = vand.u32 %v2626, 4294901760
    %v2727 = vsub.f32 %v2626, %v2726
    %v2728 = vand.u32 %v2727, 4294901760
    %v2729 = vsub.f32 %v2727, %v2728
    %v2730 = vand.u32 %v2729, 4294901760
    %2731 = vmatpush.msra.mxu0 %v2730
    %v2732 = vand.u32 %v2625, 4294901760
    %v2733 = vsub.f32 %v2625, %v2732
    %v2734 = vand.u32 %v2733, 4294901760
    %v2735 = vsub.f32 %v2733, %v2734
    %v2736 = vand.u32 %v2735, 4294901760
    %2737 = vmatpush.msra.mxu0 %v2736
    %v2738 = vand.u32 %v2624, 4294901760
    %v2739 = vsub.f32 %v2624, %v2738
    %v2740 = vand.u32 %v2739, 4294901760
    %v2741 = vsub.f32 %v2739, %v2740
    %v2742 = vand.u32 %v2741, 4294901760
    %2743 = vmatpush.msra.mxu0 %v2742
    %v2744 = vand.u32 %v2623, 4294901760
    %v2745 = vsub.f32 %v2623, %v2744
    %v2746 = vand.u32 %v2745, 4294901760
    %v2747 = vsub.f32 %v2745, %v2746
    %v2748 = vand.u32 %v2747, 4294901760
    %2749 = vmatpush.msra.mxu0 %v2748
    %v2750 = vand.u32 %v2622, 4294901760
    %v2751 = vsub.f32 %v2622, %v2750
    %v2752 = vand.u32 %v2751, 4294901760
    %v2753 = vsub.f32 %v2751, %v2752
    %v2754 = vand.u32 %v2753, 4294901760
    %2755 = vmatpush.msra.mxu0 %v2754
    %v2756 = vand.u32 %v2621, 4294901760
    %v2757 = vsub.f32 %v2621, %v2756
    %v2758 = vand.u32 %v2757, 4294901760
    %v2759 = vsub.f32 %v2757, %v2758
    %v2760 = vand.u32 %v2759, 4294901760
    %2761 = vmatpush.msra.mxu0 %v2760
    %v2762 = vand.u32 %v2620, 4294901760
    %v2763 = vsub.f32 %v2620, %v2762
    %v2764 = vand.u32 %v2763, 4294901760
    %v2765 = vsub.f32 %v2763, %v2764
    %v2766 = vand.u32 %v2765, 4294901760
    %2767 = vmatpush.msra.mxu0 %v2766
    %v2768 = vand.u32 %v2619, 4294901760
    %v2769 = vsub.f32 %v2619, %v2768
    %v2770 = vand.u32 %v2769, 4294901760
    %v2771 = vsub.f32 %v2769, %v2770
    %v2772 = vand.u32 %v2771, 4294901760
    %2773 = vmatpush.msra.mxu0 %v2772
    %v2774 = vand.u32 %v2618, 4294901760
    %2775 = vmatmul.f32.gmra.mxu0 %v2774
    %v2776 = vpop.f32.mrf.mxu0
    %v2777 = vadd.f32 %v2676, %v2776
    %2778 = vdwg.mxu0
    %v2779 = vand.u32 %v2634, 4294901760
    %v2780 = vsub.f32 %v2634, %v2779
    %2781 = vmatpush.msra.mxu0 %v2780
    %v2782 = vand.u32 %v2633, 4294901760
    %v2783 = vsub.f32 %v2633, %v2782
    %2784 = vmatpush.msra.mxu0 %v2783
    %v2785 = vand.u32 %v2632, 4294901760
    %v2786 = vsub.f32 %v2632, %v2785
    %2787 = vmatpush.msra.mxu0 %v2786
    %v2788 = vand.u32 %v2631, 4294901760
    %v2789 = vsub.f32 %v2631, %v2788
    %2790 = vmatpush.msra.mxu0 %v2789
    %v2791 = vand.u32 %v2630, 4294901760
    %v2792 = vsub.f32 %v2630, %v2791
    %2793 = vmatpush.msra.mxu0 %v2792
    %v2794 = vand.u32 %v2629, 4294901760
    %v2795 = vsub.f32 %v2629, %v2794
    %2796 = vmatpush.msra.mxu0 %v2795
    %v2797 = vand.u32 %v2628, 4294901760
    %v2798 = vsub.f32 %v2628, %v2797
    %2799 = vmatpush.msra.mxu0 %v2798
    %v2800 = vand.u32 %v2627, 4294901760
    %v2801 = vsub.f32 %v2627, %v2800
    %2802 = vmatpush.msra.mxu0 %v2801
    %v2803 = vand.u32 %v2626, 4294901760
    %v2804 = vsub.f32 %v2626, %v2803
    %2805 = vmatpush.msra.mxu0 %v2804
    %v2806 = vand.u32 %v2625, 4294901760
    %v2807 = vsub.f32 %v2625, %v2806
    %2808 = vmatpush.msra.mxu0 %v2807
    %v2809 = vand.u32 %v2624, 4294901760
    %v2810 = vsub.f32 %v2624, %v2809
    %2811 = vmatpush.msra.mxu0 %v2810
    %v2812 = vand.u32 %v2623, 4294901760
    %v2813 = vsub.f32 %v2623, %v2812
    %2814 = vmatpush.msra.mxu0 %v2813
    %v2815 = vand.u32 %v2622, 4294901760
    %v2816 = vsub.f32 %v2622, %v2815
    %2817 = vmatpush.msra.mxu0 %v2816
    %v2818 = vand.u32 %v2621, 4294901760
    %v2819 = vsub.f32 %v2621, %v2818
    %2820 = vmatpush.msra.mxu0 %v2819
    %v2821 = vand.u32 %v2620, 4294901760
    %v2822 = vsub.f32 %v2620, %v2821
    %2823 = vmatpush.msra.mxu0 %v2822
    %v2824 = vand.u32 %v2619, 4294901760
    %v2825 = vsub.f32 %v2619, %v2824
    %2826 = vmatpush.msra.mxu0 %v2825
    %v2827 = vand.u32 %v2618, 4294901760
    %v2828 = vsub.f32 %v2618, %v2827
    %2829 = vmatmul.f32.gmra.mxu0 %v2828
    %v2830 = vpop.f32.mrf.mxu0
    %v2831 = vadd.f32 %v2777, %v2830
    %2832 = vdwg.mxu0
    %v2833 = vand.u32 %v2634, 4294901760
    %2834 = vmatpush.msra.mxu0 %v2833
    %v2835 = vand.u32 %v2633, 4294901760
    %2836 = vmatpush.msra.mxu0 %v2835
    %v2837 = vand.u32 %v2632, 4294901760
    %2838 = vmatpush.msra.mxu0 %v2837
    %v2839 = vand.u32 %v2631, 4294901760
    %2840 = vmatpush.msra.mxu0 %v2839
    %v2841 = vand.u32 %v2630, 4294901760
    %2842 = vmatpush.msra.mxu0 %v2841
    %v2843 = vand.u32 %v2629, 4294901760
    %2844 = vmatpush.msra.mxu0 %v2843
    %v2845 = vand.u32 %v2628, 4294901760
    %2846 = vmatpush.msra.mxu0 %v2845
    %v2847 = vand.u32 %v2627, 4294901760
    %2848 = vmatpush.msra.mxu0 %v2847
    %v2849 = vand.u32 %v2626, 4294901760
    %2850 = vmatpush.msra.mxu0 %v2849
    %v2851 = vand.u32 %v2625, 4294901760
    %2852 = vmatpush.msra.mxu0 %v2851
    %v2853 = vand.u32 %v2624, 4294901760
    %2854 = vmatpush.msra.mxu0 %v2853
    %v2855 = vand.u32 %v2623, 4294901760
    %2856 = vmatpush.msra.mxu0 %v2855
    %v2857 = vand.u32 %v2622, 4294901760
    %2858 = vmatpush.msra.mxu0 %v2857
    %v2859 = vand.u32 %v2621, 4294901760
    %2860 = vmatpush.msra.mxu0 %v2859
    %v2861 = vand.u32 %v2620, 4294901760
    %2862 = vmatpush.msra.mxu0 %v2861
    %v2863 = vand.u32 %v2619, 4294901760
    %2864 = vmatpush.msra.mxu0 %v2863
    %v2865 = vand.u32 %v2618, 4294901760
    %v2866 = vsub.f32 %v2618, %v2865
    %v2867 = vand.u32 %v2866, 4294901760
    %2868 = vmatmul.f32.gmra.mxu0 %v2867
    %v2869 = vpop.f32.mrf.mxu0
    %v2870 = vadd.f32 %v2831, %v2869
    %2871 = vdwg.mxu0
    %v2872 = vand.u32 %v2634, 4294901760
    %v2873 = vsub.f32 %v2634, %v2872
    %v2874 = vand.u32 %v2873, 4294901760
    %2875 = vmatpush.msra.mxu0 %v2874
    %v2876 = vand.u32 %v2633, 4294901760
    %v2877 = vsub.f32 %v2633, %v2876
    %v2878 = vand.u32 %v2877, 4294901760
    %2879 = vmatpush.msra.mxu0 %v2878
    %v2880 = vand.u32 %v2632, 4294901760
    %v2881 = vsub.f32 %v2632, %v2880
    %v2882 = vand.u32 %v2881, 4294901760
    %2883 = vmatpush.msra.mxu0 %v2882
    %v2884 = vand.u32 %v2631, 4294901760
    %v2885 = vsub.f32 %v2631, %v2884
    %v2886 = vand.u32 %v2885, 4294901760
    %2887 = vmatpush.msra.mxu0 %v2886
    %v2888 = vand.u32 %v2630, 4294901760
    %v2889 = vsub.f32 %v2630, %v2888
    %v2890 = vand.u32 %v2889, 4294901760
    %2891 = vmatpush.msra.mxu0 %v2890
    %v2892 = vand.u32 %v2629, 4294901760
    %v2893 = vsub.f32 %v2629, %v2892
    %v2894 = vand.u32 %v2893, 4294901760
    %2895 = vmatpush.msra.mxu0 %v2894
    %v2896 = vand.u32 %v2628, 4294901760
    %v2897 = vsub.f32 %v2628, %v2896
    %v2898 = vand.u32 %v2897, 4294901760
    %2899 = vmatpush.msra.mxu0 %v2898
    %v2900 = vand.u32 %v2627, 4294901760
    %v2901 = vsub.f32 %v2627, %v2900
    %v2902 = vand.u32 %v2901, 4294901760
    %2903 = vmatpush.msra.mxu0 %v2902
    %v2904 = vand.u32 %v2626, 4294901760
    %v2905 = vsub.f32 %v2626, %v2904
    %v2906 = vand.u32 %v2905, 4294901760
    %2907 = vmatpush.msra.mxu0 %v2906
    %v2908 = vand.u32 %v2625, 4294901760
    %v2909 = vsub.f32 %v2625, %v2908
    %v2910 = vand.u32 %v2909, 4294901760
    %2911 = vmatpush.msra.mxu0 %v2910
    %v2912 = vand.u32 %v2624, 4294901760
    %v2913 = vsub.f32 %v2624, %v2912
    %v2914 = vand.u32 %v2913, 4294901760
    %2915 = vmatpush.msra.mxu0 %v2914
    %v2916 = vand.u32 %v2623, 4294901760
    %v2917 = vsub.f32 %v2623, %v2916
    %v2918 = vand.u32 %v2917, 4294901760
    %2919 = vmatpush.msra.mxu0 %v2918
    %v2920 = vand.u32 %v2622, 4294901760
    %v2921 = vsub.f32 %v2622, %v2920
    %v2922 = vand.u32 %v2921, 4294901760
    %2923 = vmatpush.msra.mxu0 %v2922
    %v2924 = vand.u32 %v2621, 4294901760
    %v2925 = vsub.f32 %v2621, %v2924
    %v2926 = vand.u32 %v2925, 4294901760
    %2927 = vmatpush.msra.mxu0 %v2926
    %v2928 = vand.u32 %v2620, 4294901760
    %v2929 = vsub.f32 %v2620, %v2928
    %v2930 = vand.u32 %v2929, 4294901760
    %2931 = vmatpush.msra.mxu0 %v2930
    %v2932 = vand.u32 %v2619, 4294901760
    %v2933 = vsub.f32 %v2619, %v2932
    %v2934 = vand.u32 %v2933, 4294901760
    %2935 = vmatpush.msra.mxu0 %v2934
    %v2936 = vand.u32 %v2618, 4294901760
    %2937 = vmatmul.f32.gmra.mxu0 %v2936
    %v2938 = vpop.f32.mrf.mxu0
    %v2939 = vadd.f32 %v2870, %v2938
    %2940 = vdwg.mxu0
    %v2941 = vand.u32 %v2634, 4294901760
    %2942 = vmatpush.msra.mxu0 %v2941
    %v2943 = vand.u32 %v2633, 4294901760
    %2944 = vmatpush.msra.mxu0 %v2943
    %v2945 = vand.u32 %v2632, 4294901760
    %2946 = vmatpush.msra.mxu0 %v2945
    %v2947 = vand.u32 %v2631, 4294901760
    %2948 = vmatpush.msra.mxu0 %v2947
    %v2949 = vand.u32 %v2630, 4294901760
    %2950 = vmatpush.msra.mxu0 %v2949
    %v2951 = vand.u32 %v2629, 4294901760
    %2952 = vmatpush.msra.mxu0 %v2951
    %v2953 = vand.u32 %v2628, 4294901760
    %2954 = vmatpush.msra.mxu0 %v2953
    %v2955 = vand.u32 %v2627, 4294901760
    %2956 = vmatpush.msra.mxu0 %v2955
    %v2957 = vand.u32 %v2626, 4294901760
    %2958 = vmatpush.msra.mxu0 %v2957
    %v2959 = vand.u32 %v2625, 4294901760
    %2960 = vmatpush.msra.mxu0 %v2959
    %v2961 = vand.u32 %v2624, 4294901760
    %2962 = vmatpush.msra.mxu0 %v2961
    %v2963 = vand.u32 %v2623, 4294901760
    %2964 = vmatpush.msra.mxu0 %v2963
    %v2965 = vand.u32 %v2622, 4294901760
    %2966 = vmatpush.msra.mxu0 %v2965
    %v2967 = vand.u32 %v2621, 4294901760
    %2968 = vmatpush.msra.mxu0 %v2967
    %v2969 = vand.u32 %v2620, 4294901760
    %2970 = vmatpush.msra.mxu0 %v2969
    %v2971 = vand.u32 %v2619, 4294901760
    %2972 = vmatpush.msra.mxu0 %v2971
    %v2973 = vand.u32 %v2618, 4294901760
    %2974 = vmatmul.f32.gmra.mxu0 %v2973
    %v2975 = vpop.f32.mrf.mxu0
    %v2976 = vadd.f32 %v2939, %v2975
    %2977 = vdwg.mxu0
    %v2978 = vlaneseq
    %v2979 = vand.u32 %v2978, 127
    %vm2980 = vcmp.lt.s32.totalorder %v2979, 6
    %v2981 = vsel %vm2980, %v2976, -1e+30
    %vm2982 = vcmask 50176
    %v2983 = vsel %vm2982, %v2981, -inf
    %2984 = vmax.xlane.f32.xlu0 %v2983
    %v2985 = vpop.xlane.xlu0 %2984
    %v2986 = vsub.f32 %v2976, %v2985
    %v2987 = vsel %vm2980, %v2986, -1e+30
    %v2988 = vmul.f32 %v2987, 1.442695
    %v2989 = vpow.pop %v2988
    %v2990 = vsel %vm2982, %v2989, 0.0
    %2991 = vadd.xlane.f32.xlu0 %v2990
    %v2992 = vpop.xlane.xlu0 %2991
    %v2993 = vlog2.pop %v2992
    %v2994 = vmul.f32 %v2993, 0.6931472
    %v2995 = vadd.f32 %v2985, %v2994
    %v2996 = vsel %vm2980, %v2995, 0.0
    %v2997 = vsub.f32 %v2976, %v2996
    %2998 = vst.msk [vmem:[#allocation2] sm:$0x3] %vm2982, %v2997
    // Predicated region
    $region38: #{tpu_custom_call.1} parent=1 // pred_check
      _
    $region39: #{tpu_custom_call.1} parent=1 // pred_check_branch
      %3000 = sbr.rel (0) target = $region41
    $region40: #{tpu_custom_call.1} parent=1 // pred_region
      %3002 = vsyncadd [#allocation3], 0
      %s3004 = sshll.u32 [#allocation2], 4
      %s3005 = int_to_ptr.vmem [resolvable:$true] %s3004
      %s3006 = sshll.u32 %s9, 4
      %s3007 = int_to_ptr.hbm [resolvable:$true] %s3006
      %3009 = dma.vmem_to_hbm [thread:$0]  %s3005, 32, %s3007, [#allocation3]
    $region41: #{tpu_custom_call.1} parent=1 // pred_fallthru
      _
    // Predicated region
    $region42: #{tpu_custom_call.1} parent=1 // pred_check
      _
    $region43: #{tpu_custom_call.1} parent=1 // pred_check_branch
      %3011 = sbr.rel (0) target = $region45
    $region44: #{tpu_custom_call.1} parent=1 // pred_region
      %3013 = dma.done [#allocation3], 32
    $region45: #{tpu_custom_call.1} parent=1 // pred_fallthru
      _
    %3014 = vsyncpa [#allocation3], 1

</llo_original>
